<compile_context>
chip_gen: v7x
topology: tpu7x:2x2x1
jax: 0.10.0
libtpu: 0.0.40
codegen_flags: <defaults>
</compile_context>

<pallas_src>
import functools

import jax
import jax.numpy as jnp
from jax.experimental import pallas as pl
from jax.experimental.pallas import tpu as pltpu


def _round_up(n, m):
    return ((n + m - 1) // m) * m


def _vmem_limit(bytes_needed, lo=8 << 20, hi=48 << 20):
    """Declared VMEM limit from actual resident bytes (+50% / +2MiB headroom)."""
    return int(min(max(int(bytes_needed * 1.5) + (2 << 20), lo), hi))


def _pick_batch_tile(T, D, Hp, B, budget_bytes=12 << 20):
    """Largest batch tile (multiple of 16, <=256) whose resident blocks
    (double-buffered x/out + zx scratch + state temporaries) fit the budget."""
    per_row = (2 * T * D * 2          # x bf16, double buffered
               + 2 * T * Hp * 2       # out bf16, double buffered (seq mode)
               + T * 4 * Hp * 4       # zx scratch (f32)
               + 6 * 4 * Hp * 4)      # h / c / z / gate temporaries (f32)
    bt = budget_bytes // max(per_row, 1)
    bt = max(16, min(256, (bt // 16) * 16))
    return min(bt, _round_up(B, 16))


# ---------------------------------------------------------------------------
# Pallas kernels
# ---------------------------------------------------------------------------
def _lstm_recurrence(x_ref, lens_ref, wih_ref, whh_ref, b_ref, zx_ref, out_ref):
    """Shared masked-LSTM body for one (direction, batch-tile) grid point.

    x_ref   : (T, Bt, D)    bf16  time-major input
    lens_ref: (Bt, 1)       i32   valid length per sequence
    wih_ref : (D, 4*Hp)     bf16  gates fused along lanes [i | f | g | o]
    whh_ref : (Hp, 4*Hp)    bf16
    b_ref   : (1, 4*Hp)     f32   b_ih + b_hh merged
    zx_ref  : (T, Bt, 4*Hp) f32   VMEM scratch (hoisted input projection)
    out_ref : (T, Bt, Hp)   bf16  per-step hidden (zero past length), or None
    Returns the final (frozen-at-length) hidden state, (Bt, Hp) f32.
    """
    T, Bt, D = x_ref.shape
    Hp = whh_ref.shape[0]

    # Input projection hoisted out of the serial recurrence: one big lane-dense
    # GEMM over all timesteps, bias folded in, result parked in VMEM scratch.
    x_flat = x_ref[...].reshape(T * Bt, D)          # layout-preserving collapse
    zx = jnp.dot(x_flat, wih_ref[...], preferred_element_type=jnp.float32)
    zx_ref[...] = (zx + b_ref[...]).reshape(T, Bt, 4 * Hp)

    whh = whh_ref[...]                               # resident bf16 weights
    lens = lens_ref[...]                             # (Bt, 1) int32

    def step(t, carry):
        h, c = carry
        z = zx_ref[t] + jnp.dot(h.astype(jnp.bfloat16), whh,
                                preferred_element_type=jnp.float32)
        i_g = jax.nn.sigmoid(z[:, :Hp])
        f_g = jax.nn.sigmoid(z[:, Hp:2 * Hp])
        g_g = jnp.tanh(z[:, 2 * Hp:3 * Hp])
        o_g = jax.nn.sigmoid(z[:, 3 * Hp:])
        c_new = f_g * c + i_g * g_g
        h_new = o_g * jnp.tanh(c_new)

        valid = lens > t                             # (Bt, 1) bool, built in-kernel
        if out_ref is not None:
            # pack_padded_sequence semantics: per-step output is zero past length.
            out_ref[t] = jnp.where(valid, h_new, 0.0).astype(out_ref.dtype)
        # Freeze (h, c) past the length -> final h equals h at step len-1.
        h = jnp.where(valid, h_new, h)
        c = jnp.where(valid, c_new, c)
        return h, c

    h0 = jnp.zeros((Bt, Hp), jnp.float32)
    c0 = jnp.zeros((Bt, Hp), jnp.float32)
    h, _ = jax.lax.fori_loop(0, T, step, (h0, c0),
                             unroll=True if T <= 8 else 4)
    return h


def _lstm_seq_kernel(x_ref, lens_ref, wih_ref, whh_ref, b_ref, out_ref, zx_ref):
    _lstm_recurrence(x_ref, lens_ref, wih_ref, whh_ref, b_ref, zx_ref, out_ref)


def _lstm_last_kernel(x_ref, lens_ref, wih_ref, whh_ref, b_ref, last_ref, zx_ref):
    h = _lstm_recurrence(x_ref, lens_ref, wih_ref, whh_ref, b_ref, zx_ref, None)
    last_ref[...] = h.astype(last_ref.dtype)


def _fc_kernel(x_ref, w1_ref, b1_ref, w2_ref, b2_ref, o_ref):
    """tanh(x @ w1 + b1) @ w2 + b2; bf16 matmuls, f32 accumulate, padded lanes."""
    h = jnp.tanh(jnp.dot(x_ref[...], w1_ref[...],
                         preferred_element_type=jnp.float32) + b1_ref[...])
    o_ref[...] = jnp.dot(h.astype(jnp.bfloat16), w2_ref[...],
                         preferred_element_type=jnp.float32) + b2_ref[...]


# ---------------------------------------------------------------------------
# Pallas wrappers
# ---------------------------------------------------------------------------
def bilstm_pallas(x, x_rev, lengths, lstm_p, *, mode):
    """Bidirectional masked LSTM; both directions + batch tiles in one pallas_call.

    x, x_rev : (B, T, D) f32   forward-order / reversed-within-length input
    lengths  : (B,)      int   valid lengths (shared by both directions)
    mode     : "seq"  -> returns (out_fwd, out_bwd_rev), each (B, T, H) bf16
                         (bwd is in the reversed time order it was processed);
               "last" -> returns (last_fwd, last_bwd), each (B, H) bf16.
    """
    B, T, D = x.shape
    H, Hp = lstm_p["H"], lstm_p["Hp"]

    BT = _pick_batch_tile(T, D, Hp, B)
    Bp = _round_up(B, BT)
    nb = Bp // BT

    xs = jnp.stack([x, x_rev], axis=0)                            # (2, B, T, D)
    xs = jnp.pad(xs, ((0, 0), (0, Bp - B), (0, 0), (0, 0)))
    xs = jnp.transpose(xs, (0, 2, 1, 3)).astype(jnp.bfloat16)     # (2, T, Bp, D)

    lens = jnp.pad(lengths.astype(jnp.int32), ((0, Bp - B),))[:, None]  # (Bp, 1)

    in_specs = [
        pl.BlockSpec((None, T, BT, D), lambda d, bi: (d, 0, bi, 0)),
        pl.BlockSpec((BT, 1), lambda d, bi: (bi, 0)),
        pl.BlockSpec((None, D, 4 * Hp), lambda d, bi: (d, 0, 0)),
        pl.BlockSpec((None, Hp, 4 * Hp), lambda d, bi: (d, 0, 0)),
        pl.BlockSpec((None, 1, 4 * Hp), lambda d, bi: (d, 0, 0)),
    ]
    scratch = [pltpu.VMEM((T, BT, 4 * Hp), jnp.float32)]

    wbytes = (D * 4 * Hp + Hp * 4 * Hp) * 2 + 4 * Hp * 4          # one direction
    xbytes = T * BT * D * 2
    obytes = (T * BT * Hp if mode == "seq" else BT * Hp) * 2
    zbytes = T * BT * 4 * Hp * 4
    state = 6 * BT * Hp * 4
    vmem_bytes = _vmem_limit(2 * (wbytes + xbytes + obytes) + zbytes + state)

    cparams = pltpu.CompilerParams(
        dimension_semantics=("parallel", "parallel"),   # dirs x batch tiles
        vmem_limit_bytes=vmem_bytes)

    if mode == "seq":
        out = pl.pallas_call(
            _lstm_seq_kernel,
            grid=(2, nb),
            in_specs=in_specs,
            out_specs=pl.BlockSpec((None, T, BT, Hp),
                                   lambda d, bi: (d, 0, bi, 0)),
            out_shape=jax.ShapeDtypeStruct((2, T, Bp, Hp), jnp.bfloat16),
            scratch_shapes=scratch,
            compiler_params=cparams,
        )(xs, lens, lstm_p["wih"], lstm_p["whh"], lstm_p["b"])
        out = jnp.transpose(out, (0, 2, 1, 3))[:, :B, :, :H]      # (2, B, T, H)
        return out[0], out[1]

    last = pl.pallas_call(
        _lstm_last_kernel,
        grid=(2, nb),
        in_specs=in_specs,
        out_specs=pl.BlockSpec((None, BT, Hp), lambda d, bi: (d, bi, 0)),
        out_shape=jax.ShapeDtypeStruct((2, Bp, Hp), jnp.bfloat16),
        scratch_shapes=scratch,
        compiler_params=cparams,
    )(xs, lens, lstm_p["wih"], lstm_p["whh"], lstm_p["b"])
    last = last[:, :B, :H]                                        # (2, B, H)
    return last[0], last[1]


def fc_pallas(x, w1, b1, w2, b2):
    """tanh(x @ w1 + b1) @ w2 + b2, row-tiled (512), lane-padded output."""
    N, F = x.shape
    H1 = w1.shape[1]      # padded to a multiple of 128
    LNp = w2.shape[1]     # padded to a multiple of 128
    TN = 512 if N > 512 else _round_up(N, 16)
    Np = _round_up(N, TN)
    xp = jnp.pad(x, ((0, Np - N), (0, 0))).astype(jnp.bfloat16)

    need = ((F * H1 + H1 * LNp) * 2 + (H1 + LNp) * 4       # weights + biases
            + 2 * (TN * F * 2 + TN * LNp * 4)              # double-buffered x/out
            + TN * H1 * 4)                                 # hidden temp
    out = pl.pallas_call(
        _fc_kernel,
        grid=(Np // TN,),
        in_specs=[
            pl.BlockSpec((TN, F), lambda i: (i, 0)),
            pl.BlockSpec((F, H1), lambda i: (0, 0)),
            pl.BlockSpec((1, H1), lambda i: (0, 0)),
            pl.BlockSpec((H1, LNp), lambda i: (0, 0)),
            pl.BlockSpec((1, LNp), lambda i: (0, 0)),
        ],
        out_specs=pl.BlockSpec((TN, LNp), lambda i: (i, 0)),
        out_shape=jax.ShapeDtypeStruct((Np, LNp), jnp.float32),
        compiler_params=pltpu.CompilerParams(
            dimension_semantics=("parallel",),
            vmem_limit_bytes=_vmem_limit(need)),
    )(xp, w1, b1, w2, b2)
    return out[:N]


# ---------------------------------------------------------------------------
# Model glue (plain JAX)
# ---------------------------------------------------------------------------
def reverse_within_length(x, lengths):
    """Reverse each sequence within its valid length (x: (N, T, D))."""
    T = x.shape[1]
    idx = lengths[:, None] - 1 - jnp.arange(T, dtype=lengths.dtype)[None, :]
    idx = jnp.clip(idx, 0, T - 1)
    return jnp.take_along_axis(x, idx[:, :, None], axis=1)


def bilstm_crf_forward(params, text, char):
    """Returns emission scores (BS, WL, LN) -- the training=True output."""
    # ---- word embeddings ----------------------------------------------------
    word_len = jnp.sum(text != 0, axis=-1).astype(jnp.int32)          # (BS,)
    word_emb = jnp.take(params["word_emb"], text, axis=0)             # (BS,WL,WD)
    # dropout == identity (eval mode)

    # ---- char branch --------------------------------------------------------
    char_mask = jnp.sum(char != 0, axis=-1, keepdims=True)            # (BS,WL,1)
    char_void = jnp.zeros_like(char).at[:, :, 0].add(1)
    char = jnp.where(char_mask != 0, char, char_void)
    char_len = jnp.sum(char != 0, axis=-1).astype(jnp.int32)          # (BS,WL)
    char_emb = jnp.take(params["char_emb"], char, axis=0)             # (BS,WL,CL,CD)

    BS, WL, CL, CD = char_emb.shape
    char_emb = char_emb.reshape(-1, CL, CD)                           # (BS*WL,CL,CD)
    char_len_f = char_len.reshape(-1)                                 # (BS*WL,)
    char_emb_rev = reverse_within_length(char_emb, char_len_f)

    # Only the last hidden state is used (only_use_last_hidden_state=True):
    # the "last" kernel never allocates or writes a per-step output.
    ch_fwd, ch_bwd = bilstm_pallas(char_emb, char_emb_rev, char_len_f,
                                   params["char_lstm"], mode="last")  # (BS*WL,CHD)

    # mirrors ht.permute(1, 2, 0).reshape(BS, WL, -1): interleaved (fwd, bwd)
    char_feature = jnp.stack([ch_fwd, ch_bwd], axis=-1).reshape(BS, WL, -1)
    char_feature = char_feature.astype(jnp.float32)

    final_emb = jnp.concatenate([word_emb, char_feature], axis=-1)    # (BS,WL,WD+2CHD)

    # ---- word bi-LSTM -------------------------------------------------------
    wmask = (jnp.arange(WL)[None, :] < word_len[:, None]).astype(jnp.float32)
    emb_rev = reverse_within_length(final_emb, word_len)
    out_fwd, out_bwd_rev = bilstm_pallas(final_emb, emb_rev, word_len,
                                         params["word_lstm"], mode="seq")
    out_bwd = (reverse_within_length(out_bwd_rev, word_len).astype(jnp.float32)
               * wmask[:, :, None])
    word_feature = jnp.concatenate(
        [out_fwd.astype(jnp.float32), out_bwd], axis=-1)              # (BS,WL,2WHD)

    # ---- fc_hidden -> tanh -> fc_out ---------------------------------------
    flat = word_feature.reshape(BS * WL, -1)
    logits = fc_pallas(flat, params["fc1_w"], params["fc1_b"],
                       params["fc2_w"], params["fc2_b"])
    LN = params["LN"]
    return logits[:, :LN].reshape(BS, WL, LN)
    # TODO(synk): CRF decode/NLL is not part of the reference forward() path.


# ---------------------------------------------------------------------------
# Deterministic parameter construction (gate-fused, lane-padded, bf16 weights)
# ---------------------------------------------------------------------------
def init_bilstm_params(key, D, H, Hp):
    """Two-direction LSTM weights, gates fused along lanes [i|f|g|o], each gate
    zero-padded from H to Hp lanes, stacked over (fwd, bwd)."""
    # TODO(synk): for v5e, when 4*H <= 128 (char LSTM) pack the 4 gates into a
    # single 128-lane tile instead of padding each gate to Hp (4x less MXU N /
    # gate elementwise work); kept per-gate Hp padding here for one code path.
    def one_dir(k):
        k1, k2, k3 = jax.random.split(k, 3)
        w_ih = jax.random.uniform(k1, (4, D, H), jnp.float32, -0.1, 0.1)
        w_hh = jax.random.uniform(k2, (4, H, H), jnp.float32, -0.1, 0.1)
        bias = jax.random.uniform(k3, (4, H), jnp.float32, -0.1, 0.1)  # b_ih+b_hh merged
        wih = jnp.concatenate(
            [jnp.pad(w_ih[g], ((0, 0), (0, Hp - H))) for g in range(4)], axis=1)
        whh = jnp.concatenate(
            [jnp.pad(w_hh[g], ((0, Hp - H), (0, Hp - H))) for g in range(4)], axis=1)
        b = jnp.concatenate(
            [jnp.pad(bias[g], ((0, Hp - H),)) for g in range(4)])[None, :]
        return wih, whh, b

    kf, kb = jax.random.split(key)
    f = one_dir(kf)
    bw = one_dir(kb)
    return {
        "wih": jnp.stack([f[0], bw[0]]).astype(jnp.bfloat16),   # (2, D, 4Hp)
        "whh": jnp.stack([f[1], bw[1]]).astype(jnp.bfloat16),   # (2, Hp, 4Hp)
        "b":   jnp.stack([f[2], bw[2]]).astype(jnp.float32),    # (2, 1, 4Hp)
        "H": H,
        "Hp": Hp,
    }


def init_params(key, *, VW, WD, CN, CD, CHD, WHD, LN):
    Hp_c = _round_up(CHD, 128)
    Hp_w = _round_up(WHD, 128)
    H1p = _round_up(WHD, 128)
    LNp = _round_up(LN, 128)

    keys = jax.random.split(key, 8)
    word_emb = jax.random.normal(keys[0], (VW, WD), jnp.float32) * 0.1
    char_emb = jax.random.normal(keys[1], (CN, CD), jnp.float32) * 0.1
    char_emb = char_emb.at[0].set(0.0)       # padding_idx = 0

    fc1_w = jax.random.uniform(keys[4], (2 * WHD, WHD), jnp.float32, -0.1, 0.1)
    fc1_b = jax.random.uniform(keys[5], (WHD,), jnp.float32, -0.1, 0.1)
    fc2_w = jax.random.uniform(keys[6], (WHD, LN), jnp.float32, -0.1, 0.1)
    fc2_b = jax.random.uniform(keys[7], (LN,), jnp.float32, -0.1, 0.1)

    return {
        "word_emb": word_emb,
        "char_emb": char_emb,
        "char_lstm": init_bilstm_params(keys[2], CD, CHD, Hp_c),
        "word_lstm": init_bilstm_params(keys[3], WD + 2 * CHD, WHD, Hp_w),
        # fc weights: lane-padded to 128, bf16 matmul operands, f32 biases
        "fc1_w": jnp.pad(fc1_w, ((0, 0), (0, H1p - WHD))).astype(jnp.bfloat16),
        "fc1_b": jnp.pad(fc1_b, ((0, H1p - WHD),))[None, :].astype(jnp.float32),
        "fc2_w": jnp.pad(fc2_w, ((0, H1p - WHD), (0, LNp - LN))).astype(jnp.bfloat16),
        "fc2_b": jnp.pad(fc2_b, ((0, LNp - LN),))[None, :].astype(jnp.float32),
        "LN": LN,
    }


# ---------------------------------------------------------------------------
if __name__ == "__main__":
    BS, WL, CL = 2, 8, 6
    VW, WD = 30, 32
    CN, CD, CHD = 20, 16, 8
    WHD, LN = 16, 5

    key = jax.random.PRNGKey(0)
    kp, kt, kc = jax.random.split(key, 3)
    params = init_params(kp, VW=VW, WD=WD, CN=CN, CD=CD, CHD=CHD, WHD=WHD, LN=LN)

    # deterministic inputs with realistic padding
    text = jax.random.randint(kt, (BS, WL), 1, VW, dtype=jnp.int32)
    word_lens = jnp.array([WL, 5], dtype=jnp.int32)
    text = jnp.where(jnp.arange(WL)[None, :] < word_lens[:, None], text, 0)

    char = jax.random.randint(kc, (BS, WL, CL), 1, CN, dtype=jnp.int32)
    char_lens = (jax.random.randint(jax.random.PRNGKey(42), (BS, WL), 1, CL + 1)
                 .astype(jnp.int32))
    char = jnp.where(jnp.arange(CL)[None, None, :] < char_lens[:, :, None], char, 0)
    # padded word positions -> all-zero char rows (exercises the char_void path)
    char = jnp.where((text != 0)[:, :, None], char, 0)

    fwd = jax.jit(functools.partial(bilstm_crf_forward, params))
    emissions = fwd(text, char)
    jax.block_until_ready(emissions)

    assert emissions.shape == (BS, WL, LN), emissions.shape
    assert emissions.dtype == jnp.float32
    assert bool(jnp.all(jnp.isfinite(emissions)))
    print("KERNEL_OK")
</pallas_src>

<mosaic_0001>
module attributes {stable_mosaic.version = 11 : i64} {
  func.func @_lstm_last_kernel(%arg0: i32, %arg1: i32, %arg2: memref<1x6x16x16xbf16, #tpu.memory_space<vmem>>, %arg3: memref<16x1xi32, #tpu.memory_space<vmem>>, %arg4: memref<1x16x512xbf16, #tpu.memory_space<vmem>>, %arg5: memref<1x128x512xbf16, #tpu.memory_space<vmem>>, %arg6: memref<1x1x512xf32, #tpu.memory_space<vmem>>, %arg7: memref<1x16x128xbf16, #tpu.memory_space<vmem>>, %arg8: memref<6x16x512xf32, #tpu.memory_space<vmem>>) attributes {dimension_semantics = [#tpu.dimension_semantics<parallel>, #tpu.dimension_semantics<parallel>], iteration_bounds = array<i64: 2, 1>, scalar_prefetch = 0 : i64, scratch_operands = 1 : i64, tpu.core_type = #tpu.core_type<tc>, window_params = [{transform_indices = @transform_0, window_bounds = array<i64: 1, 6, 16, 16>}, {transform_indices = @transform_1, window_bounds = array<i64: 16, 1>}, {transform_indices = @transform_2, window_bounds = array<i64: 1, 16, 512>}, {transform_indices = @transform_3, window_bounds = array<i64: 1, 128, 512>}, {transform_indices = @transform_4, window_bounds = array<i64: 1, 1, 512>}, {transform_indices = @transform_5, window_bounds = array<i64: 1, 16, 128>}]} {
    %c0 = arith.constant 0 : index
    %c0_0 = arith.constant 0 : index
    %c0_1 = arith.constant 0 : index
    %c0_2 = arith.constant 0 : index
    %0 = vector.load %arg2[%c0, %c0_0, %c0_1, %c0_2] : memref<1x6x16x16xbf16, #tpu.memory_space<vmem>>, vector<1x6x16x16xbf16>
    %1 = vector.shape_cast %0 : vector<1x6x16x16xbf16> to vector<6x16x16xbf16>
    %2 = vector.shape_cast %1 : vector<6x16x16xbf16> to vector<96x16xbf16>
    %c0_3 = arith.constant 0 : index
    %c0_4 = arith.constant 0 : index
    %c0_5 = arith.constant 0 : index
    %3 = vector.load %arg4[%c0_3, %c0_4, %c0_5] : memref<1x16x512xbf16, #tpu.memory_space<vmem>>, vector<1x16x512xbf16>
    %4 = vector.shape_cast %3 : vector<1x16x512xbf16> to vector<16x512xbf16>
    %cst = arith.constant dense<0.000000e+00> : vector<96x512xf32>
    %5 = tpu.matmul %2, %4, %cst {dimension_numbers = #tpu.dot_dimension_numbers<[1], [0], [0], [1], [0, 0, 1, 1], [], []>} : vector<96x16xbf16>, vector<16x512xbf16>, vector<96x512xf32> -> vector<96x512xf32>
    %c0_6 = arith.constant 0 : index
    %c0_7 = arith.constant 0 : index
    %c0_8 = arith.constant 0 : index
    %6 = vector.load %arg6[%c0_6, %c0_7, %c0_8] : memref<1x1x512xf32, #tpu.memory_space<vmem>>, vector<1x1x512xf32>
    %7 = vector.shape_cast %6 : vector<1x1x512xf32> to vector<1x512xf32>
    %8 = vector.broadcast %7 : vector<1x512xf32> to vector<96x512xf32>
    %9 = arith.addf %5, %8 : vector<96x512xf32>
    %10 = vector.shape_cast %9 : vector<96x512xf32> to vector<6x16x512xf32>
    %c0_9 = arith.constant 0 : index
    %c0_10 = arith.constant 0 : index
    %c0_11 = arith.constant 0 : index
    %11 = vector.load %arg8[%c0_9, %c0_10, %c0_11] : memref<6x16x512xf32, #tpu.memory_space<vmem>>, vector<6x16x512xf32>
    tpu.vector_store %arg8[%c0_9, %c0_10, %c0_11], %10 {strides = array<i32>} : memref<6x16x512xf32, #tpu.memory_space<vmem>>, vector<6x16x512xf32>,
    %c0_12 = arith.constant 0 : index
    %c0_13 = arith.constant 0 : index
    %c0_14 = arith.constant 0 : index
    %12 = vector.load %arg5[%c0_12, %c0_13, %c0_14] : memref<1x128x512xbf16, #tpu.memory_space<vmem>>, vector<1x128x512xbf16>
    %13 = vector.shape_cast %12 : vector<1x128x512xbf16> to vector<128x512xbf16>
    %c0_15 = arith.constant 0 : index
    %c0_16 = arith.constant 0 : index
    %14 = vector.load %arg3[%c0_15, %c0_16] : memref<16x1xi32, #tpu.memory_space<vmem>>, vector<16x1xi32>
    %cst_17 = arith.constant 0.000000e+00 : f32
    %15 = vector.broadcast %cst_17 : f32 to vector<16x128xf32>
    %cst_18 = arith.constant 0.000000e+00 : f32
    %16 = vector.broadcast %cst_18 : f32 to vector<16x128xf32>
    %c0_i32 = arith.constant 0 : i32
    %17 = arith.index_cast %c0_i32 : i32 to index
    %c0_19 = arith.constant 0 : index
    %c0_20 = arith.constant 0 : index
    %18 = vector.load %arg8[%17, %c0_19, %c0_20] : memref<6x16x512xf32, #tpu.memory_space<vmem>>, vector<1x16x512xf32>
    %19 = vector.shape_cast %18 : vector<1x16x512xf32> to vector<16x512xf32>
    %20 = arith.truncf %15 : vector<16x128xf32> to vector<16x128xbf16>
    %cst_21 = arith.constant dense<0.000000e+00> : vector<16x512xf32>
    %21 = tpu.matmul %20, %13, %cst_21 {dimension_numbers = #tpu.dot_dimension_numbers<[1], [0], [0], [1], [0, 0, 1, 1], [], []>} : vector<16x128xbf16>, vector<128x512xbf16>, vector<16x512xf32> -> vector<16x512xf32>
    %22 = arith.addf %19, %21 : vector<16x512xf32>
    %23 = vector.extract_strided_slice %22 {offsets = [0, 0], sizes = [16, 128], strides = [1, 1]} : vector<16x512xf32> to vector<16x128xf32>
    %24 = arith.negf %23 : vector<16x128xf32>
    %25 = math.exp %24 : vector<16x128xf32>
    %cst_22 = arith.constant 1.000000e+00 : f32
    %26 = vector.broadcast %cst_22 : f32 to vector<16x128xf32>
    %27 = arith.addf %26, %25 : vector<16x128xf32>
    %28 = arith.divf %26, %27 : vector<16x128xf32>
    %29 = vector.extract_strided_slice %22 {offsets = [0, 128], sizes = [16, 128], strides = [1, 1]} : vector<16x512xf32> to vector<16x128xf32>
    %30 = arith.negf %29 : vector<16x128xf32>
    %31 = math.exp %30 : vector<16x128xf32>
    %cst_23 = arith.constant 1.000000e+00 : f32
    %32 = vector.broadcast %cst_23 : f32 to vector<16x128xf32>
    %33 = arith.addf %32, %31 : vector<16x128xf32>
    %34 = arith.divf %32, %33 : vector<16x128xf32>
    %35 = vector.extract_strided_slice %22 {offsets = [0, 256], sizes = [16, 128], strides = [1, 1]} : vector<16x512xf32> to vector<16x128xf32>
    %36 = math.tanh %35 : vector<16x128xf32>
    %37 = vector.extract_strided_slice %22 {offsets = [0, 384], sizes = [16, 128], strides = [1, 1]} : vector<16x512xf32> to vector<16x128xf32>
    %38 = arith.negf %37 : vector<16x128xf32>
    %39 = math.exp %38 : vector<16x128xf32>
    %cst_24 = arith.constant 1.000000e+00 : f32
    %40 = vector.broadcast %cst_24 : f32 to vector<16x128xf32>
    %41 = arith.addf %40, %39 : vector<16x128xf32>
    %42 = arith.divf %40, %41 : vector<16x128xf32>
    %43 = arith.mulf %34, %16 : vector<16x128xf32>
    %44 = arith.mulf %28, %36 : vector<16x128xf32>
    %45 = arith.addf %43, %44 : vector<16x128xf32>
    %46 = math.tanh %45 : vector<16x128xf32>
    %47 = arith.mulf %42, %46 : vector<16x128xf32>
    %48 = vector.broadcast %c0_i32 : i32 to vector<16x1xi32>
    %49 = arith.cmpi sgt, %14, %48 : vector<16x1xi32>
    %50 = vector.shape_cast %49 : vector<16x1xi1> to vector<16x1xi1>
    %51 = vector.broadcast %50 : vector<16x1xi1> to vector<16x128xi1>
    %52 = arith.select %51, %47, %15 : vector<16x128xi1>, vector<16x128xf32>
    %53 = vector.shape_cast %49 : vector<16x1xi1> to vector<16x1xi1>
    %54 = vector.broadcast %53 : vector<16x1xi1> to vector<16x128xi1>
    %55 = arith.select %54, %45, %16 : vector<16x128xi1>, vector<16x128xf32>
    %c1_i32 = arith.constant 1 : i32
    %56 = arith.index_cast %c1_i32 : i32 to index
    %c0_25 = arith.constant 0 : index
    %c0_26 = arith.constant 0 : index
    %57 = vector.load %arg8[%56, %c0_25, %c0_26] : memref<6x16x512xf32, #tpu.memory_space<vmem>>, vector<1x16x512xf32>
    %58 = vector.shape_cast %57 : vector<1x16x512xf32> to vector<16x512xf32>
    %59 = arith.truncf %52 : vector<16x128xf32> to vector<16x128xbf16>
    %cst_27 = arith.constant dense<0.000000e+00> : vector<16x512xf32>
    %60 = tpu.matmul %59, %13, %cst_27 {dimension_numbers = #tpu.dot_dimension_numbers<[1], [0], [0], [1], [0, 0, 1, 1], [], []>} : vector<16x128xbf16>, vector<128x512xbf16>, vector<16x512xf32> -> vector<16x512xf32>
    %61 = arith.addf %58, %60 : vector<16x512xf32>
    %62 = vector.extract_strided_slice %61 {offsets = [0, 0], sizes = [16, 128], strides = [1, 1]} : vector<16x512xf32> to vector<16x128xf32>
    %63 = arith.negf %62 : vector<16x128xf32>
    %64 = math.exp %63 : vector<16x128xf32>
    %cst_28 = arith.constant 1.000000e+00 : f32
    %65 = vector.broadcast %cst_28 : f32 to vector<16x128xf32>
    %66 = arith.addf %65, %64 : vector<16x128xf32>
    %67 = arith.divf %65, %66 : vector<16x128xf32>
    %68 = vector.extract_strided_slice %61 {offsets = [0, 128], sizes = [16, 128], strides = [1, 1]} : vector<16x512xf32> to vector<16x128xf32>
    %69 = arith.negf %68 : vector<16x128xf32>
    %70 = math.exp %69 : vector<16x128xf32>
    %cst_29 = arith.constant 1.000000e+00 : f32
    %71 = vector.broadcast %cst_29 : f32 to vector<16x128xf32>
    %72 = arith.addf %71, %70 : vector<16x128xf32>
    %73 = arith.divf %71, %72 : vector<16x128xf32>
    %74 = vector.extract_strided_slice %61 {offsets = [0, 256], sizes = [16, 128], strides = [1, 1]} : vector<16x512xf32> to vector<16x128xf32>
    %75 = math.tanh %74 : vector<16x128xf32>
    %76 = vector.extract_strided_slice %61 {offsets = [0, 384], sizes = [16, 128], strides = [1, 1]} : vector<16x512xf32> to vector<16x128xf32>
    %77 = arith.negf %76 : vector<16x128xf32>
    %78 = math.exp %77 : vector<16x128xf32>
    %cst_30 = arith.constant 1.000000e+00 : f32
    %79 = vector.broadcast %cst_30 : f32 to vector<16x128xf32>
    %80 = arith.addf %79, %78 : vector<16x128xf32>
    %81 = arith.divf %79, %80 : vector<16x128xf32>
    %82 = arith.mulf %73, %55 : vector<16x128xf32>
    %83 = arith.mulf %67, %75 : vector<16x128xf32>
    %84 = arith.addf %82, %83 : vector<16x128xf32>
    %85 = math.tanh %84 : vector<16x128xf32>
    %86 = arith.mulf %81, %85 : vector<16x128xf32>
    %87 = vector.broadcast %c1_i32 : i32 to vector<16x1xi32>
    %88 = arith.cmpi sgt, %14, %87 : vector<16x1xi32>
    %89 = vector.shape_cast %88 : vector<16x1xi1> to vector<16x1xi1>
    %90 = vector.broadcast %89 : vector<16x1xi1> to vector<16x128xi1>
    %91 = arith.select %90, %86, %52 : vector<16x128xi1>, vector<16x128xf32>
    %92 = vector.shape_cast %88 : vector<16x1xi1> to vector<16x1xi1>
    %93 = vector.broadcast %92 : vector<16x1xi1> to vector<16x128xi1>
    %94 = arith.select %93, %84, %55 : vector<16x128xi1>, vector<16x128xf32>
    %c2_i32 = arith.constant 2 : i32
    %95 = arith.index_cast %c2_i32 : i32 to index
    %c0_31 = arith.constant 0 : index
    %c0_32 = arith.constant 0 : index
    %96 = vector.load %arg8[%95, %c0_31, %c0_32] : memref<6x16x512xf32, #tpu.memory_space<vmem>>, vector<1x16x512xf32>
    %97 = vector.shape_cast %96 : vector<1x16x512xf32> to vector<16x512xf32>
    %98 = arith.truncf %91 : vector<16x128xf32> to vector<16x128xbf16>
    %cst_33 = arith.constant dense<0.000000e+00> : vector<16x512xf32>
    %99 = tpu.matmul %98, %13, %cst_33 {dimension_numbers = #tpu.dot_dimension_numbers<[1], [0], [0], [1], [0, 0, 1, 1], [], []>} : vector<16x128xbf16>, vector<128x512xbf16>, vector<16x512xf32> -> vector<16x512xf32>
    %100 = arith.addf %97, %99 : vector<16x512xf32>
    %101 = vector.extract_strided_slice %100 {offsets = [0, 0], sizes = [16, 128], strides = [1, 1]} : vector<16x512xf32> to vector<16x128xf32>
    %102 = arith.negf %101 : vector<16x128xf32>
    %103 = math.exp %102 : vector<16x128xf32>
    %cst_34 = arith.constant 1.000000e+00 : f32
    %104 = vector.broadcast %cst_34 : f32 to vector<16x128xf32>
    %105 = arith.addf %104, %103 : vector<16x128xf32>
    %106 = arith.divf %104, %105 : vector<16x128xf32>
    %107 = vector.extract_strided_slice %100 {offsets = [0, 128], sizes = [16, 128], strides = [1, 1]} : vector<16x512xf32> to vector<16x128xf32>
    %108 = arith.negf %107 : vector<16x128xf32>
    %109 = math.exp %108 : vector<16x128xf32>
    %cst_35 = arith.constant 1.000000e+00 : f32
    %110 = vector.broadcast %cst_35 : f32 to vector<16x128xf32>
    %111 = arith.addf %110, %109 : vector<16x128xf32>
    %112 = arith.divf %110, %111 : vector<16x128xf32>
    %113 = vector.extract_strided_slice %100 {offsets = [0, 256], sizes = [16, 128], strides = [1, 1]} : vector<16x512xf32> to vector<16x128xf32>
    %114 = math.tanh %113 : vector<16x128xf32>
    %115 = vector.extract_strided_slice %100 {offsets = [0, 384], sizes = [16, 128], strides = [1, 1]} : vector<16x512xf32> to vector<16x128xf32>
    %116 = arith.negf %115 : vector<16x128xf32>
    %117 = math.exp %116 : vector<16x128xf32>
    %cst_36 = arith.constant 1.000000e+00 : f32
    %118 = vector.broadcast %cst_36 : f32 to vector<16x128xf32>
    %119 = arith.addf %118, %117 : vector<16x128xf32>
    %120 = arith.divf %118, %119 : vector<16x128xf32>
    %121 = arith.mulf %112, %94 : vector<16x128xf32>
    %122 = arith.mulf %106, %114 : vector<16x128xf32>
    %123 = arith.addf %121, %122 : vector<16x128xf32>
    %124 = math.tanh %123 : vector<16x128xf32>
    %125 = arith.mulf %120, %124 : vector<16x128xf32>
    %126 = vector.broadcast %c2_i32 : i32 to vector<16x1xi32>
    %127 = arith.cmpi sgt, %14, %126 : vector<16x1xi32>
    %128 = vector.shape_cast %127 : vector<16x1xi1> to vector<16x1xi1>
    %129 = vector.broadcast %128 : vector<16x1xi1> to vector<16x128xi1>
    %130 = arith.select %129, %125, %91 : vector<16x128xi1>, vector<16x128xf32>
    %131 = vector.shape_cast %127 : vector<16x1xi1> to vector<16x1xi1>
    %132 = vector.broadcast %131 : vector<16x1xi1> to vector<16x128xi1>
    %133 = arith.select %132, %123, %94 : vector<16x128xi1>, vector<16x128xf32>
    %c3_i32 = arith.constant 3 : i32
    %134 = arith.index_cast %c3_i32 : i32 to index
    %c0_37 = arith.constant 0 : index
    %c0_38 = arith.constant 0 : index
    %135 = vector.load %arg8[%134, %c0_37, %c0_38] : memref<6x16x512xf32, #tpu.memory_space<vmem>>, vector<1x16x512xf32>
    %136 = vector.shape_cast %135 : vector<1x16x512xf32> to vector<16x512xf32>
    %137 = arith.truncf %130 : vector<16x128xf32> to vector<16x128xbf16>
    %cst_39 = arith.constant dense<0.000000e+00> : vector<16x512xf32>
    %138 = tpu.matmul %137, %13, %cst_39 {dimension_numbers = #tpu.dot_dimension_numbers<[1], [0], [0], [1], [0, 0, 1, 1], [], []>} : vector<16x128xbf16>, vector<128x512xbf16>, vector<16x512xf32> -> vector<16x512xf32>
    %139 = arith.addf %136, %138 : vector<16x512xf32>
    %140 = vector.extract_strided_slice %139 {offsets = [0, 0], sizes = [16, 128], strides = [1, 1]} : vector<16x512xf32> to vector<16x128xf32>
    %141 = arith.negf %140 : vector<16x128xf32>
    %142 = math.exp %141 : vector<16x128xf32>
    %cst_40 = arith.constant 1.000000e+00 : f32
    %143 = vector.broadcast %cst_40 : f32 to vector<16x128xf32>
    %144 = arith.addf %143, %142 : vector<16x128xf32>
    %145 = arith.divf %143, %144 : vector<16x128xf32>
    %146 = vector.extract_strided_slice %139 {offsets = [0, 128], sizes = [16, 128], strides = [1, 1]} : vector<16x512xf32> to vector<16x128xf32>
    %147 = arith.negf %146 : vector<16x128xf32>
    %148 = math.exp %147 : vector<16x128xf32>
    %cst_41 = arith.constant 1.000000e+00 : f32
    %149 = vector.broadcast %cst_41 : f32 to vector<16x128xf32>
    %150 = arith.addf %149, %148 : vector<16x128xf32>
    %151 = arith.divf %149, %150 : vector<16x128xf32>
    %152 = vector.extract_strided_slice %139 {offsets = [0, 256], sizes = [16, 128], strides = [1, 1]} : vector<16x512xf32> to vector<16x128xf32>
    %153 = math.tanh %152 : vector<16x128xf32>
    %154 = vector.extract_strided_slice %139 {offsets = [0, 384], sizes = [16, 128], strides = [1, 1]} : vector<16x512xf32> to vector<16x128xf32>
    %155 = arith.negf %154 : vector<16x128xf32>
    %156 = math.exp %155 : vector<16x128xf32>
    %cst_42 = arith.constant 1.000000e+00 : f32
    %157 = vector.broadcast %cst_42 : f32 to vector<16x128xf32>
    %158 = arith.addf %157, %156 : vector<16x128xf32>
    %159 = arith.divf %157, %158 : vector<16x128xf32>
    %160 = arith.mulf %151, %133 : vector<16x128xf32>
    %161 = arith.mulf %145, %153 : vector<16x128xf32>
    %162 = arith.addf %160, %161 : vector<16x128xf32>
    %163 = math.tanh %162 : vector<16x128xf32>
    %164 = arith.mulf %159, %163 : vector<16x128xf32>
    %165 = vector.broadcast %c3_i32 : i32 to vector<16x1xi32>
    %166 = arith.cmpi sgt, %14, %165 : vector<16x1xi32>
    %167 = vector.shape_cast %166 : vector<16x1xi1> to vector<16x1xi1>
    %168 = vector.broadcast %167 : vector<16x1xi1> to vector<16x128xi1>
    %169 = arith.select %168, %164, %130 : vector<16x128xi1>, vector<16x128xf32>
    %170 = vector.shape_cast %166 : vector<16x1xi1> to vector<16x1xi1>
    %171 = vector.broadcast %170 : vector<16x1xi1> to vector<16x128xi1>
    %172 = arith.select %171, %162, %133 : vector<16x128xi1>, vector<16x128xf32>
    %c4_i32 = arith.constant 4 : i32
    %173 = arith.index_cast %c4_i32 : i32 to index
    %c0_43 = arith.constant 0 : index
    %c0_44 = arith.constant 0 : index
    %174 = vector.load %arg8[%173, %c0_43, %c0_44] : memref<6x16x512xf32, #tpu.memory_space<vmem>>, vector<1x16x512xf32>
    %175 = vector.shape_cast %174 : vector<1x16x512xf32> to vector<16x512xf32>
    %176 = arith.truncf %169 : vector<16x128xf32> to vector<16x128xbf16>
    %cst_45 = arith.constant dense<0.000000e+00> : vector<16x512xf32>
    %177 = tpu.matmul %176, %13, %cst_45 {dimension_numbers = #tpu.dot_dimension_numbers<[1], [0], [0], [1], [0, 0, 1, 1], [], []>} : vector<16x128xbf16>, vector<128x512xbf16>, vector<16x512xf32> -> vector<16x512xf32>
    %178 = arith.addf %175, %177 : vector<16x512xf32>
    %179 = vector.extract_strided_slice %178 {offsets = [0, 0], sizes = [16, 128], strides = [1, 1]} : vector<16x512xf32> to vector<16x128xf32>
    %180 = arith.negf %179 : vector<16x128xf32>
    %181 = math.exp %180 : vector<16x128xf32>
    %cst_46 = arith.constant 1.000000e+00 : f32
    %182 = vector.broadcast %cst_46 : f32 to vector<16x128xf32>
    %183 = arith.addf %182, %181 : vector<16x128xf32>
    %184 = arith.divf %182, %183 : vector<16x128xf32>
    %185 = vector.extract_strided_slice %178 {offsets = [0, 128], sizes = [16, 128], strides = [1, 1]} : vector<16x512xf32> to vector<16x128xf32>
    %186 = arith.negf %185 : vector<16x128xf32>
    %187 = math.exp %186 : vector<16x128xf32>
    %cst_47 = arith.constant 1.000000e+00 : f32
    %188 = vector.broadcast %cst_47 : f32 to vector<16x128xf32>
    %189 = arith.addf %188, %187 : vector<16x128xf32>
    %190 = arith.divf %188, %189 : vector<16x128xf32>
    %191 = vector.extract_strided_slice %178 {offsets = [0, 256], sizes = [16, 128], strides = [1, 1]} : vector<16x512xf32> to vector<16x128xf32>
    %192 = math.tanh %191 : vector<16x128xf32>
    %193 = vector.extract_strided_slice %178 {offsets = [0, 384], sizes = [16, 128], strides = [1, 1]} : vector<16x512xf32> to vector<16x128xf32>
    %194 = arith.negf %193 : vector<16x128xf32>
    %195 = math.exp %194 : vector<16x128xf32>
    %cst_48 = arith.constant 1.000000e+00 : f32
    %196 = vector.broadcast %cst_48 : f32 to vector<16x128xf32>
    %197 = arith.addf %196, %195 : vector<16x128xf32>
    %198 = arith.divf %196, %197 : vector<16x128xf32>
    %199 = arith.mulf %190, %172 : vector<16x128xf32>
    %200 = arith.mulf %184, %192 : vector<16x128xf32>
    %201 = arith.addf %199, %200 : vector<16x128xf32>
    %202 = math.tanh %201 : vector<16x128xf32>
    %203 = arith.mulf %198, %202 : vector<16x128xf32>
    %204 = vector.broadcast %c4_i32 : i32 to vector<16x1xi32>
    %205 = arith.cmpi sgt, %14, %204 : vector<16x1xi32>
    %206 = vector.shape_cast %205 : vector<16x1xi1> to vector<16x1xi1>
    %207 = vector.broadcast %206 : vector<16x1xi1> to vector<16x128xi1>
    %208 = arith.select %207, %203, %169 : vector<16x128xi1>, vector<16x128xf32>
    %209 = vector.shape_cast %205 : vector<16x1xi1> to vector<16x1xi1>
    %210 = vector.broadcast %209 : vector<16x1xi1> to vector<16x128xi1>
    %211 = arith.select %210, %201, %172 : vector<16x128xi1>, vector<16x128xf32>
    %c5_i32 = arith.constant 5 : i32
    %212 = arith.index_cast %c5_i32 : i32 to index
    %c0_49 = arith.constant 0 : index
    %c0_50 = arith.constant 0 : index
    %213 = vector.load %arg8[%212, %c0_49, %c0_50] : memref<6x16x512xf32, #tpu.memory_space<vmem>>, vector<1x16x512xf32>
    %214 = vector.shape_cast %213 : vector<1x16x512xf32> to vector<16x512xf32>
    %215 = arith.truncf %208 : vector<16x128xf32> to vector<16x128xbf16>
    %cst_51 = arith.constant dense<0.000000e+00> : vector<16x512xf32>
    %216 = tpu.matmul %215, %13, %cst_51 {dimension_numbers = #tpu.dot_dimension_numbers<[1], [0], [0], [1], [0, 0, 1, 1], [], []>} : vector<16x128xbf16>, vector<128x512xbf16>, vector<16x512xf32> -> vector<16x512xf32>
    %217 = arith.addf %214, %216 : vector<16x512xf32>
    %218 = vector.extract_strided_slice %217 {offsets = [0, 0], sizes = [16, 128], strides = [1, 1]} : vector<16x512xf32> to vector<16x128xf32>
    %219 = arith.negf %218 : vector<16x128xf32>
    %220 = math.exp %219 : vector<16x128xf32>
    %cst_52 = arith.constant 1.000000e+00 : f32
    %221 = vector.broadcast %cst_52 : f32 to vector<16x128xf32>
    %222 = arith.addf %221, %220 : vector<16x128xf32>
    %223 = arith.divf %221, %222 : vector<16x128xf32>
    %224 = vector.extract_strided_slice %217 {offsets = [0, 128], sizes = [16, 128], strides = [1, 1]} : vector<16x512xf32> to vector<16x128xf32>
    %225 = arith.negf %224 : vector<16x128xf32>
    %226 = math.exp %225 : vector<16x128xf32>
    %cst_53 = arith.constant 1.000000e+00 : f32
    %227 = vector.broadcast %cst_53 : f32 to vector<16x128xf32>
    %228 = arith.addf %227, %226 : vector<16x128xf32>
    %229 = arith.divf %227, %228 : vector<16x128xf32>
    %230 = vector.extract_strided_slice %217 {offsets = [0, 256], sizes = [16, 128], strides = [1, 1]} : vector<16x512xf32> to vector<16x128xf32>
    %231 = math.tanh %230 : vector<16x128xf32>
    %232 = vector.extract_strided_slice %217 {offsets = [0, 384], sizes = [16, 128], strides = [1, 1]} : vector<16x512xf32> to vector<16x128xf32>
    %233 = arith.negf %232 : vector<16x128xf32>
    %234 = math.exp %233 : vector<16x128xf32>
    %cst_54 = arith.constant 1.000000e+00 : f32
    %235 = vector.broadcast %cst_54 : f32 to vector<16x128xf32>
    %236 = arith.addf %235, %234 : vector<16x128xf32>
    %237 = arith.divf %235, %236 : vector<16x128xf32>
    %238 = arith.mulf %229, %211 : vector<16x128xf32>
    %239 = arith.mulf %223, %231 : vector<16x128xf32>
    %240 = arith.addf %238, %239 : vector<16x128xf32>
    %241 = math.tanh %240 : vector<16x128xf32>
    %242 = arith.mulf %237, %241 : vector<16x128xf32>
    %243 = vector.broadcast %c5_i32 : i32 to vector<16x1xi32>
    %244 = arith.cmpi sgt, %14, %243 : vector<16x1xi32>
    %245 = vector.shape_cast %244 : vector<16x1xi1> to vector<16x1xi1>
    %246 = vector.broadcast %245 : vector<16x1xi1> to vector<16x128xi1>
    %247 = arith.select %246, %242, %208 : vector<16x128xi1>, vector<16x128xf32>
    %248 = vector.shape_cast %244 : vector<16x1xi1> to vector<16x1xi1>
    %249 = vector.broadcast %248 : vector<16x1xi1> to vector<16x128xi1>
    %250 = arith.select %249, %240, %211 : vector<16x128xi1>, vector<16x128xf32>
    %c6_i32 = arith.constant 6 : i32
    %251 = arith.truncf %247 : vector<16x128xf32> to vector<16x128xbf16>
    %c0_55 = arith.constant 0 : index
    %c0_56 = arith.constant 0 : index
    %c0_57 = arith.constant 0 : index
    %252 = vector.load %arg7[%c0_55, %c0_56, %c0_57] : memref<1x16x128xbf16, #tpu.memory_space<vmem>>, vector<1x16x128xbf16>
    %253 = vector.shape_cast %252 : vector<1x16x128xbf16> to vector<16x128xbf16>
    %254 = vector.shape_cast %251 : vector<16x128xbf16> to vector<1x16x128xbf16>
    tpu.vector_store %arg7[%c0_55, %c0_56, %c0_57], %254 {strides = array<i32>} : memref<1x16x128xbf16, #tpu.memory_space<vmem>>, vector<1x16x128xbf16>,
    return
  }
  func.func @transform_0(%arg0: i32, %arg1: i32) -> (i32, i32, i32, i32) {
    %c0_i32 = arith.constant 0 : i32
    %c0_i32_0 = arith.constant 0 : i32
    %c0_i32_1 = arith.constant 0 : i32
    return %arg0, %c0_i32, %arg1, %c0_i32_0 : i32, i32, i32, i32
  }
  func.func @transform_1(%arg0: i32, %arg1: i32) -> (i32, i32) {
    %c0_i32 = arith.constant 0 : i32
    %c0_i32_0 = arith.constant 0 : i32
    return %arg1, %c0_i32 : i32, i32
  }
  func.func @transform_2(%arg0: i32, %arg1: i32) -> (i32, i32, i32) {
    %c0_i32 = arith.constant 0 : i32
    %c0_i32_0 = arith.constant 0 : i32
    %c0_i32_1 = arith.constant 0 : i32
    return %arg0, %c0_i32, %c0_i32_0 : i32, i32, i32
  }
  func.func @transform_3(%arg0: i32, %arg1: i32) -> (i32, i32, i32) {
    %c0_i32 = arith.constant 0 : i32
    %c0_i32_0 = arith.constant 0 : i32
    %c0_i32_1 = arith.constant 0 : i32
    return %arg0, %c0_i32, %c0_i32_0 : i32, i32, i32
  }
  func.func @transform_4(%arg0: i32, %arg1: i32) -> (i32, i32, i32) {
    %c0_i32 = arith.constant 0 : i32
    %c0_i32_0 = arith.constant 0 : i32
    %c0_i32_1 = arith.constant 0 : i32
    return %arg0, %c0_i32, %c0_i32_0 : i32, i32, i32
  }
  func.func @transform_5(%arg0: i32, %arg1: i32) -> (i32, i32, i32) {
    %c0_i32 = arith.constant 0 : i32
    %c0_i32_0 = arith.constant 0 : i32
    return %arg0, %arg1, %c0_i32 : i32, i32, i32
  }
}

module attributes {stable_mosaic.version = 11 : i64} {
  func.func @_lstm_seq_kernel(%arg0: i32, %arg1: i32, %arg2: memref<1x8x16x48xbf16, #tpu.memory_space<vmem>>, %arg3: memref<16x1xi32, #tpu.memory_space<vmem>>, %arg4: memref<1x48x512xbf16, #tpu.memory_space<vmem>>, %arg5: memref<1x128x512xbf16, #tpu.memory_space<vmem>>, %arg6: memref<1x1x512xf32, #tpu.memory_space<vmem>>, %arg7: memref<1x8x16x128xbf16, #tpu.memory_space<vmem>>, %arg8: memref<8x16x512xf32, #tpu.memory_space<vmem>>) attributes {dimension_semantics = [#tpu.dimension_semantics<parallel>, #tpu.dimension_semantics<parallel>], iteration_bounds = array<i64: 2, 1>, scalar_prefetch = 0 : i64, scratch_operands = 1 : i64, tpu.core_type = #tpu.core_type<tc>, window_params = [{transform_indices = @transform_0, window_bounds = array<i64: 1, 8, 16, 48>}, {transform_indices = @transform_1, window_bounds = array<i64: 16, 1>}, {transform_indices = @transform_2, window_bounds = array<i64: 1, 48, 512>}, {transform_indices = @transform_3, window_bounds = array<i64: 1, 128, 512>}, {transform_indices = @transform_4, window_bounds = array<i64: 1, 1, 512>}, {transform_indices = @transform_5, window_bounds = array<i64: 1, 8, 16, 128>}]} {
    %c0 = arith.constant 0 : index
    %c0_0 = arith.constant 0 : index
    %c0_1 = arith.constant 0 : index
    %c0_2 = arith.constant 0 : index
    %0 = vector.load %arg2[%c0, %c0_0, %c0_1, %c0_2] : memref<1x8x16x48xbf16, #tpu.memory_space<vmem>>, vector<1x8x16x48xbf16>
    %1 = vector.shape_cast %0 : vector<1x8x16x48xbf16> to vector<8x16x48xbf16>
    %2 = vector.shape_cast %1 : vector<8x16x48xbf16> to vector<128x48xbf16>
    %c0_3 = arith.constant 0 : index
    %c0_4 = arith.constant 0 : index
    %c0_5 = arith.constant 0 : index
    %3 = vector.load %arg4[%c0_3, %c0_4, %c0_5] : memref<1x48x512xbf16, #tpu.memory_space<vmem>>, vector<1x48x512xbf16>
    %4 = vector.shape_cast %3 : vector<1x48x512xbf16> to vector<48x512xbf16>
    %cst = arith.constant dense<0.000000e+00> : vector<128x512xf32>
    %5 = tpu.matmul %2, %4, %cst {dimension_numbers = #tpu.dot_dimension_numbers<[1], [0], [0], [1], [0, 0, 1, 1], [], []>} : vector<128x48xbf16>, vector<48x512xbf16>, vector<128x512xf32> -> vector<128x512xf32>
    %c0_6 = arith.constant 0 : index
    %c0_7 = arith.constant 0 : index
    %c0_8 = arith.constant 0 : index
    %6 = vector.load %arg6[%c0_6, %c0_7, %c0_8] : memref<1x1x512xf32, #tpu.memory_space<vmem>>, vector<1x1x512xf32>
    %7 = vector.shape_cast %6 : vector<1x1x512xf32> to vector<1x512xf32>
    %8 = vector.broadcast %7 : vector<1x512xf32> to vector<128x512xf32>
    %9 = arith.addf %5, %8 : vector<128x512xf32>
    %10 = vector.shape_cast %9 : vector<128x512xf32> to vector<8x16x512xf32>
    %c0_9 = arith.constant 0 : index
    %c0_10 = arith.constant 0 : index
    %c0_11 = arith.constant 0 : index
    %11 = vector.load %arg8[%c0_9, %c0_10, %c0_11] : memref<8x16x512xf32, #tpu.memory_space<vmem>>, vector<8x16x512xf32>
    tpu.vector_store %arg8[%c0_9, %c0_10, %c0_11], %10 {strides = array<i32>} : memref<8x16x512xf32, #tpu.memory_space<vmem>>, vector<8x16x512xf32>,
    %c0_12 = arith.constant 0 : index
    %c0_13 = arith.constant 0 : index
    %c0_14 = arith.constant 0 : index
    %12 = vector.load %arg5[%c0_12, %c0_13, %c0_14] : memref<1x128x512xbf16, #tpu.memory_space<vmem>>, vector<1x128x512xbf16>
    %13 = vector.shape_cast %12 : vector<1x128x512xbf16> to vector<128x512xbf16>
    %c0_15 = arith.constant 0 : index
    %c0_16 = arith.constant 0 : index
    %14 = vector.load %arg3[%c0_15, %c0_16] : memref<16x1xi32, #tpu.memory_space<vmem>>, vector<16x1xi32>
    %cst_17 = arith.constant 0.000000e+00 : f32
    %15 = vector.broadcast %cst_17 : f32 to vector<16x128xf32>
    %cst_18 = arith.constant 0.000000e+00 : f32
    %16 = vector.broadcast %cst_18 : f32 to vector<16x128xf32>
    %c0_i32 = arith.constant 0 : i32
    %17 = arith.index_cast %c0_i32 : i32 to index
    %c0_19 = arith.constant 0 : index
    %c0_20 = arith.constant 0 : index
    %18 = vector.load %arg8[%17, %c0_19, %c0_20] : memref<8x16x512xf32, #tpu.memory_space<vmem>>, vector<1x16x512xf32>
    %19 = vector.shape_cast %18 : vector<1x16x512xf32> to vector<16x512xf32>
    %20 = arith.truncf %15 : vector<16x128xf32> to vector<16x128xbf16>
    %cst_21 = arith.constant dense<0.000000e+00> : vector<16x512xf32>
    %21 = tpu.matmul %20, %13, %cst_21 {dimension_numbers = #tpu.dot_dimension_numbers<[1], [0], [0], [1], [0, 0, 1, 1], [], []>} : vector<16x128xbf16>, vector<128x512xbf16>, vector<16x512xf32> -> vector<16x512xf32>
    %22 = arith.addf %19, %21 : vector<16x512xf32>
    %23 = vector.extract_strided_slice %22 {offsets = [0, 0], sizes = [16, 128], strides = [1, 1]} : vector<16x512xf32> to vector<16x128xf32>
    %24 = arith.negf %23 : vector<16x128xf32>
    %25 = math.exp %24 : vector<16x128xf32>
    %cst_22 = arith.constant 1.000000e+00 : f32
    %26 = vector.broadcast %cst_22 : f32 to vector<16x128xf32>
    %27 = arith.addf %26, %25 : vector<16x128xf32>
    %28 = arith.divf %26, %27 : vector<16x128xf32>
    %29 = vector.extract_strided_slice %22 {offsets = [0, 128], sizes = [16, 128], strides = [1, 1]} : vector<16x512xf32> to vector<16x128xf32>
    %30 = arith.negf %29 : vector<16x128xf32>
    %31 = math.exp %30 : vector<16x128xf32>
    %cst_23 = arith.constant 1.000000e+00 : f32
    %32 = vector.broadcast %cst_23 : f32 to vector<16x128xf32>
    %33 = arith.addf %32, %31 : vector<16x128xf32>
    %34 = arith.divf %32, %33 : vector<16x128xf32>
    %35 = vector.extract_strided_slice %22 {offsets = [0, 256], sizes = [16, 128], strides = [1, 1]} : vector<16x512xf32> to vector<16x128xf32>
    %36 = math.tanh %35 : vector<16x128xf32>
    %37 = vector.extract_strided_slice %22 {offsets = [0, 384], sizes = [16, 128], strides = [1, 1]} : vector<16x512xf32> to vector<16x128xf32>
    %38 = arith.negf %37 : vector<16x128xf32>
    %39 = math.exp %38 : vector<16x128xf32>
    %cst_24 = arith.constant 1.000000e+00 : f32
    %40 = vector.broadcast %cst_24 : f32 to vector<16x128xf32>
    %41 = arith.addf %40, %39 : vector<16x128xf32>
    %42 = arith.divf %40, %41 : vector<16x128xf32>
    %43 = arith.mulf %34, %16 : vector<16x128xf32>
    %44 = arith.mulf %28, %36 : vector<16x128xf32>
    %45 = arith.addf %43, %44 : vector<16x128xf32>
    %46 = math.tanh %45 : vector<16x128xf32>
    %47 = arith.mulf %42, %46 : vector<16x128xf32>
    %48 = vector.broadcast %c0_i32 : i32 to vector<16x1xi32>
    %49 = arith.cmpi sgt, %14, %48 : vector<16x1xi32>
    %cst_25 = arith.constant 0.000000e+00 : f32
    %50 = vector.shape_cast %49 : vector<16x1xi1> to vector<16x1xi1>
    %51 = vector.broadcast %50 : vector<16x1xi1> to vector<16x128xi1>
    %52 = vector.broadcast %cst_25 : f32 to vector<16x128xf32>
    %53 = arith.select %51, %47, %52 : vector<16x128xi1>, vector<16x128xf32>
    %54 = arith.truncf %53 : vector<16x128xf32> to vector<16x128xbf16>
    %c0_26 = arith.constant 0 : index
    %55 = arith.index_cast %c0_i32 : i32 to index
    %c0_27 = arith.constant 0 : index
    %c0_28 = arith.constant 0 : index
    %56 = vector.load %arg7[%c0_26, %55, %c0_27, %c0_28] : memref<1x8x16x128xbf16, #tpu.memory_space<vmem>>, vector<1x1x16x128xbf16>
    %57 = vector.shape_cast %56 : vector<1x1x16x128xbf16> to vector<16x128xbf16>
    %58 = vector.shape_cast %54 : vector<16x128xbf16> to vector<1x1x16x128xbf16>
    tpu.vector_store %arg7[%c0_26, %55, %c0_27, %c0_28], %58 {strides = array<i32>} : memref<1x8x16x128xbf16, #tpu.memory_space<vmem>>, vector<1x1x16x128xbf16>,
    %59 = vector.shape_cast %49 : vector<16x1xi1> to vector<16x1xi1>
    %60 = vector.broadcast %59 : vector<16x1xi1> to vector<16x128xi1>
    %61 = arith.select %60, %47, %15 : vector<16x128xi1>, vector<16x128xf32>
    %62 = vector.shape_cast %49 : vector<16x1xi1> to vector<16x1xi1>
    %63 = vector.broadcast %62 : vector<16x1xi1> to vector<16x128xi1>
    %64 = arith.select %63, %45, %16 : vector<16x128xi1>, vector<16x128xf32>
    %c1_i32 = arith.constant 1 : i32
    %65 = arith.index_cast %c1_i32 : i32 to index
    %c0_29 = arith.constant 0 : index
    %c0_30 = arith.constant 0 : index
    %66 = vector.load %arg8[%65, %c0_29, %c0_30] : memref<8x16x512xf32, #tpu.memory_space<vmem>>, vector<1x16x512xf32>
    %67 = vector.shape_cast %66 : vector<1x16x512xf32> to vector<16x512xf32>
    %68 = arith.truncf %61 : vector<16x128xf32> to vector<16x128xbf16>
    %cst_31 = arith.constant dense<0.000000e+00> : vector<16x512xf32>
    %69 = tpu.matmul %68, %13, %cst_31 {dimension_numbers = #tpu.dot_dimension_numbers<[1], [0], [0], [1], [0, 0, 1, 1], [], []>} : vector<16x128xbf16>, vector<128x512xbf16>, vector<16x512xf32> -> vector<16x512xf32>
    %70 = arith.addf %67, %69 : vector<16x512xf32>
    %71 = vector.extract_strided_slice %70 {offsets = [0, 0], sizes = [16, 128], strides = [1, 1]} : vector<16x512xf32> to vector<16x128xf32>
    %72 = arith.negf %71 : vector<16x128xf32>
    %73 = math.exp %72 : vector<16x128xf32>
    %cst_32 = arith.constant 1.000000e+00 : f32
    %74 = vector.broadcast %cst_32 : f32 to vector<16x128xf32>
    %75 = arith.addf %74, %73 : vector<16x128xf32>
    %76 = arith.divf %74, %75 : vector<16x128xf32>
    %77 = vector.extract_strided_slice %70 {offsets = [0, 128], sizes = [16, 128], strides = [1, 1]} : vector<16x512xf32> to vector<16x128xf32>
    %78 = arith.negf %77 : vector<16x128xf32>
    %79 = math.exp %78 : vector<16x128xf32>
    %cst_33 = arith.constant 1.000000e+00 : f32
    %80 = vector.broadcast %cst_33 : f32 to vector<16x128xf32>
    %81 = arith.addf %80, %79 : vector<16x128xf32>
    %82 = arith.divf %80, %81 : vector<16x128xf32>
    %83 = vector.extract_strided_slice %70 {offsets = [0, 256], sizes = [16, 128], strides = [1, 1]} : vector<16x512xf32> to vector<16x128xf32>
    %84 = math.tanh %83 : vector<16x128xf32>
    %85 = vector.extract_strided_slice %70 {offsets = [0, 384], sizes = [16, 128], strides = [1, 1]} : vector<16x512xf32> to vector<16x128xf32>
    %86 = arith.negf %85 : vector<16x128xf32>
    %87 = math.exp %86 : vector<16x128xf32>
    %cst_34 = arith.constant 1.000000e+00 : f32
    %88 = vector.broadcast %cst_34 : f32 to vector<16x128xf32>
    %89 = arith.addf %88, %87 : vector<16x128xf32>
    %90 = arith.divf %88, %89 : vector<16x128xf32>
    %91 = arith.mulf %82, %64 : vector<16x128xf32>
    %92 = arith.mulf %76, %84 : vector<16x128xf32>
    %93 = arith.addf %91, %92 : vector<16x128xf32>
    %94 = math.tanh %93 : vector<16x128xf32>
    %95 = arith.mulf %90, %94 : vector<16x128xf32>
    %96 = vector.broadcast %c1_i32 : i32 to vector<16x1xi32>
    %97 = arith.cmpi sgt, %14, %96 : vector<16x1xi32>
    %cst_35 = arith.constant 0.000000e+00 : f32
    %98 = vector.shape_cast %97 : vector<16x1xi1> to vector<16x1xi1>
    %99 = vector.broadcast %98 : vector<16x1xi1> to vector<16x128xi1>
    %100 = vector.broadcast %cst_35 : f32 to vector<16x128xf32>
    %101 = arith.select %99, %95, %100 : vector<16x128xi1>, vector<16x128xf32>
    %102 = arith.truncf %101 : vector<16x128xf32> to vector<16x128xbf16>
    %c0_36 = arith.constant 0 : index
    %103 = arith.index_cast %c1_i32 : i32 to index
    %c0_37 = arith.constant 0 : index
    %c0_38 = arith.constant 0 : index
    %104 = vector.load %arg7[%c0_36, %103, %c0_37, %c0_38] : memref<1x8x16x128xbf16, #tpu.memory_space<vmem>>, vector<1x1x16x128xbf16>
    %105 = vector.shape_cast %104 : vector<1x1x16x128xbf16> to vector<16x128xbf16>
    %106 = vector.shape_cast %102 : vector<16x128xbf16> to vector<1x1x16x128xbf16>
    tpu.vector_store %arg7[%c0_36, %103, %c0_37, %c0_38], %106 {strides = array<i32>} : memref<1x8x16x128xbf16, #tpu.memory_space<vmem>>, vector<1x1x16x128xbf16>,
    %107 = vector.shape_cast %97 : vector<16x1xi1> to vector<16x1xi1>
    %108 = vector.broadcast %107 : vector<16x1xi1> to vector<16x128xi1>
    %109 = arith.select %108, %95, %61 : vector<16x128xi1>, vector<16x128xf32>
    %110 = vector.shape_cast %97 : vector<16x1xi1> to vector<16x1xi1>
    %111 = vector.broadcast %110 : vector<16x1xi1> to vector<16x128xi1>
    %112 = arith.select %111, %93, %64 : vector<16x128xi1>, vector<16x128xf32>
    %c2_i32 = arith.constant 2 : i32
    %113 = arith.index_cast %c2_i32 : i32 to index
    %c0_39 = arith.constant 0 : index
    %c0_40 = arith.constant 0 : index
    %114 = vector.load %arg8[%113, %c0_39, %c0_40] : memref<8x16x512xf32, #tpu.memory_space<vmem>>, vector<1x16x512xf32>
    %115 = vector.shape_cast %114 : vector<1x16x512xf32> to vector<16x512xf32>
    %116 = arith.truncf %109 : vector<16x128xf32> to vector<16x128xbf16>
    %cst_41 = arith.constant dense<0.000000e+00> : vector<16x512xf32>
    %117 = tpu.matmul %116, %13, %cst_41 {dimension_numbers = #tpu.dot_dimension_numbers<[1], [0], [0], [1], [0, 0, 1, 1], [], []>} : vector<16x128xbf16>, vector<128x512xbf16>, vector<16x512xf32> -> vector<16x512xf32>
    %118 = arith.addf %115, %117 : vector<16x512xf32>
    %119 = vector.extract_strided_slice %118 {offsets = [0, 0], sizes = [16, 128], strides = [1, 1]} : vector<16x512xf32> to vector<16x128xf32>
    %120 = arith.negf %119 : vector<16x128xf32>
    %121 = math.exp %120 : vector<16x128xf32>
    %cst_42 = arith.constant 1.000000e+00 : f32
    %122 = vector.broadcast %cst_42 : f32 to vector<16x128xf32>
    %123 = arith.addf %122, %121 : vector<16x128xf32>
    %124 = arith.divf %122, %123 : vector<16x128xf32>
    %125 = vector.extract_strided_slice %118 {offsets = [0, 128], sizes = [16, 128], strides = [1, 1]} : vector<16x512xf32> to vector<16x128xf32>
    %126 = arith.negf %125 : vector<16x128xf32>
    %127 = math.exp %126 : vector<16x128xf32>
    %cst_43 = arith.constant 1.000000e+00 : f32
    %128 = vector.broadcast %cst_43 : f32 to vector<16x128xf32>
    %129 = arith.addf %128, %127 : vector<16x128xf32>
    %130 = arith.divf %128, %129 : vector<16x128xf32>
    %131 = vector.extract_strided_slice %118 {offsets = [0, 256], sizes = [16, 128], strides = [1, 1]} : vector<16x512xf32> to vector<16x128xf32>
    %132 = math.tanh %131 : vector<16x128xf32>
    %133 = vector.extract_strided_slice %118 {offsets = [0, 384], sizes = [16, 128], strides = [1, 1]} : vector<16x512xf32> to vector<16x128xf32>
    %134 = arith.negf %133 : vector<16x128xf32>
    %135 = math.exp %134 : vector<16x128xf32>
    %cst_44 = arith.constant 1.000000e+00 : f32
    %136 = vector.broadcast %cst_44 : f32 to vector<16x128xf32>
    %137 = arith.addf %136, %135 : vector<16x128xf32>
    %138 = arith.divf %136, %137 : vector<16x128xf32>
    %139 = arith.mulf %130, %112 : vector<16x128xf32>
    %140 = arith.mulf %124, %132 : vector<16x128xf32>
    %141 = arith.addf %139, %140 : vector<16x128xf32>
    %142 = math.tanh %141 : vector<16x128xf32>
    %143 = arith.mulf %138, %142 : vector<16x128xf32>
    %144 = vector.broadcast %c2_i32 : i32 to vector<16x1xi32>
    %145 = arith.cmpi sgt, %14, %144 : vector<16x1xi32>
    %cst_45 = arith.constant 0.000000e+00 : f32
    %146 = vector.shape_cast %145 : vector<16x1xi1> to vector<16x1xi1>
    %147 = vector.broadcast %146 : vector<16x1xi1> to vector<16x128xi1>
    %148 = vector.broadcast %cst_45 : f32 to vector<16x128xf32>
    %149 = arith.select %147, %143, %148 : vector<16x128xi1>, vector<16x128xf32>
    %150 = arith.truncf %149 : vector<16x128xf32> to vector<16x128xbf16>
    %c0_46 = arith.constant 0 : index
    %151 = arith.index_cast %c2_i32 : i32 to index
    %c0_47 = arith.constant 0 : index
    %c0_48 = arith.constant 0 : index
    %152 = vector.load %arg7[%c0_46, %151, %c0_47, %c0_48] : memref<1x8x16x128xbf16, #tpu.memory_space<vmem>>, vector<1x1x16x128xbf16>
    %153 = vector.shape_cast %152 : vector<1x1x16x128xbf16> to vector<16x128xbf16>
    %154 = vector.shape_cast %150 : vector<16x128xbf16> to vector<1x1x16x128xbf16>
    tpu.vector_store %arg7[%c0_46, %151, %c0_47, %c0_48], %154 {strides = array<i32>} : memref<1x8x16x128xbf16, #tpu.memory_space<vmem>>, vector<1x1x16x128xbf16>,
    %155 = vector.shape_cast %145 : vector<16x1xi1> to vector<16x1xi1>
    %156 = vector.broadcast %155 : vector<16x1xi1> to vector<16x128xi1>
    %157 = arith.select %156, %143, %109 : vector<16x128xi1>, vector<16x128xf32>
    %158 = vector.shape_cast %145 : vector<16x1xi1> to vector<16x1xi1>
    %159 = vector.broadcast %158 : vector<16x1xi1> to vector<16x128xi1>
    %160 = arith.select %159, %141, %112 : vector<16x128xi1>, vector<16x128xf32>
    %c3_i32 = arith.constant 3 : i32
    %161 = arith.index_cast %c3_i32 : i32 to index
    %c0_49 = arith.constant 0 : index
    %c0_50 = arith.constant 0 : index
    %162 = vector.load %arg8[%161, %c0_49, %c0_50] : memref<8x16x512xf32, #tpu.memory_space<vmem>>, vector<1x16x512xf32>
    %163 = vector.shape_cast %162 : vector<1x16x512xf32> to vector<16x512xf32>
    %164 = arith.truncf %157 : vector<16x128xf32> to vector<16x128xbf16>
    %cst_51 = arith.constant dense<0.000000e+00> : vector<16x512xf32>
    %165 = tpu.matmul %164, %13, %cst_51 {dimension_numbers = #tpu.dot_dimension_numbers<[1], [0], [0], [1], [0, 0, 1, 1], [], []>} : vector<16x128xbf16>, vector<128x512xbf16>, vector<16x512xf32> -> vector<16x512xf32>
    %166 = arith.addf %163, %165 : vector<16x512xf32>
    %167 = vector.extract_strided_slice %166 {offsets = [0, 0], sizes = [16, 128], strides = [1, 1]} : vector<16x512xf32> to vector<16x128xf32>
    %168 = arith.negf %167 : vector<16x128xf32>
    %169 = math.exp %168 : vector<16x128xf32>
    %cst_52 = arith.constant 1.000000e+00 : f32
    %170 = vector.broadcast %cst_52 : f32 to vector<16x128xf32>
    %171 = arith.addf %170, %169 : vector<16x128xf32>
    %172 = arith.divf %170, %171 : vector<16x128xf32>
    %173 = vector.extract_strided_slice %166 {offsets = [0, 128], sizes = [16, 128], strides = [1, 1]} : vector<16x512xf32> to vector<16x128xf32>
    %174 = arith.negf %173 : vector<16x128xf32>
    %175 = math.exp %174 : vector<16x128xf32>
    %cst_53 = arith.constant 1.000000e+00 : f32
    %176 = vector.broadcast %cst_53 : f32 to vector<16x128xf32>
    %177 = arith.addf %176, %175 : vector<16x128xf32>
    %178 = arith.divf %176, %177 : vector<16x128xf32>
    %179 = vector.extract_strided_slice %166 {offsets = [0, 256], sizes = [16, 128], strides = [1, 1]} : vector<16x512xf32> to vector<16x128xf32>
    %180 = math.tanh %179 : vector<16x128xf32>
    %181 = vector.extract_strided_slice %166 {offsets = [0, 384], sizes = [16, 128], strides = [1, 1]} : vector<16x512xf32> to vector<16x128xf32>
    %182 = arith.negf %181 : vector<16x128xf32>
    %183 = math.exp %182 : vector<16x128xf32>
    %cst_54 = arith.constant 1.000000e+00 : f32
    %184 = vector.broadcast %cst_54 : f32 to vector<16x128xf32>
    %185 = arith.addf %184, %183 : vector<16x128xf32>
    %186 = arith.divf %184, %185 : vector<16x128xf32>
    %187 = arith.mulf %178, %160 : vector<16x128xf32>
    %188 = arith.mulf %172, %180 : vector<16x128xf32>
    %189 = arith.addf %187, %188 : vector<16x128xf32>
    %190 = math.tanh %189 : vector<16x128xf32>
    %191 = arith.mulf %186, %190 : vector<16x128xf32>
    %192 = vector.broadcast %c3_i32 : i32 to vector<16x1xi32>
    %193 = arith.cmpi sgt, %14, %192 : vector<16x1xi32>
    %cst_55 = arith.constant 0.000000e+00 : f32
    %194 = vector.shape_cast %193 : vector<16x1xi1> to vector<16x1xi1>
    %195 = vector.broadcast %194 : vector<16x1xi1> to vector<16x128xi1>
    %196 = vector.broadcast %cst_55 : f32 to vector<16x128xf32>
    %197 = arith.select %195, %191, %196 : vector<16x128xi1>, vector<16x128xf32>
    %198 = arith.truncf %197 : vector<16x128xf32> to vector<16x128xbf16>
    %c0_56 = arith.constant 0 : index
    %199 = arith.index_cast %c3_i32 : i32 to index
    %c0_57 = arith.constant 0 : index
    %c0_58 = arith.constant 0 : index
    %200 = vector.load %arg7[%c0_56, %199, %c0_57, %c0_58] : memref<1x8x16x128xbf16, #tpu.memory_space<vmem>>, vector<1x1x16x128xbf16>
    %201 = vector.shape_cast %200 : vector<1x1x16x128xbf16> to vector<16x128xbf16>
    %202 = vector.shape_cast %198 : vector<16x128xbf16> to vector<1x1x16x128xbf16>
    tpu.vector_store %arg7[%c0_56, %199, %c0_57, %c0_58], %202 {strides = array<i32>} : memref<1x8x16x128xbf16, #tpu.memory_space<vmem>>, vector<1x1x16x128xbf16>,
    %203 = vector.shape_cast %193 : vector<16x1xi1> to vector<16x1xi1>
    %204 = vector.broadcast %203 : vector<16x1xi1> to vector<16x128xi1>
    %205 = arith.select %204, %191, %157 : vector<16x128xi1>, vector<16x128xf32>
    %206 = vector.shape_cast %193 : vector<16x1xi1> to vector<16x1xi1>
    %207 = vector.broadcast %206 : vector<16x1xi1> to vector<16x128xi1>
    %208 = arith.select %207, %189, %160 : vector<16x128xi1>, vector<16x128xf32>
    %c4_i32 = arith.constant 4 : i32
    %209 = arith.index_cast %c4_i32 : i32 to index
    %c0_59 = arith.constant 0 : index
    %c0_60 = arith.constant 0 : index
    %210 = vector.load %arg8[%209, %c0_59, %c0_60] : memref<8x16x512xf32, #tpu.memory_space<vmem>>, vector<1x16x512xf32>
    %211 = vector.shape_cast %210 : vector<1x16x512xf32> to vector<16x512xf32>
    %212 = arith.truncf %205 : vector<16x128xf32> to vector<16x128xbf16>
    %cst_61 = arith.constant dense<0.000000e+00> : vector<16x512xf32>
    %213 = tpu.matmul %212, %13, %cst_61 {dimension_numbers = #tpu.dot_dimension_numbers<[1], [0], [0], [1], [0, 0, 1, 1], [], []>} : vector<16x128xbf16>, vector<128x512xbf16>, vector<16x512xf32> -> vector<16x512xf32>
    %214 = arith.addf %211, %213 : vector<16x512xf32>
    %215 = vector.extract_strided_slice %214 {offsets = [0, 0], sizes = [16, 128], strides = [1, 1]} : vector<16x512xf32> to vector<16x128xf32>
    %216 = arith.negf %215 : vector<16x128xf32>
    %217 = math.exp %216 : vector<16x128xf32>
    %cst_62 = arith.constant 1.000000e+00 : f32
    %218 = vector.broadcast %cst_62 : f32 to vector<16x128xf32>
    %219 = arith.addf %218, %217 : vector<16x128xf32>
    %220 = arith.divf %218, %219 : vector<16x128xf32>
    %221 = vector.extract_strided_slice %214 {offsets = [0, 128], sizes = [16, 128], strides = [1, 1]} : vector<16x512xf32> to vector<16x128xf32>
    %222 = arith.negf %221 : vector<16x128xf32>
    %223 = math.exp %222 : vector<16x128xf32>
    %cst_63 = arith.constant 1.000000e+00 : f32
    %224 = vector.broadcast %cst_63 : f32 to vector<16x128xf32>
    %225 = arith.addf %224, %223 : vector<16x128xf32>
    %226 = arith.divf %224, %225 : vector<16x128xf32>
    %227 = vector.extract_strided_slice %214 {offsets = [0, 256], sizes = [16, 128], strides = [1, 1]} : vector<16x512xf32> to vector<16x128xf32>
    %228 = math.tanh %227 : vector<16x128xf32>
    %229 = vector.extract_strided_slice %214 {offsets = [0, 384], sizes = [16, 128], strides = [1, 1]} : vector<16x512xf32> to vector<16x128xf32>
    %230 = arith.negf %229 : vector<16x128xf32>
    %231 = math.exp %230 : vector<16x128xf32>
    %cst_64 = arith.constant 1.000000e+00 : f32
    %232 = vector.broadcast %cst_64 : f32 to vector<16x128xf32>
    %233 = arith.addf %232, %231 : vector<16x128xf32>
    %234 = arith.divf %232, %233 : vector<16x128xf32>
    %235 = arith.mulf %226, %208 : vector<16x128xf32>
    %236 = arith.mulf %220, %228 : vector<16x128xf32>
    %237 = arith.addf %235, %236 : vector<16x128xf32>
    %238 = math.tanh %237 : vector<16x128xf32>
    %239 = arith.mulf %234, %238 : vector<16x128xf32>
    %240 = vector.broadcast %c4_i32 : i32 to vector<16x1xi32>
    %241 = arith.cmpi sgt, %14, %240 : vector<16x1xi32>
    %cst_65 = arith.constant 0.000000e+00 : f32
    %242 = vector.shape_cast %241 : vector<16x1xi1> to vector<16x1xi1>
    %243 = vector.broadcast %242 : vector<16x1xi1> to vector<16x128xi1>
    %244 = vector.broadcast %cst_65 : f32 to vector<16x128xf32>
    %245 = arith.select %243, %239, %244 : vector<16x128xi1>, vector<16x128xf32>
    %246 = arith.truncf %245 : vector<16x128xf32> to vector<16x128xbf16>
    %c0_66 = arith.constant 0 : index
    %247 = arith.index_cast %c4_i32 : i32 to index
    %c0_67 = arith.constant 0 : index
    %c0_68 = arith.constant 0 : index
    %248 = vector.load %arg7[%c0_66, %247, %c0_67, %c0_68] : memref<1x8x16x128xbf16, #tpu.memory_space<vmem>>, vector<1x1x16x128xbf16>
    %249 = vector.shape_cast %248 : vector<1x1x16x128xbf16> to vector<16x128xbf16>
    %250 = vector.shape_cast %246 : vector<16x128xbf16> to vector<1x1x16x128xbf16>
    tpu.vector_store %arg7[%c0_66, %247, %c0_67, %c0_68], %250 {strides = array<i32>} : memref<1x8x16x128xbf16, #tpu.memory_space<vmem>>, vector<1x1x16x128xbf16>,
    %251 = vector.shape_cast %241 : vector<16x1xi1> to vector<16x1xi1>
    %252 = vector.broadcast %251 : vector<16x1xi1> to vector<16x128xi1>
    %253 = arith.select %252, %239, %205 : vector<16x128xi1>, vector<16x128xf32>
    %254 = vector.shape_cast %241 : vector<16x1xi1> to vector<16x1xi1>
    %255 = vector.broadcast %254 : vector<16x1xi1> to vector<16x128xi1>
    %256 = arith.select %255, %237, %208 : vector<16x128xi1>, vector<16x128xf32>
    %c5_i32 = arith.constant 5 : i32
    %257 = arith.index_cast %c5_i32 : i32 to index
    %c0_69 = arith.constant 0 : index
    %c0_70 = arith.constant 0 : index
    %258 = vector.load %arg8[%257, %c0_69, %c0_70] : memref<8x16x512xf32, #tpu.memory_space<vmem>>, vector<1x16x512xf32>
    %259 = vector.shape_cast %258 : vector<1x16x512xf32> to vector<16x512xf32>
    %260 = arith.truncf %253 : vector<16x128xf32> to vector<16x128xbf16>
    %cst_71 = arith.constant dense<0.000000e+00> : vector<16x512xf32>
    %261 = tpu.matmul %260, %13, %cst_71 {dimension_numbers = #tpu.dot_dimension_numbers<[1], [0], [0], [1], [0, 0, 1, 1], [], []>} : vector<16x128xbf16>, vector<128x512xbf16>, vector<16x512xf32> -> vector<16x512xf32>
    %262 = arith.addf %259, %261 : vector<16x512xf32>
    %263 = vector.extract_strided_slice %262 {offsets = [0, 0], sizes = [16, 128], strides = [1, 1]} : vector<16x512xf32> to vector<16x128xf32>
    %264 = arith.negf %263 : vector<16x128xf32>
    %265 = math.exp %264 : vector<16x128xf32>
    %cst_72 = arith.constant 1.000000e+00 : f32
    %266 = vector.broadcast %cst_72 : f32 to vector<16x128xf32>
    %267 = arith.addf %266, %265 : vector<16x128xf32>
    %268 = arith.divf %266, %267 : vector<16x128xf32>
    %269 = vector.extract_strided_slice %262 {offsets = [0, 128], sizes = [16, 128], strides = [1, 1]} : vector<16x512xf32> to vector<16x128xf32>
    %270 = arith.negf %269 : vector<16x128xf32>
    %271 = math.exp %270 : vector<16x128xf32>
    %cst_73 = arith.constant 1.000000e+00 : f32
    %272 = vector.broadcast %cst_73 : f32 to vector<16x128xf32>
    %273 = arith.addf %272, %271 : vector<16x128xf32>
    %274 = arith.divf %272, %273 : vector<16x128xf32>
    %275 = vector.extract_strided_slice %262 {offsets = [0, 256], sizes = [16, 128], strides = [1, 1]} : vector<16x512xf32> to vector<16x128xf32>
    %276 = math.tanh %275 : vector<16x128xf32>
    %277 = vector.extract_strided_slice %262 {offsets = [0, 384], sizes = [16, 128], strides = [1, 1]} : vector<16x512xf32> to vector<16x128xf32>
    %278 = arith.negf %277 : vector<16x128xf32>
    %279 = math.exp %278 : vector<16x128xf32>
    %cst_74 = arith.constant 1.000000e+00 : f32
    %280 = vector.broadcast %cst_74 : f32 to vector<16x128xf32>
    %281 = arith.addf %280, %279 : vector<16x128xf32>
    %282 = arith.divf %280, %281 : vector<16x128xf32>
    %283 = arith.mulf %274, %256 : vector<16x128xf32>
    %284 = arith.mulf %268, %276 : vector<16x128xf32>
    %285 = arith.addf %283, %284 : vector<16x128xf32>
    %286 = math.tanh %285 : vector<16x128xf32>
    %287 = arith.mulf %282, %286 : vector<16x128xf32>
    %288 = vector.broadcast %c5_i32 : i32 to vector<16x1xi32>
    %289 = arith.cmpi sgt, %14, %288 : vector<16x1xi32>
    %cst_75 = arith.constant 0.000000e+00 : f32
    %290 = vector.shape_cast %289 : vector<16x1xi1> to vector<16x1xi1>
    %291 = vector.broadcast %290 : vector<16x1xi1> to vector<16x128xi1>
    %292 = vector.broadcast %cst_75 : f32 to vector<16x128xf32>
    %293 = arith.select %291, %287, %292 : vector<16x128xi1>, vector<16x128xf32>
    %294 = arith.truncf %293 : vector<16x128xf32> to vector<16x128xbf16>
    %c0_76 = arith.constant 0 : index
    %295 = arith.index_cast %c5_i32 : i32 to index
    %c0_77 = arith.constant 0 : index
    %c0_78 = arith.constant 0 : index
    %296 = vector.load %arg7[%c0_76, %295, %c0_77, %c0_78] : memref<1x8x16x128xbf16, #tpu.memory_space<vmem>>, vector<1x1x16x128xbf16>
    %297 = vector.shape_cast %296 : vector<1x1x16x128xbf16> to vector<16x128xbf16>
    %298 = vector.shape_cast %294 : vector<16x128xbf16> to vector<1x1x16x128xbf16>
    tpu.vector_store %arg7[%c0_76, %295, %c0_77, %c0_78], %298 {strides = array<i32>} : memref<1x8x16x128xbf16, #tpu.memory_space<vmem>>, vector<1x1x16x128xbf16>,
    %299 = vector.shape_cast %289 : vector<16x1xi1> to vector<16x1xi1>
    %300 = vector.broadcast %299 : vector<16x1xi1> to vector<16x128xi1>
    %301 = arith.select %300, %287, %253 : vector<16x128xi1>, vector<16x128xf32>
    %302 = vector.shape_cast %289 : vector<16x1xi1> to vector<16x1xi1>
    %303 = vector.broadcast %302 : vector<16x1xi1> to vector<16x128xi1>
    %304 = arith.select %303, %285, %256 : vector<16x128xi1>, vector<16x128xf32>
    %c6_i32 = arith.constant 6 : i32
    %305 = arith.index_cast %c6_i32 : i32 to index
    %c0_79 = arith.constant 0 : index
    %c0_80 = arith.constant 0 : index
    %306 = vector.load %arg8[%305, %c0_79, %c0_80] : memref<8x16x512xf32, #tpu.memory_space<vmem>>, vector<1x16x512xf32>
    %307 = vector.shape_cast %306 : vector<1x16x512xf32> to vector<16x512xf32>
    %308 = arith.truncf %301 : vector<16x128xf32> to vector<16x128xbf16>
    %cst_81 = arith.constant dense<0.000000e+00> : vector<16x512xf32>
    %309 = tpu.matmul %308, %13, %cst_81 {dimension_numbers = #tpu.dot_dimension_numbers<[1], [0], [0], [1], [0, 0, 1, 1], [], []>} : vector<16x128xbf16>, vector<128x512xbf16>, vector<16x512xf32> -> vector<16x512xf32>
    %310 = arith.addf %307, %309 : vector<16x512xf32>
    %311 = vector.extract_strided_slice %310 {offsets = [0, 0], sizes = [16, 128], strides = [1, 1]} : vector<16x512xf32> to vector<16x128xf32>
    %312 = arith.negf %311 : vector<16x128xf32>
    %313 = math.exp %312 : vector<16x128xf32>
    %cst_82 = arith.constant 1.000000e+00 : f32
    %314 = vector.broadcast %cst_82 : f32 to vector<16x128xf32>
    %315 = arith.addf %314, %313 : vector<16x128xf32>
    %316 = arith.divf %314, %315 : vector<16x128xf32>
    %317 = vector.extract_strided_slice %310 {offsets = [0, 128], sizes = [16, 128], strides = [1, 1]} : vector<16x512xf32> to vector<16x128xf32>
    %318 = arith.negf %317 : vector<16x128xf32>
    %319 = math.exp %318 : vector<16x128xf32>
    %cst_83 = arith.constant 1.000000e+00 : f32
    %320 = vector.broadcast %cst_83 : f32 to vector<16x128xf32>
    %321 = arith.addf %320, %319 : vector<16x128xf32>
    %322 = arith.divf %320, %321 : vector<16x128xf32>
    %323 = vector.extract_strided_slice %310 {offsets = [0, 256], sizes = [16, 128], strides = [1, 1]} : vector<16x512xf32> to vector<16x128xf32>
    %324 = math.tanh %323 : vector<16x128xf32>
    %325 = vector.extract_strided_slice %310 {offsets = [0, 384], sizes = [16, 128], strides = [1, 1]} : vector<16x512xf32> to vector<16x128xf32>
    %326 = arith.negf %325 : vector<16x128xf32>
    %327 = math.exp %326 : vector<16x128xf32>
    %cst_84 = arith.constant 1.000000e+00 : f32
    %328 = vector.broadcast %cst_84 : f32 to vector<16x128xf32>
    %329 = arith.addf %328, %327 : vector<16x128xf32>
    %330 = arith.divf %328, %329 : vector<16x128xf32>
    %331 = arith.mulf %322, %304 : vector<16x128xf32>
    %332 = arith.mulf %316, %324 : vector<16x128xf32>
    %333 = arith.addf %331, %332 : vector<16x128xf32>
    %334 = math.tanh %333 : vector<16x128xf32>
    %335 = arith.mulf %330, %334 : vector<16x128xf32>
    %336 = vector.broadcast %c6_i32 : i32 to vector<16x1xi32>
    %337 = arith.cmpi sgt, %14, %336 : vector<16x1xi32>
    %cst_85 = arith.constant 0.000000e+00 : f32
    %338 = vector.shape_cast %337 : vector<16x1xi1> to vector<16x1xi1>
    %339 = vector.broadcast %338 : vector<16x1xi1> to vector<16x128xi1>
    %340 = vector.broadcast %cst_85 : f32 to vector<16x128xf32>
    %341 = arith.select %339, %335, %340 : vector<16x128xi1>, vector<16x128xf32>
    %342 = arith.truncf %341 : vector<16x128xf32> to vector<16x128xbf16>
    %c0_86 = arith.constant 0 : index
    %343 = arith.index_cast %c6_i32 : i32 to index
    %c0_87 = arith.constant 0 : index
    %c0_88 = arith.constant 0 : index
    %344 = vector.load %arg7[%c0_86, %343, %c0_87, %c0_88] : memref<1x8x16x128xbf16, #tpu.memory_space<vmem>>, vector<1x1x16x128xbf16>
    %345 = vector.shape_cast %344 : vector<1x1x16x128xbf16> to vector<16x128xbf16>
    %346 = vector.shape_cast %342 : vector<16x128xbf16> to vector<1x1x16x128xbf16>
    tpu.vector_store %arg7[%c0_86, %343, %c0_87, %c0_88], %346 {strides = array<i32>} : memref<1x8x16x128xbf16, #tpu.memory_space<vmem>>, vector<1x1x16x128xbf16>,
    %347 = vector.shape_cast %337 : vector<16x1xi1> to vector<16x1xi1>
    %348 = vector.broadcast %347 : vector<16x1xi1> to vector<16x128xi1>
    %349 = arith.select %348, %335, %301 : vector<16x128xi1>, vector<16x128xf32>
    %350 = vector.shape_cast %337 : vector<16x1xi1> to vector<16x1xi1>
    %351 = vector.broadcast %350 : vector<16x1xi1> to vector<16x128xi1>
    %352 = arith.select %351, %333, %304 : vector<16x128xi1>, vector<16x128xf32>
    %c7_i32 = arith.constant 7 : i32
    %353 = arith.index_cast %c7_i32 : i32 to index
    %c0_89 = arith.constant 0 : index
    %c0_90 = arith.constant 0 : index
    %354 = vector.load %arg8[%353, %c0_89, %c0_90] : memref<8x16x512xf32, #tpu.memory_space<vmem>>, vector<1x16x512xf32>
    %355 = vector.shape_cast %354 : vector<1x16x512xf32> to vector<16x512xf32>
    %356 = arith.truncf %349 : vector<16x128xf32> to vector<16x128xbf16>
    %cst_91 = arith.constant dense<0.000000e+00> : vector<16x512xf32>
    %357 = tpu.matmul %356, %13, %cst_91 {dimension_numbers = #tpu.dot_dimension_numbers<[1], [0], [0], [1], [0, 0, 1, 1], [], []>} : vector<16x128xbf16>, vector<128x512xbf16>, vector<16x512xf32> -> vector<16x512xf32>
    %358 = arith.addf %355, %357 : vector<16x512xf32>
    %359 = vector.extract_strided_slice %358 {offsets = [0, 0], sizes = [16, 128], strides = [1, 1]} : vector<16x512xf32> to vector<16x128xf32>
    %360 = arith.negf %359 : vector<16x128xf32>
    %361 = math.exp %360 : vector<16x128xf32>
    %cst_92 = arith.constant 1.000000e+00 : f32
    %362 = vector.broadcast %cst_92 : f32 to vector<16x128xf32>
    %363 = arith.addf %362, %361 : vector<16x128xf32>
    %364 = arith.divf %362, %363 : vector<16x128xf32>
    %365 = vector.extract_strided_slice %358 {offsets = [0, 128], sizes = [16, 128], strides = [1, 1]} : vector<16x512xf32> to vector<16x128xf32>
    %366 = arith.negf %365 : vector<16x128xf32>
    %367 = math.exp %366 : vector<16x128xf32>
    %cst_93 = arith.constant 1.000000e+00 : f32
    %368 = vector.broadcast %cst_93 : f32 to vector<16x128xf32>
    %369 = arith.addf %368, %367 : vector<16x128xf32>
    %370 = arith.divf %368, %369 : vector<16x128xf32>
    %371 = vector.extract_strided_slice %358 {offsets = [0, 256], sizes = [16, 128], strides = [1, 1]} : vector<16x512xf32> to vector<16x128xf32>
    %372 = math.tanh %371 : vector<16x128xf32>
    %373 = vector.extract_strided_slice %358 {offsets = [0, 384], sizes = [16, 128], strides = [1, 1]} : vector<16x512xf32> to vector<16x128xf32>
    %374 = arith.negf %373 : vector<16x128xf32>
    %375 = math.exp %374 : vector<16x128xf32>
    %cst_94 = arith.constant 1.000000e+00 : f32
    %376 = vector.broadcast %cst_94 : f32 to vector<16x128xf32>
    %377 = arith.addf %376, %375 : vector<16x128xf32>
    %378 = arith.divf %376, %377 : vector<16x128xf32>
    %379 = arith.mulf %370, %352 : vector<16x128xf32>
    %380 = arith.mulf %364, %372 : vector<16x128xf32>
    %381 = arith.addf %379, %380 : vector<16x128xf32>
    %382 = math.tanh %381 : vector<16x128xf32>
    %383 = arith.mulf %378, %382 : vector<16x128xf32>
    %384 = vector.broadcast %c7_i32 : i32 to vector<16x1xi32>
    %385 = arith.cmpi sgt, %14, %384 : vector<16x1xi32>
    %cst_95 = arith.constant 0.000000e+00 : f32
    %386 = vector.shape_cast %385 : vector<16x1xi1> to vector<16x1xi1>
    %387 = vector.broadcast %386 : vector<16x1xi1> to vector<16x128xi1>
    %388 = vector.broadcast %cst_95 : f32 to vector<16x128xf32>
    %389 = arith.select %387, %383, %388 : vector<16x128xi1>, vector<16x128xf32>
    %390 = arith.truncf %389 : vector<16x128xf32> to vector<16x128xbf16>
    %c0_96 = arith.constant 0 : index
    %391 = arith.index_cast %c7_i32 : i32 to index
    %c0_97 = arith.constant 0 : index
    %c0_98 = arith.constant 0 : index
    %392 = vector.load %arg7[%c0_96, %391, %c0_97, %c0_98] : memref<1x8x16x128xbf16, #tpu.memory_space<vmem>>, vector<1x1x16x128xbf16>
    %393 = vector.shape_cast %392 : vector<1x1x16x128xbf16> to vector<16x128xbf16>
    %394 = vector.shape_cast %390 : vector<16x128xbf16> to vector<1x1x16x128xbf16>
    tpu.vector_store %arg7[%c0_96, %391, %c0_97, %c0_98], %394 {strides = array<i32>} : memref<1x8x16x128xbf16, #tpu.memory_space<vmem>>, vector<1x1x16x128xbf16>,
    %395 = vector.shape_cast %385 : vector<16x1xi1> to vector<16x1xi1>
    %396 = vector.broadcast %395 : vector<16x1xi1> to vector<16x128xi1>
    %397 = arith.select %396, %383, %349 : vector<16x128xi1>, vector<16x128xf32>
    %398 = vector.shape_cast %385 : vector<16x1xi1> to vector<16x1xi1>
    %399 = vector.broadcast %398 : vector<16x1xi1> to vector<16x128xi1>
    %400 = arith.select %399, %381, %352 : vector<16x128xi1>, vector<16x128xf32>
    %c8_i32 = arith.constant 8 : i32
    return
  }
  func.func @transform_0(%arg0: i32, %arg1: i32) -> (i32, i32, i32, i32) {
    %c0_i32 = arith.constant 0 : i32
    %c0_i32_0 = arith.constant 0 : i32
    %c0_i32_1 = arith.constant 0 : i32
    return %arg0, %c0_i32, %arg1, %c0_i32_0 : i32, i32, i32, i32
  }
  func.func @transform_1(%arg0: i32, %arg1: i32) -> (i32, i32) {
    %c0_i32 = arith.constant 0 : i32
    %c0_i32_0 = arith.constant 0 : i32
    return %arg1, %c0_i32 : i32, i32
  }
  func.func @transform_2(%arg0: i32, %arg1: i32) -> (i32, i32, i32) {
    %c0_i32 = arith.constant 0 : i32
    %c0_i32_0 = arith.constant 0 : i32
    %c0_i32_1 = arith.constant 0 : i32
    return %arg0, %c0_i32, %c0_i32_0 : i32, i32, i32
  }
  func.func @transform_3(%arg0: i32, %arg1: i32) -> (i32, i32, i32) {
    %c0_i32 = arith.constant 0 : i32
    %c0_i32_0 = arith.constant 0 : i32
    %c0_i32_1 = arith.constant 0 : i32
    return %arg0, %c0_i32, %c0_i32_0 : i32, i32, i32
  }
  func.func @transform_4(%arg0: i32, %arg1: i32) -> (i32, i32, i32) {
    %c0_i32 = arith.constant 0 : i32
    %c0_i32_0 = arith.constant 0 : i32
    %c0_i32_1 = arith.constant 0 : i32
    return %arg0, %c0_i32, %c0_i32_0 : i32, i32, i32
  }
  func.func @transform_5(%arg0: i32, %arg1: i32) -> (i32, i32, i32, i32) {
    %c0_i32 = arith.constant 0 : i32
    %c0_i32_0 = arith.constant 0 : i32
    %c0_i32_1 = arith.constant 0 : i32
    return %arg0, %c0_i32, %arg1, %c0_i32_0 : i32, i32, i32, i32
  }
}

module attributes {stable_mosaic.version = 11 : i64} {
  func.func @_fc_kernel(%arg0: i32, %arg1: memref<16x32xbf16, #tpu.memory_space<vmem>>, %arg2: memref<32x128xbf16, #tpu.memory_space<vmem>>, %arg3: memref<1x128xf32, #tpu.memory_space<vmem>>, %arg4: memref<128x128xbf16, #tpu.memory_space<vmem>>, %arg5: memref<1x128xf32, #tpu.memory_space<vmem>>, %arg6: memref<16x128xf32, #tpu.memory_space<vmem>>) attributes {dimension_semantics = [#tpu.dimension_semantics<parallel>], iteration_bounds = array<i64: 1>, scalar_prefetch = 0 : i64, scratch_operands = 0 : i64, tpu.core_type = #tpu.core_type<tc>, window_params = [{transform_indices = @transform_0, window_bounds = array<i64: 16, 32>}, {pipeline_mode = #tpu.pipeline_mode<synchronous>, transform_indices = @transform_1, window_bounds = array<i64: 32, 128>}, {pipeline_mode = #tpu.pipeline_mode<synchronous>, transform_indices = @transform_2, window_bounds = array<i64: 1, 128>}, {pipeline_mode = #tpu.pipeline_mode<synchronous>, transform_indices = @transform_3, window_bounds = array<i64: 128, 128>}, {pipeline_mode = #tpu.pipeline_mode<synchronous>, transform_indices = @transform_4, window_bounds = array<i64: 1, 128>}, {transform_indices = @transform_5, window_bounds = array<i64: 16, 128>}]} {
    %c0 = arith.constant 0 : index
    %c0_0 = arith.constant 0 : index
    %0 = vector.load %arg1[%c0, %c0_0] : memref<16x32xbf16, #tpu.memory_space<vmem>>, vector<16x32xbf16>
    %c0_1 = arith.constant 0 : index
    %c0_2 = arith.constant 0 : index
    %1 = vector.load %arg2[%c0_1, %c0_2] : memref<32x128xbf16, #tpu.memory_space<vmem>>, vector<32x128xbf16>
    %cst = arith.constant dense<0.000000e+00> : vector<16x128xf32>
    %2 = tpu.matmul %0, %1, %cst {dimension_numbers = #tpu.dot_dimension_numbers<[1], [0], [0], [1], [0, 0, 1, 1], [], []>} : vector<16x32xbf16>, vector<32x128xbf16>, vector<16x128xf32> -> vector<16x128xf32>
    %c0_3 = arith.constant 0 : index
    %c0_4 = arith.constant 0 : index
    %3 = vector.load %arg3[%c0_3, %c0_4] : memref<1x128xf32, #tpu.memory_space<vmem>>, vector<1x128xf32>
    %4 = vector.broadcast %3 : vector<1x128xf32> to vector<16x128xf32>
    %5 = arith.addf %2, %4 : vector<16x128xf32>
    %6 = math.tanh %5 : vector<16x128xf32>
    %7 = arith.truncf %6 : vector<16x128xf32> to vector<16x128xbf16>
    %c0_5 = arith.constant 0 : index
    %c0_6 = arith.constant 0 : index
    %8 = vector.load %arg4[%c0_5, %c0_6] : memref<128x128xbf16, #tpu.memory_space<vmem>>, vector<128x128xbf16>
    %cst_7 = arith.constant dense<0.000000e+00> : vector<16x128xf32>
    %9 = tpu.matmul %7, %8, %cst_7 {dimension_numbers = #tpu.dot_dimension_numbers<[1], [0], [0], [1], [0, 0, 1, 1], [], []>} : vector<16x128xbf16>, vector<128x128xbf16>, vector<16x128xf32> -> vector<16x128xf32>
    %c0_8 = arith.constant 0 : index
    %c0_9 = arith.constant 0 : index
    %10 = vector.load %arg5[%c0_8, %c0_9] : memref<1x128xf32, #tpu.memory_space<vmem>>, vector<1x128xf32>
    %11 = vector.broadcast %10 : vector<1x128xf32> to vector<16x128xf32>
    %12 = arith.addf %9, %11 : vector<16x128xf32>
    %c0_10 = arith.constant 0 : index
    %c0_11 = arith.constant 0 : index
    %13 = vector.load %arg6[%c0_10, %c0_11] : memref<16x128xf32, #tpu.memory_space<vmem>>, vector<16x128xf32>
    tpu.vector_store %arg6[%c0_10, %c0_11], %12 {strides = array<i32>} : memref<16x128xf32, #tpu.memory_space<vmem>>, vector<16x128xf32>,
    return
  }
  func.func @transform_0(%arg0: i32) -> (i32, i32) {
    %c0_i32 = arith.constant 0 : i32
    %c0_i32_0 = arith.constant 0 : i32
    return %arg0, %c0_i32 : i32, i32
  }
  func.func @transform_1(%arg0: i32) -> (i32, i32) {
    %c0_i32 = arith.constant 0 : i32
    %c0_i32_0 = arith.constant 0 : i32
    %c0_i32_1 = arith.constant 0 : i32
    return %c0_i32, %c0_i32_0 : i32, i32
  }
  func.func @transform_2(%arg0: i32) -> (i32, i32) {
    %c0_i32 = arith.constant 0 : i32
    %c0_i32_0 = arith.constant 0 : i32
    %c0_i32_1 = arith.constant 0 : i32
    return %c0_i32, %c0_i32_0 : i32, i32
  }
  func.func @transform_3(%arg0: i32) -> (i32, i32) {
    %c0_i32 = arith.constant 0 : i32
    %c0_i32_0 = arith.constant 0 : i32
    %c0_i32_1 = arith.constant 0 : i32
    return %c0_i32, %c0_i32_0 : i32, i32
  }
  func.func @transform_4(%arg0: i32) -> (i32, i32) {
    %c0_i32 = arith.constant 0 : i32
    %c0_i32_0 = arith.constant 0 : i32
    %c0_i32_1 = arith.constant 0 : i32
    return %c0_i32, %c0_i32_0 : i32, i32
  }
  func.func @transform_5(%arg0: i32) -> (i32, i32) {
    %c0_i32 = arith.constant 0 : i32
    %c0_i32_0 = arith.constant 0 : i32
    return %arg0, %c0_i32 : i32, i32
  }
}

</mosaic_0001>

<llo_original>
// kernel: bilstm_crf_forward.3
$region0: #{bilstm_crf_forward.3}
  #allocation0 [shape = 'u32[]', space=smem, size = 0x4, offset = 0x4, fixed_abs, tag = 'smem constant byte address 0x4 - core index']
  #allocation1 [shape = 'u32[144,128]{1,0:T(1,128)}', space=vmem, size = 0x12000, scoped, tag = 'internal scratch']
  #allocation2 [shape = 'f32[6,16,512]{2,1,0:T(8,128)}', space=vmem, size = 0x30000, scoped, tag = 'scratch operand']
  %s0 = inlined_call_operand.vmem [shape: bf16[2,6,16,16], index: 0, kind: input, shape index: {}]
  %s1 = inlined_call_operand.vmem [shape: s32[16,1], index: 1, kind: input, shape index: {}]
  %s2 = inlined_call_operand.vmem [shape: bf16[2,16,512], index: 2, kind: input, shape index: {}]
  %s3 = inlined_call_operand.vmem [shape: bf16[2,128,512], index: 3, kind: input, shape index: {}]
  %s4 = inlined_call_operand.vmem [shape: f32[2,1,512], index: 4, kind: input, shape index: {}]
  %s5 = inlined_call_operand.vmem [shape: bf16[2,16,128], index: 5, kind: output, shape index: {}]
  %s6 = sld [smem:[#allocation0]]
  $region53: #{bilstm_crf_forward.3} parent=0
    _
  %s8 = ssub.s32 1, %s6
  %s9 = scalar_select 0, %s8, %s6
  loop: start=0, step=1, limit=4
  $region2: #{bilstm_crf_forward.3} parent=0 // loop_pre_header
    _
  $region3: #{bilstm_crf_forward.3} parent=0 // loop_header
    %s11 = sphi 0, %s15
    %p12 = scmp.ge.s32.totalorder %s11, 4
    %s18 = sphi 0, %s30
    %s19 = sphi 0, %s26
    %s20 = sphi 0, %s18
    %s21 = sphi 0, %s19
    %s22 = sphi 0, %s20
    %s23 = sphi 0, %s21
    %s35 = sphi 0, %s37
    %s38 = sphi 0, %s35
    %s39 = sphi 0, %s38
    %s55 = sphi 0, %s39
    %s61 = sphi 0, %s63
    %s64 = sphi 0, %s61
    %s65 = sphi 0, %s64
    %s81 = sphi 0, %s65
    %s87 = sphi 0, %s89
    %s90 = sphi 0, %s87
    %s91 = sphi 0, %s90
    %s107 = sphi 0, %s91
    %s113 = sphi 0, %s115
    %s116 = sphi 0, %s113
    %s117 = sphi 0, %s116
    %s133 = sphi 0, %s117
    %s139 = sphi 0, %s141
    %s142 = sphi 0, %s139
    %s143 = sphi 0, %s142
    %s159 = sphi 0, %s143
    %s167 = sphi 0, %s169
    %s170 = sphi 0, %s167
    %s171 = sphi 0, %s170
    %s187 = sphi 0, %s171
  $region4: #{bilstm_crf_forward.3} parent=0 // loop_header_branch
    %14 = sbr.rel (%p12) target = $region8
  $region5: #{bilstm_crf_forward.3} parent=0 // loop_body
    %s16 = ssub.s32 %s11, 1
    %s17 = ssub.s32 %s11, 2
    %s24 = sadd.s32 1, %s19
    %p25 = scmp.ge.s32.totalorder %s24, 1
    %s26 = scalar_select %p25, 0, %s24
    %s27 = sadd.s32 1, %s18
    %s28 = scalar_select %p25, %s27, %s18
    %p29 = scmp.ge.s32.totalorder %s28, 2
    %s30 = scalar_select %p29, 0, %s28
    %s31 = ssub.s32 %s18, %s30
    %s32 = ssub.s32 %s19, %s26
    %s33 = sor.u32 %s31, %s32
    %p34 = scmp.eq.s32.totalorder %s33, 0
    %s36 = sadd.s32 %s35, 1
    %s37 = scalar_select %p34, %s35, %s36
    %p40 = pneg %p34
    %p41 = scmp.eq.s32.totalorder %s11, 1
    %p42 = por %p40, %p41
    %p43 = scmp.ne.s32.totalorder %s35, %s38
    %p44 = scmp.eq.s32.totalorder %s11, 0
    %p45 = por %p43, %p44
    %p46 = scmp.ne.s32.totalorder %s35, %s38
    %p47 = scmp.eq.s32.totalorder %s16, 1
    %p48 = por %p46, %p47
    %p49 = scmp.ne.s32.totalorder %s38, %s39
    %p50 = scmp.eq.s32.totalorder %s16, 0
    %p51 = por %p49, %p50
    %p52 = scmp.ne.s32.totalorder %s38, %s39
    %p53 = scmp.eq.s32.totalorder %s17, 1
    %p54 = por %p52, %p53
    %p56 = scmp.ne.s32.totalorder %s39, %s55
    %p57 = scmp.eq.s32.totalorder %s17, 0
    %p58 = por %p56, %p57
    %s59 = ssub.s32 %s19, %s26
    %p60 = scmp.eq.s32.totalorder %s59, 0
    %s62 = sadd.s32 %s61, 1
    %s63 = scalar_select %p60, %s61, %s62
    %p66 = pneg %p60
    %p67 = scmp.eq.s32.totalorder %s11, 1
    %p68 = por %p66, %p67
    %p69 = scmp.ne.s32.totalorder %s61, %s64
    %p70 = scmp.eq.s32.totalorder %s11, 0
    %p71 = por %p69, %p70
    %p72 = scmp.ne.s32.totalorder %s61, %s64
    %p73 = scmp.eq.s32.totalorder %s16, 1
    %p74 = por %p72, %p73
    %p75 = scmp.ne.s32.totalorder %s64, %s65
    %p76 = scmp.eq.s32.totalorder %s16, 0
    %p77 = por %p75, %p76
    %p78 = scmp.ne.s32.totalorder %s64, %s65
    %p79 = scmp.eq.s32.totalorder %s17, 1
    %p80 = por %p78, %p79
    %p82 = scmp.ne.s32.totalorder %s65, %s81
    %p83 = scmp.eq.s32.totalorder %s17, 0
    %p84 = por %p82, %p83
    %s85 = ssub.s32 %s18, %s30
    %p86 = scmp.eq.s32.totalorder %s85, 0
    %s88 = sadd.s32 %s87, 1
    %s89 = scalar_select %p86, %s87, %s88
    %p92 = pneg %p86
    %p93 = scmp.eq.s32.totalorder %s11, 1
    %p94 = por %p92, %p93
    %p95 = scmp.ne.s32.totalorder %s87, %s90
    %p96 = scmp.eq.s32.totalorder %s11, 0
    %p97 = por %p95, %p96
    %p98 = scmp.ne.s32.totalorder %s87, %s90
    %p99 = scmp.eq.s32.totalorder %s16, 1
    %p100 = por %p98, %p99
    %p101 = scmp.ne.s32.totalorder %s90, %s91
    %p102 = scmp.eq.s32.totalorder %s16, 0
    %p103 = por %p101, %p102
    %p104 = scmp.ne.s32.totalorder %s90, %s91
    %p105 = scmp.eq.s32.totalorder %s17, 1
    %p106 = por %p104, %p105
    %p108 = scmp.ne.s32.totalorder %s91, %s107
    %p109 = scmp.eq.s32.totalorder %s17, 0
    %p110 = por %p108, %p109
    %s111 = ssub.s32 %s18, %s30
    %p112 = scmp.eq.s32.totalorder %s111, 0
    %s114 = sadd.s32 %s113, 1
    %s115 = scalar_select %p112, %s113, %s114
    %p118 = pneg %p112
    %p119 = scmp.eq.s32.totalorder %s11, 1
    %p120 = por %p118, %p119
    %p121 = scmp.ne.s32.totalorder %s113, %s116
    %p122 = scmp.eq.s32.totalorder %s11, 0
    %p123 = por %p121, %p122
    %p124 = scmp.ne.s32.totalorder %s113, %s116
    %p125 = scmp.eq.s32.totalorder %s16, 1
    %p126 = por %p124, %p125
    %p127 = scmp.ne.s32.totalorder %s116, %s117
    %p128 = scmp.eq.s32.totalorder %s16, 0
    %p129 = por %p127, %p128
    %p130 = scmp.ne.s32.totalorder %s116, %s117
    %p131 = scmp.eq.s32.totalorder %s17, 1
    %p132 = por %p130, %p131
    %p134 = scmp.ne.s32.totalorder %s117, %s133
    %p135 = scmp.eq.s32.totalorder %s17, 0
    %p136 = por %p134, %p135
    %s137 = ssub.s32 %s18, %s30
    %p138 = scmp.eq.s32.totalorder %s137, 0
    %s140 = sadd.s32 %s139, 1
    %s141 = scalar_select %p138, %s139, %s140
    %p144 = pneg %p138
    %p145 = scmp.eq.s32.totalorder %s11, 1
    %p146 = por %p144, %p145
    %p147 = scmp.ne.s32.totalorder %s139, %s142
    %p148 = scmp.eq.s32.totalorder %s11, 0
    %p149 = por %p147, %p148
    %p150 = scmp.ne.s32.totalorder %s139, %s142
    %p151 = scmp.eq.s32.totalorder %s16, 1
    %p152 = por %p150, %p151
    %p153 = scmp.ne.s32.totalorder %s142, %s143
    %p154 = scmp.eq.s32.totalorder %s16, 0
    %p155 = por %p153, %p154
    %p156 = scmp.ne.s32.totalorder %s142, %s143
    %p157 = scmp.eq.s32.totalorder %s17, 1
    %p158 = por %p156, %p157
    %p160 = scmp.ne.s32.totalorder %s143, %s159
    %p161 = scmp.eq.s32.totalorder %s17, 0
    %p162 = por %p160, %p161
    %s163 = ssub.s32 %s18, %s30
    %s164 = ssub.s32 %s19, %s26
    %s165 = sor.u32 %s163, %s164
    %p166 = scmp.eq.s32.totalorder %s165, 0
    %s168 = sadd.s32 %s167, 1
    %s169 = scalar_select %p166, %s167, %s168
    %p172 = pneg %p166
    %p173 = scmp.eq.s32.totalorder %s11, 1
    %p174 = por %p172, %p173
    %p175 = scmp.ne.s32.totalorder %s167, %s170
    %p176 = scmp.eq.s32.totalorder %s11, 0
    %p177 = por %p175, %p176
    %p178 = scmp.ne.s32.totalorder %s167, %s170
    %p179 = scmp.eq.s32.totalorder %s16, 1
    %p180 = por %p178, %p179
    %p181 = scmp.ne.s32.totalorder %s170, %s171
    %p182 = scmp.eq.s32.totalorder %s16, 0
    %p183 = por %p181, %p182
    %p184 = scmp.ne.s32.totalorder %s170, %s171
    %p185 = scmp.eq.s32.totalorder %s17, 1
    %p186 = por %p184, %p185
    %p188 = scmp.ne.s32.totalorder %s171, %s187
    %p189 = scmp.eq.s32.totalorder %s17, 0
    %p190 = por %p188, %p189
    %p191 = scmp.le.s32.totalorder 1, %s11
    %p192 = scmp.lt.s32.totalorder %s11, 3
    %p193 = pnand %p191, %p192
    %p194 = pneg %p193
    // Predicated region
    $region9: #{bilstm_crf_forward.3} parent=5 // pred_check
      _
    $region10: #{bilstm_crf_forward.3} parent=5 // pred_check_branch
      %196 = sbr.rel (%p193) target = $region12
    $region11: #{bilstm_crf_forward.3} parent=5 // pred_region
      %s197 = ssub.s32 %s11, 1
      // Predicated region
      $region13: #{bilstm_crf_forward.3} parent=11 // pred_check
        %p198 = pneg %p77
      $region14: #{bilstm_crf_forward.3} parent=11 // pred_check_branch
        %200 = sbr.rel (%p198) target = $region16
      $region15: #{bilstm_crf_forward.3} parent=11 // pred_region
        %s201 = smul.u32 2, %s21
        %p202 = scmp.lt.s32.totalorder %s201, 1
        %s203 = scalar_select %p202, %s201, 1
        %s204 = smul.addr %s203, 8
        %s205 = scalar_lea.vmem %s1, %s204
        %s206 = smul.u32 2, %s21
      $region16: #{bilstm_crf_forward.3} parent=11 // pred_fallthru
        _
    $region12: #{bilstm_crf_forward.3} parent=5 // pred_fallthru
      _
    %p207 = scmp.lt.s32.totalorder %s11, 2
    // Predicated region
    $region17: #{bilstm_crf_forward.3} parent=5 // pred_check
      %p208 = pneg %p207
    $region18: #{bilstm_crf_forward.3} parent=5 // pred_check_branch
      %210 = sbr.rel (%p208) target = $region20
    $region19: #{bilstm_crf_forward.3} parent=5 // pred_region
      // Predicated region
      $region21: #{bilstm_crf_forward.3} parent=19 // pred_check
        %p211 = pneg %p45
      $region22: #{bilstm_crf_forward.3} parent=19 // pred_check_branch
        %213 = sbr.rel (%p211) target = $region24
      $region23: #{bilstm_crf_forward.3} parent=19 // pred_region
        %s214 = smul.u32 2, %s19
        %p215 = scmp.lt.s32.totalorder %s18, 1
        %s216 = scalar_select %p215, %s18, 1
        %p217 = scmp.lt.s32.totalorder %s214, 1
        %s218 = scalar_select %p217, %s214, 1
        %s219 = smul.addr %s216, 12
        %s220 = sadd.s32 %s218, %s219
        %s221 = smul.addr %s220, 4
        %s222 = scalar_lea.vmem %s0, %s221
        %s223 = smul.u32 2, %s19
      $region24: #{bilstm_crf_forward.3} parent=19 // pred_fallthru
        _
      // Predicated region
      $region25: #{bilstm_crf_forward.3} parent=19 // pred_check
        %p224 = pneg %p97
      $region26: #{bilstm_crf_forward.3} parent=19 // pred_check_branch
        %226 = sbr.rel (%p224) target = $region28
      $region27: #{bilstm_crf_forward.3} parent=19 // pred_region
        %p227 = scmp.lt.s32.totalorder %s18, 1
        %s228 = scalar_select %p227, %s18, 1
        %s229 = smul.addr %s228, 8
        %s230 = smul.addr %s229, 4
        %s231 = scalar_lea.vmem %s2, %s230
      $region28: #{bilstm_crf_forward.3} parent=19 // pred_fallthru
        _
      // Predicated region
      $region29: #{bilstm_crf_forward.3} parent=19 // pred_check
        %p232 = pneg %p123
      $region30: #{bilstm_crf_forward.3} parent=19 // pred_check_branch
        %234 = sbr.rel (%p232) target = $region32
      $region31: #{bilstm_crf_forward.3} parent=19 // pred_region
        %p235 = scmp.lt.s32.totalorder %s18, 1
        %s236 = scalar_select %p235, %s18, 1
        %s237 = smul.addr %s236, 64
        %s238 = smul.addr %s237, 4
        %s239 = scalar_lea.vmem %s3, %s238
      $region32: #{bilstm_crf_forward.3} parent=19 // pred_fallthru
        _
      // Predicated region
      $region33: #{bilstm_crf_forward.3} parent=19 // pred_check
        %p240 = pneg %p149
      $region34: #{bilstm_crf_forward.3} parent=19 // pred_check_branch
        %242 = sbr.rel (%p240) target = $region36
      $region35: #{bilstm_crf_forward.3} parent=19 // pred_region
        %p243 = scmp.lt.s32.totalorder %s18, 1
        %s244 = scalar_select %p243, %s18, 1
        %s245 = smul.addr %s244, 4
        %s246 = scalar_lea.vmem %s4, %s245
      $region36: #{bilstm_crf_forward.3} parent=19 // pred_fallthru
        _
    $region20: #{bilstm_crf_forward.3} parent=5 // pred_fallthru
      _
    %p247 = scmp.le.s32.totalorder 1, %s11
    %p248 = scmp.lt.s32.totalorder %s11, 3
    %p249 = pnand %p247, %p248
    %p250 = pneg %p249
    // Predicated region
    $region37: #{bilstm_crf_forward.3} parent=5 // pred_check
      _
    $region38: #{bilstm_crf_forward.3} parent=5 // pred_check_branch
      %252 = sbr.rel (%p249) target = $region40
    $region39: #{bilstm_crf_forward.3} parent=5 // pred_region
      %s253 = ssub.s32 %s11, 1
      %s254 = smul.u32 2, %s21
      %p255 = scmp.lt.s32.totalorder %s20, 1
      %s256 = scalar_select %p255, %s20, 1
      %p257 = scmp.lt.s32.totalorder %s254, 1
      %s258 = scalar_select %p257, %s254, 1
      %s259 = smul.addr %s256, 12
      %s260 = sadd.s32 %s258, %s259
      %s261 = smul.addr %s260, 4
      %s262 = scalar_lea.vmem %s0, %s261
      %p263 = pneg %p51
      %p264 = pneg %p48
      %s265 = smul.u32 2, %s21
      %p266 = scmp.lt.s32.totalorder %s265, 1
      %s267 = scalar_select %p266, %s265, 1
      %s268 = smul.addr %s267, 8
      %s269 = scalar_lea.vmem %s1, %s268
      %p270 = pneg %p77
      %p271 = pneg %p74
      %p272 = scmp.lt.s32.totalorder %s20, 1
      %s273 = scalar_select %p272, %s20, 1
      %s274 = smul.addr %s273, 8
      %s275 = smul.addr %s274, 4
      %s276 = scalar_lea.vmem %s2, %s275
      %p277 = pneg %p103
      %p278 = pneg %p100
      %p279 = scmp.lt.s32.totalorder %s20, 1
      %s280 = scalar_select %p279, %s20, 1
      %s281 = smul.addr %s280, 64
      %s282 = smul.addr %s281, 4
      %s283 = scalar_lea.vmem %s3, %s282
      %p284 = pneg %p129
      %p285 = pneg %p126
      %p286 = scmp.lt.s32.totalorder %s20, 1
      %s287 = scalar_select %p286, %s20, 1
      %s288 = smul.addr %s287, 4
      %s289 = scalar_lea.vmem %s4, %s288
      %p290 = pneg %p155
      %p291 = pneg %p152
      %p292 = pneg %p183
      %p293 = pneg %p180
      %s294 = smul.u32 2, %s21
      %p295 = scmp.lt.s32.totalorder %s20, 1
      %s296 = scalar_select %p295, %s20, 1
      %p297 = scmp.lt.s32.totalorder %s294, 1
      %s298 = scalar_select %p297, %s294, 1
      %s299 = smul.addr %s296, 2
      %s300 = sadd.s32 %s298, %s299
      %s301 = smul.addr %s300, 4
      %s302 = scalar_lea.vmem %s5, %s301
      %s303 = smul.u32 2, %s21
      %p304 = scmp.lt.s32.totalorder %s20, 1
      %s305 = scalar_select %p304, %s20, 1
      %p306 = scmp.lt.s32.totalorder %s303, 1
      %s307 = scalar_select %p306, %s303, 1
      %s308 = smul.addr %s305, 12
      %s309 = sadd.s32 %s307, %s308
      %s310 = smul.addr %s309, 4
      %s311 = scalar_lea.vmem %s0, %s310
      %s312 = smul.u32 2, %s21
      %s313 = smul.u32 2, %s21
      %p314 = scmp.lt.s32.totalorder %s313, 1
      %s315 = scalar_select %p314, %s313, 1
      %s316 = smul.addr %s315, 8
      %s317 = scalar_lea.vmem %s1, %s316
      %s318 = smul.u32 2, %s21
      %p319 = scmp.lt.s32.totalorder %s20, 1
      %s320 = scalar_select %p319, %s20, 1
      %s321 = smul.addr %s320, 8
      %s322 = smul.addr %s321, 4
      %s323 = scalar_lea.vmem %s2, %s322
      %p324 = scmp.lt.s32.totalorder %s20, 1
      %s325 = scalar_select %p324, %s20, 1
      %s326 = smul.addr %s325, 64
      %s327 = smul.addr %s326, 4
      %s328 = scalar_lea.vmem %s3, %s327
      %p329 = scmp.lt.s32.totalorder %s20, 1
      %s330 = scalar_select %p329, %s20, 1
      %s331 = smul.addr %s330, 4
      %s332 = scalar_lea.vmem %s4, %s331
      %s333 = smul.u32 2, %s21
      %p334 = scmp.lt.s32.totalorder %s20, 1
      %s335 = scalar_select %p334, %s20, 1
      %p336 = scmp.lt.s32.totalorder %s333, 1
      %s337 = scalar_select %p336, %s333, 1
      %s338 = smul.addr %s335, 2
      %s339 = sadd.s32 %s337, %s338
      %s340 = smul.addr %s339, 4
      %s341 = scalar_lea.vmem %s5, %s340
      %s342 = smul.u32 2, %s21
      %v344 = vld [vmem:[%s311] sm:$0xf]
      %v345 = vld [vmem:[%s311 + $0x4] sm:$0xf]
      %v346 = vld [vmem:[%s311 + $0x8] sm:$0xf]
      %v347 = vld [vmem:[%s311 + $0xc] sm:$0xf]
      %v348 = vld [vmem:[%s311 + $0x10] sm:$0xf]
      %v349 = vld [vmem:[%s311 + $0x14] sm:$0xf]
      %v350 = vld [vmem:[%s311 + $0x18] sm:$0xf]
      %v351 = vld [vmem:[%s311 + $0x1c] sm:$0xf]
      %v352 = vld [vmem:[%s311 + $0x20] sm:$0xf]
      %v353 = vld [vmem:[%s311 + $0x24] sm:$0xf]
      %v354 = vld [vmem:[%s311 + $0x28] sm:$0xf]
      %v355 = vld [vmem:[%s311 + $0x2c] sm:$0xf]
      %v356 = vld [vmem:[%s323] sm:$0xff]
      %v357 = vld [vmem:[%s323 + $0x8] sm:$0xff]
      %v358 = vld [vmem:[%s323 + $0x10] sm:$0xff]
      %v359 = vld [vmem:[%s323 + $0x18] sm:$0xff]
      %v360 = vld [vmem:[%s332] sm:$0xf]
      %v362 = vlaneseq
      %v363 = vshrl.u32 %v362, 7
      %v364 = vsub.s32 0, %v363
      %v365 = vrot.slane %v360, %v364
      %v366 = vlaneseq
      %v367 = vshrl.u32 %v366, 7
      %v368 = vsub.s32 1, %v367
      %v369 = vrot.slane %v360, %v368
      %v370 = vlaneseq
      %v371 = vshrl.u32 %v370, 7
      %v372 = vsub.s32 2, %v371
      %v373 = vrot.slane %v360, %v372
      %v374 = vlaneseq
      %v375 = vshrl.u32 %v374, 7
      %v376 = vsub.s32 3, %v375
      %v377 = vrot.slane %v360, %v376
      %v394 = vunpack.c.l.b16 %v344
      %v395 = vunpack.c.l.b16 %v345
      %v396 = vunpack.c.l.b16 %v346
      %v397 = vunpack.c.l.b16 %v347
      %v398 = vunpack.c.l.b16 %v348
      %v399 = vunpack.c.l.b16 %v349
      %v400 = vunpack.c.l.b16 %v350
      %v401 = vunpack.c.l.b16 %v351
      %v402 = vunpack.c.l.b16 %v352
      %v403 = vunpack.c.l.b16 %v353
      %v404 = vunpack.c.l.b16 %v354
      %v405 = vunpack.c.l.b16 %v355
      %v406 = vpack.c.b16 %v395, %v394
      %v407 = vpack.c.b16 %v397, %v396
      %v408 = vpack.c.b16 %v399, %v398
      %v409 = vpack.c.b16 %v401, %v400
      %v410 = vpack.c.b16 %v403, %v402
      %v411 = vpack.c.b16 %v405, %v404
      %v416 = vunpack.c.l.b16 %v356
      %v417 = vunpack.c.h.b16 %v356
      %v418 = vunpack.c.l.b16 %v357
      %v419 = vunpack.c.h.b16 %v357
      %v420 = vunpack.c.l.b16 %v358
      %v421 = vunpack.c.h.b16 %v358
      %v422 = vunpack.c.l.b16 %v359
      %v423 = vunpack.c.h.b16 %v359
      %v424 = vpack.c.b16 %v420, %v416
      %v425 = vpack.c.b16 %v421, %v417
      %v426 = vpack.c.b16 %v422, %v418
      %v427 = vpack.c.b16 %v423, %v419
      %vm432 = vcmask 130048
      %v434 = vsel %vm432, %v406, 0
      %v437 = vsel %vm432, %v407, 0
      %v440 = vsel %vm432, %v408, 0
      %v443 = vsel %vm432, %v409, 0
      %v446 = vsel %vm432, %v410, 0
      %v449 = vsel %vm432, %v411, 0
      %451 = vmatprep.subr.bf16.mxu0 %v425
      %452 = vmatpush1.bf16.msra.mxu0 %v424
      %453 = vmatprep.subr.bf16.mxu0 0
      %454 = vmatpush1.bf16.msra.mxu0 0
      %455 = vmatprep.subr.bf16.mxu0 0
      %456 = vmatpush1.bf16.msra.mxu0 0
      %457 = vmatprep.subr.bf16.mxu0 0
      %458 = vmatpush1.bf16.msra.mxu0 0
      %459 = vmatprep.subr.bf16.mxu0 0
      %460 = vmatpush1.bf16.msra.mxu0 0
      %461 = vmatprep.subr.bf16.mxu0 0
      %462 = vmatpush1.bf16.msra.mxu0 0
      %463 = vmatprep.subr.bf16.mxu0 0
      %464 = vmatpush1.bf16.msra.mxu0 0
      %465 = vmatprep.subr.bf16.mxu0 0
      %466 = vmatpush1.bf16.msra.mxu0 0
      %467 = vmatprep.subr.bf16.mxu0 0
      %468 = vmatpush1.bf16.msra.mxu0 0
      %469 = vmatprep.subr.bf16.mxu0 0
      %470 = vmatpush1.bf16.msra.mxu0 0
      %471 = vmatprep.subr.bf16.mxu0 0
      %472 = vmatpush1.bf16.msra.mxu0 0
      %473 = vmatprep.subr.bf16.mxu0 0
      %474 = vmatpush1.bf16.msra.mxu0 0
      %475 = vmatprep.subr.bf16.mxu0 0
      %476 = vmatpush1.bf16.msra.mxu0 0
      %477 = vmatprep.subr.bf16.mxu0 0
      %478 = vmatpush1.bf16.msra.mxu0 0
      %479 = vmatprep.subr.bf16.mxu0 0
      %480 = vmatpush1.bf16.msra.mxu0 0
      %481 = vmatprep.subr.bf16.mxu0 0
      %482 = vmatpush1.bf16.msra.mxu0 0
      %483 = vmatprep.mubr.bf16.mxu0 0
      %484 = vmatmul.mubr.bf16.gmra.mrb[0].mxu0 %v434
      %v485 = vpop.f32.mrb[0].mxu0
      %v486 = vadd.f32 %v365, %v485
      %v487 = vpop.f32.mrb[0].mxu0
      %v488 = vadd.f32 %v369, %v487
      %v489 = vpop.f32.mrb[0].mxu0
      %v490 = vadd.f32 %v365, %v489
      %v491 = vpop.f32.mrb[0].mxu0
      %v492 = vadd.f32 %v369, %v491
      %493 = vmatprep.mubr.bf16.mxu0 0
      %494 = vmatmul.mubr.bf16.gmra.mrb[0].mxu0 %v437
      %v495 = vpop.f32.mrb[0].mxu0
      %v496 = vadd.f32 %v365, %v495
      %v497 = vpop.f32.mrb[0].mxu0
      %v498 = vadd.f32 %v369, %v497
      %v499 = vpop.f32.mrb[0].mxu0
      %v500 = vadd.f32 %v365, %v499
      %v501 = vpop.f32.mrb[0].mxu0
      %v502 = vadd.f32 %v369, %v501
      %503 = vmatprep.mubr.bf16.mxu0 0
      %504 = vmatmul.mubr.bf16.gmra.mrb[0].mxu0 %v440
      %v505 = vpop.f32.mrb[0].mxu0
      %v506 = vadd.f32 %v365, %v505
      %v507 = vpop.f32.mrb[0].mxu0
      %v508 = vadd.f32 %v369, %v507
      %v509 = vpop.f32.mrb[0].mxu0
      %v510 = vadd.f32 %v365, %v509
      %v511 = vpop.f32.mrb[0].mxu0
      %v512 = vadd.f32 %v369, %v511
      %513 = vmatprep.mubr.bf16.mxu0 0
      %514 = vmatmul.mubr.bf16.gmra.mrb[0].mxu0 %v443
      %v515 = vpop.f32.mrb[0].mxu0
      %v516 = vadd.f32 %v365, %v515
      %v517 = vpop.f32.mrb[0].mxu0
      %v518 = vadd.f32 %v369, %v517
      %v519 = vpop.f32.mrb[0].mxu0
      %v520 = vadd.f32 %v365, %v519
      %v521 = vpop.f32.mrb[0].mxu0
      %v522 = vadd.f32 %v369, %v521
      %523 = vmatprep.mubr.bf16.mxu0 0
      %524 = vmatmul.mubr.bf16.gmra.mrb[0].mxu0 %v446
      %v525 = vpop.f32.mrb[0].mxu0
      %v526 = vadd.f32 %v365, %v525
      %v527 = vpop.f32.mrb[0].mxu0
      %v528 = vadd.f32 %v369, %v527
      %v529 = vpop.f32.mrb[0].mxu0
      %v530 = vadd.f32 %v365, %v529
      %v531 = vpop.f32.mrb[0].mxu0
      %v532 = vadd.f32 %v369, %v531
      %533 = vmatprep.mubr.bf16.mxu0 0
      %534 = vmatmul.mubr.bf16.gmra.mrb[0].mxu0 %v449
      %v535 = vpop.f32.mrb[0].mxu0
      %v536 = vadd.f32 %v365, %v535
      %v537 = vpop.f32.mrb[0].mxu0
      %v538 = vadd.f32 %v369, %v537
      %v539 = vpop.f32.mrb[0].mxu0
      %v540 = vadd.f32 %v365, %v539
      %v541 = vpop.f32.mrb[0].mxu0
      %v542 = vadd.f32 %v369, %v541
      %543 = vdwg.mxu0
      %544 = vmatprep.subr.bf16.mxu0 %v427
      %545 = vmatpush1.bf16.msra.mxu0 %v426
      %546 = vmatprep.subr.bf16.mxu0 0
      %547 = vmatpush1.bf16.msra.mxu0 0
      %548 = vmatprep.subr.bf16.mxu0 0
      %549 = vmatpush1.bf16.msra.mxu0 0
      %550 = vmatprep.subr.bf16.mxu0 0
      %551 = vmatpush1.bf16.msra.mxu0 0
      %552 = vmatprep.subr.bf16.mxu0 0
      %553 = vmatpush1.bf16.msra.mxu0 0
      %554 = vmatprep.subr.bf16.mxu0 0
      %555 = vmatpush1.bf16.msra.mxu0 0
      %556 = vmatprep.subr.bf16.mxu0 0
      %557 = vmatpush1.bf16.msra.mxu0 0
      %558 = vmatprep.subr.bf16.mxu0 0
      %559 = vmatpush1.bf16.msra.mxu0 0
      %560 = vmatprep.subr.bf16.mxu0 0
      %561 = vmatpush1.bf16.msra.mxu0 0
      %562 = vmatprep.subr.bf16.mxu0 0
      %563 = vmatpush1.bf16.msra.mxu0 0
      %564 = vmatprep.subr.bf16.mxu0 0
      %565 = vmatpush1.bf16.msra.mxu0 0
      %566 = vmatprep.subr.bf16.mxu0 0
      %567 = vmatpush1.bf16.msra.mxu0 0
      %568 = vmatprep.subr.bf16.mxu0 0
      %569 = vmatpush1.bf16.msra.mxu0 0
      %570 = vmatprep.subr.bf16.mxu0 0
      %571 = vmatpush1.bf16.msra.mxu0 0
      %572 = vmatprep.subr.bf16.mxu0 0
      %573 = vmatpush1.bf16.msra.mxu0 0
      %574 = vmatprep.subr.bf16.mxu0 0
      %575 = vmatpush1.bf16.msra.mxu0 0
      %576 = vmatprep.mubr.bf16.mxu0 0
      %577 = vmatmul.mubr.bf16.gmra.mrb[0].mxu0 %v434
      %v578 = vpop.f32.mrb[0].mxu0
      %v579 = vadd.f32 %v373, %v578
      %v580 = vpop.f32.mrb[0].mxu0
      %v581 = vadd.f32 %v377, %v580
      %v582 = vpop.f32.mrb[0].mxu0
      %v583 = vadd.f32 %v373, %v582
      %v584 = vpop.f32.mrb[0].mxu0
      %v585 = vadd.f32 %v377, %v584
      %586 = vmatprep.mubr.bf16.mxu0 0
      %587 = vmatmul.mubr.bf16.gmra.mrb[0].mxu0 %v437
      %v588 = vpop.f32.mrb[0].mxu0
      %v589 = vadd.f32 %v373, %v588
      %v590 = vpop.f32.mrb[0].mxu0
      %v591 = vadd.f32 %v377, %v590
      %v592 = vpop.f32.mrb[0].mxu0
      %v593 = vadd.f32 %v373, %v592
      %v594 = vpop.f32.mrb[0].mxu0
      %v595 = vadd.f32 %v377, %v594
      %596 = vmatprep.mubr.bf16.mxu0 0
      %597 = vmatmul.mubr.bf16.gmra.mrb[0].mxu0 %v440
      %v598 = vpop.f32.mrb[0].mxu0
      %v599 = vadd.f32 %v373, %v598
      %v600 = vpop.f32.mrb[0].mxu0
      %v601 = vadd.f32 %v377, %v600
      %v602 = vpop.f32.mrb[0].mxu0
      %v603 = vadd.f32 %v373, %v602
      %v604 = vpop.f32.mrb[0].mxu0
      %v605 = vadd.f32 %v377, %v604
      %606 = vmatprep.mubr.bf16.mxu0 0
      %607 = vmatmul.mubr.bf16.gmra.mrb[0].mxu0 %v443
      %v608 = vpop.f32.mrb[0].mxu0
      %v609 = vadd.f32 %v373, %v608
      %v610 = vpop.f32.mrb[0].mxu0
      %v611 = vadd.f32 %v377, %v610
      %v612 = vpop.f32.mrb[0].mxu0
      %v613 = vadd.f32 %v373, %v612
      %v614 = vpop.f32.mrb[0].mxu0
      %v615 = vadd.f32 %v377, %v614
      %616 = vmatprep.mubr.bf16.mxu0 0
      %617 = vmatmul.mubr.bf16.gmra.mrb[0].mxu0 %v446
      %v618 = vpop.f32.mrb[0].mxu0
      %v619 = vadd.f32 %v373, %v618
      %v620 = vpop.f32.mrb[0].mxu0
      %v621 = vadd.f32 %v377, %v620
      %v622 = vpop.f32.mrb[0].mxu0
      %v623 = vadd.f32 %v373, %v622
      %v624 = vpop.f32.mrb[0].mxu0
      %v625 = vadd.f32 %v377, %v624
      %626 = vmatprep.mubr.bf16.mxu0 0
      %627 = vmatmul.mubr.bf16.gmra.mrb[0].mxu0 %v449
      %v628 = vpop.f32.mrb[0].mxu0
      %v629 = vadd.f32 %v373, %v628
      %v630 = vpop.f32.mrb[0].mxu0
      %v631 = vadd.f32 %v377, %v630
      %v632 = vpop.f32.mrb[0].mxu0
      %v633 = vadd.f32 %v373, %v632
      %v634 = vpop.f32.mrb[0].mxu0
      %v635 = vadd.f32 %v377, %v634
      %636 = vdwg.mxu0
      %637 = vst [vmem:[#allocation2] sm:$0xff] %v486
      %638 = vst [vmem:[#allocation2 + $0x8] sm:$0xff] %v488
      %639 = vst [vmem:[#allocation2 + $0x10] sm:$0xff] %v579
      %640 = vst [vmem:[#allocation2 + $0x18] sm:$0xff] %v581
      %641 = vst [vmem:[#allocation2 + $0x20] sm:$0xff] %v490
      %642 = vst [vmem:[#allocation2 + $0x28] sm:$0xff] %v492
      %643 = vst [vmem:[#allocation2 + $0x30] sm:$0xff] %v583
      %644 = vst [vmem:[#allocation2 + $0x38] sm:$0xff] %v585
      %645 = vst [vmem:[#allocation2 + $0x40] sm:$0xff] %v496
      %646 = vst [vmem:[#allocation2 + $0x48] sm:$0xff] %v498
      %647 = vst [vmem:[#allocation2 + $0x50] sm:$0xff] %v589
      %648 = vst [vmem:[#allocation2 + $0x58] sm:$0xff] %v591
      %649 = vst [vmem:[#allocation2 + $0x60] sm:$0xff] %v500
      %650 = vst [vmem:[#allocation2 + $0x68] sm:$0xff] %v502
      %651 = vst [vmem:[#allocation2 + $0x70] sm:$0xff] %v593
      %652 = vst [vmem:[#allocation2 + $0x78] sm:$0xff] %v595
      %653 = vst [vmem:[#allocation2 + $0x80] sm:$0xff] %v506
      %654 = vst [vmem:[#allocation2 + $0x88] sm:$0xff] %v508
      %655 = vst [vmem:[#allocation2 + $0x90] sm:$0xff] %v599
      %656 = vst [vmem:[#allocation2 + $0x98] sm:$0xff] %v601
      %657 = vst [vmem:[#allocation2 + $0xa0] sm:$0xff] %v510
      %658 = vst [vmem:[#allocation2 + $0xa8] sm:$0xff] %v512
      %659 = vst [vmem:[#allocation2 + $0xb0] sm:$0xff] %v603
      %660 = vst [vmem:[#allocation2 + $0xb8] sm:$0xff] %v605
      %661 = vst [vmem:[#allocation2 + $0xc0] sm:$0xff] %v516
      %662 = vst [vmem:[#allocation2 + $0xc8] sm:$0xff] %v518
      %663 = vst [vmem:[#allocation2 + $0xd0] sm:$0xff] %v609
      %664 = vst [vmem:[#allocation2 + $0xd8] sm:$0xff] %v611
      %665 = vst [vmem:[#allocation2 + $0xe0] sm:$0xff] %v520
      %666 = vst [vmem:[#allocation2 + $0xe8] sm:$0xff] %v522
      %667 = vst [vmem:[#allocation2 + $0xf0] sm:$0xff] %v613
      %668 = vst [vmem:[#allocation2 + $0xf8] sm:$0xff] %v615
      %669 = vst [vmem:[#allocation2 + $0x100] sm:$0xff] %v526
      %670 = vst [vmem:[#allocation2 + $0x108] sm:$0xff] %v528
      %671 = vst [vmem:[#allocation2 + $0x110] sm:$0xff] %v619
      %672 = vst [vmem:[#allocation2 + $0x118] sm:$0xff] %v621
      %673 = vst [vmem:[#allocation2 + $0x120] sm:$0xff] %v530
      %674 = vst [vmem:[#allocation2 + $0x128] sm:$0xff] %v532
      %675 = vst [vmem:[#allocation2 + $0x130] sm:$0xff] %v623
      %676 = vst [vmem:[#allocation2 + $0x138] sm:$0xff] %v625
      %677 = vst [vmem:[#allocation2 + $0x140] sm:$0xff] %v536
      %678 = vst [vmem:[#allocation2 + $0x148] sm:$0xff] %v538
      %679 = vst [vmem:[#allocation2 + $0x150] sm:$0xff] %v629
      %680 = vst [vmem:[#allocation2 + $0x158] sm:$0xff] %v631
      %681 = vst [vmem:[#allocation2 + $0x160] sm:$0xff] %v540
      %682 = vst [vmem:[#allocation2 + $0x168] sm:$0xff] %v542
      %683 = vst [vmem:[#allocation2 + $0x170] sm:$0xff] %v633
      %684 = vst [vmem:[#allocation2 + $0x178] sm:$0xff] %v635
      %v685 = vld [vmem:[%s328] sm:$0xff]
      %v686 = vld [vmem:[%s328 + $0x8] sm:$0xff]
      %v687 = vld [vmem:[%s328 + $0x10] sm:$0xff]
      %v688 = vld [vmem:[%s328 + $0x18] sm:$0xff]
      %v689 = vld [vmem:[%s328 + $0x20] sm:$0xff]
      %v690 = vld [vmem:[%s328 + $0x28] sm:$0xff]
      %v691 = vld [vmem:[%s328 + $0x30] sm:$0xff]
      %v692 = vld [vmem:[%s328 + $0x38] sm:$0xff]
      %v693 = vld [vmem:[%s328 + $0x40] sm:$0xff]
      %v694 = vld [vmem:[%s328 + $0x48] sm:$0xff]
      %v695 = vld [vmem:[%s328 + $0x50] sm:$0xff]
      %v696 = vld [vmem:[%s328 + $0x58] sm:$0xff]
      %v697 = vld [vmem:[%s328 + $0x60] sm:$0xff]
      %v698 = vld [vmem:[%s328 + $0x68] sm:$0xff]
      %v699 = vld [vmem:[%s328 + $0x70] sm:$0xff]
      %v700 = vld [vmem:[%s328 + $0x78] sm:$0xff]
      %v701 = vld [vmem:[%s328 + $0x80] sm:$0xff]
      %v702 = vld [vmem:[%s328 + $0x88] sm:$0xff]
      %v703 = vld [vmem:[%s328 + $0x90] sm:$0xff]
      %v704 = vld [vmem:[%s328 + $0x98] sm:$0xff]
      %v705 = vld [vmem:[%s328 + $0xa0] sm:$0xff]
      %v706 = vld [vmem:[%s328 + $0xa8] sm:$0xff]
      %v707 = vld [vmem:[%s328 + $0xb0] sm:$0xff]
      %v708 = vld [vmem:[%s328 + $0xb8] sm:$0xff]
      %v709 = vld [vmem:[%s328 + $0xc0] sm:$0xff]
      %v710 = vld [vmem:[%s328 + $0xc8] sm:$0xff]
      %v711 = vld [vmem:[%s328 + $0xd0] sm:$0xff]
      %v712 = vld [vmem:[%s328 + $0xd8] sm:$0xff]
      %v713 = vld [vmem:[%s328 + $0xe0] sm:$0xff]
      %v714 = vld [vmem:[%s328 + $0xe8] sm:$0xff]
      %v715 = vld [vmem:[%s328 + $0xf0] sm:$0xff]
      %v716 = vld [vmem:[%s328 + $0xf8] sm:$0xff]
      %v717 = vld [vmem:[%s317] sm:$0xff]
      %v718 = vld [vmem:[%s317 + $0x8] sm:$0xff]
      %v719 = vld [vmem:[#allocation2] sm:$0xff]
      %v720 = vld [vmem:[#allocation2 + $0x8] sm:$0xff]
      %v721 = vld [vmem:[#allocation2 + $0x10] sm:$0xff]
      %v722 = vld [vmem:[#allocation2 + $0x18] sm:$0xff]
      %v723 = vld [vmem:[#allocation2 + $0x20] sm:$0xff]
      %v724 = vld [vmem:[#allocation2 + $0x28] sm:$0xff]
      %v725 = vld [vmem:[#allocation2 + $0x30] sm:$0xff]
      %v726 = vld [vmem:[#allocation2 + $0x38] sm:$0xff]
      %v759 = vunpack.c.l.b16 %v685
      %v760 = vunpack.c.h.b16 %v685
      %v761 = vunpack.c.l.b16 %v686
      %v762 = vunpack.c.h.b16 %v686
      %v763 = vunpack.c.l.b16 %v687
      %v764 = vunpack.c.h.b16 %v687
      %v765 = vunpack.c.l.b16 %v688
      %v766 = vunpack.c.h.b16 %v688
      %v767 = vunpack.c.l.b16 %v689
      %v768 = vunpack.c.h.b16 %v689
      %v769 = vunpack.c.l.b16 %v690
      %v770 = vunpack.c.h.b16 %v690
      %v771 = vunpack.c.l.b16 %v691
      %v772 = vunpack.c.h.b16 %v691
      %v773 = vunpack.c.l.b16 %v692
      %v774 = vunpack.c.h.b16 %v692
      %v775 = vunpack.c.l.b16 %v693
      %v776 = vunpack.c.h.b16 %v693
      %v777 = vunpack.c.l.b16 %v694
      %v778 = vunpack.c.h.b16 %v694
      %v779 = vunpack.c.l.b16 %v695
      %v780 = vunpack.c.h.b16 %v695
      %v781 = vunpack.c.l.b16 %v696
      %v782 = vunpack.c.h.b16 %v696
      %v783 = vunpack.c.l.b16 %v697
      %v784 = vunpack.c.h.b16 %v697
      %v785 = vunpack.c.l.b16 %v698
      %v786 = vunpack.c.h.b16 %v698
      %v787 = vunpack.c.l.b16 %v699
      %v788 = vunpack.c.h.b16 %v699
      %v789 = vunpack.c.l.b16 %v700
      %v790 = vunpack.c.h.b16 %v700
      %v791 = vunpack.c.l.b16 %v701
      %v792 = vunpack.c.h.b16 %v701
      %v793 = vunpack.c.l.b16 %v702
      %v794 = vunpack.c.h.b16 %v702
      %v795 = vunpack.c.l.b16 %v703
      %v796 = vunpack.c.h.b16 %v703
      %v797 = vunpack.c.l.b16 %v704
      %v798 = vunpack.c.h.b16 %v704
      %v799 = vunpack.c.l.b16 %v705
      %v800 = vunpack.c.h.b16 %v705
      %v801 = vunpack.c.l.b16 %v706
      %v802 = vunpack.c.h.b16 %v706
      %v803 = vunpack.c.l.b16 %v707
      %v804 = vunpack.c.h.b16 %v707
      %v805 = vunpack.c.l.b16 %v708
      %v806 = vunpack.c.h.b16 %v708
      %v807 = vunpack.c.l.b16 %v709
      %v808 = vunpack.c.h.b16 %v709
      %v809 = vunpack.c.l.b16 %v710
      %v810 = vunpack.c.h.b16 %v710
      %v811 = vunpack.c.l.b16 %v711
      %v812 = vunpack.c.h.b16 %v711
      %v813 = vunpack.c.l.b16 %v712
      %v814 = vunpack.c.h.b16 %v712
      %v815 = vunpack.c.l.b16 %v713
      %v816 = vunpack.c.h.b16 %v713
      %v817 = vunpack.c.l.b16 %v714
      %v818 = vunpack.c.h.b16 %v714
      %v819 = vunpack.c.l.b16 %v715
      %v820 = vunpack.c.h.b16 %v715
      %v821 = vunpack.c.l.b16 %v716
      %v822 = vunpack.c.h.b16 %v716
      %v823 = vpack.c.b16 %v763, %v759
      %v824 = vpack.c.b16 %v764, %v760
      %v825 = vpack.c.b16 %v765, %v761
      %v826 = vpack.c.b16 %v766, %v762
      %v827 = vpack.c.b16 %v771, %v767
      %v828 = vpack.c.b16 %v772, %v768
      %v829 = vpack.c.b16 %v773, %v769
      %v830 = vpack.c.b16 %v774, %v770
      %v831 = vpack.c.b16 %v779, %v775
      %v832 = vpack.c.b16 %v780, %v776
      %v833 = vpack.c.b16 %v781, %v777
      %v834 = vpack.c.b16 %v782, %v778
      %v835 = vpack.c.b16 %v787, %v783
      %v836 = vpack.c.b16 %v788, %v784
      %v837 = vpack.c.b16 %v789, %v785
      %v838 = vpack.c.b16 %v790, %v786
      %v839 = vpack.c.b16 %v795, %v791
      %v840 = vpack.c.b16 %v796, %v792
      %v841 = vpack.c.b16 %v797, %v793
      %v842 = vpack.c.b16 %v798, %v794
      %v843 = vpack.c.b16 %v803, %v799
      %v844 = vpack.c.b16 %v804, %v800
      %v845 = vpack.c.b16 %v805, %v801
      %v846 = vpack.c.b16 %v806, %v802
      %v847 = vpack.c.b16 %v811, %v807
      %v848 = vpack.c.b16 %v812, %v808
      %v849 = vpack.c.b16 %v813, %v809
      %v850 = vpack.c.b16 %v814, %v810
      %v851 = vpack.c.b16 %v819, %v815
      %v852 = vpack.c.b16 %v820, %v816
      %v853 = vpack.c.b16 %v821, %v817
      %v854 = vpack.c.b16 %v822, %v818
      %887 = vmatprep.subr.bf16.mxu0 %v824
      %888 = vmatpush1.bf16.msra.mxu0 %v823
      %889 = vmatprep.subr.bf16.mxu0 %v828
      %890 = vmatpush1.bf16.msra.mxu0 %v827
      %891 = vmatprep.subr.bf16.mxu0 %v832
      %892 = vmatpush1.bf16.msra.mxu0 %v831
      %893 = vmatprep.subr.bf16.mxu0 %v836
      %894 = vmatpush1.bf16.msra.mxu0 %v835
      %895 = vmatprep.subr.bf16.mxu0 %v840
      %896 = vmatpush1.bf16.msra.mxu0 %v839
      %897 = vmatprep.subr.bf16.mxu0 %v844
      %898 = vmatpush1.bf16.msra.mxu0 %v843
      %899 = vmatprep.subr.bf16.mxu0 %v848
      %900 = vmatpush1.bf16.msra.mxu0 %v847
      %901 = vmatprep.subr.bf16.mxu0 %v852
      %902 = vmatpush1.bf16.msra.mxu0 %v851
      %903 = vmatprep.subr.bf16.mxu0 0
      %904 = vmatpush1.bf16.msra.mxu0 0
      %905 = vmatprep.subr.bf16.mxu0 0
      %906 = vmatpush1.bf16.msra.mxu0 0
      %907 = vmatprep.subr.bf16.mxu0 0
      %908 = vmatpush1.bf16.msra.mxu0 0
      %909 = vmatprep.subr.bf16.mxu0 0
      %910 = vmatpush1.bf16.msra.mxu0 0
      %911 = vmatprep.subr.bf16.mxu0 0
      %912 = vmatpush1.bf16.msra.mxu0 0
      %913 = vmatprep.subr.bf16.mxu0 0
      %914 = vmatpush1.bf16.msra.mxu0 0
      %915 = vmatprep.subr.bf16.mxu0 0
      %916 = vmatpush1.bf16.msra.mxu0 0
      %917 = vmatprep.subr.bf16.mxu0 0
      %918 = vmatpush1.bf16.msra.mxu0 0
      %919 = vmatprep.mubr.bf16.mxu0 0
      %920 = vmatmul.mubr.bf16.gmra.mrb[0].mxu0 0
      %v921 = vpop.f32.mrb[0].mxu0
      %v922 = vadd.f32 0.0, %v921
      %v923 = vpop.f32.mrb[0].mxu0
      %v924 = vadd.f32 0.0, %v923
      %v925 = vpop.f32.mrb[0].mxu0
      %v926 = vadd.f32 0.0, %v925
      %v927 = vpop.f32.mrb[0].mxu0
      %v928 = vadd.f32 0.0, %v927
      %929 = vdwg.mxu0
      %930 = vmatprep.subr.bf16.mxu0 %v826
      %931 = vmatpush1.bf16.msra.mxu0 %v825
      %932 = vmatprep.subr.bf16.mxu0 %v830
      %933 = vmatpush1.bf16.msra.mxu0 %v829
      %934 = vmatprep.subr.bf16.mxu0 %v834
      %935 = vmatpush1.bf16.msra.mxu0 %v833
      %936 = vmatprep.subr.bf16.mxu0 %v838
      %937 = vmatpush1.bf16.msra.mxu0 %v837
      %938 = vmatprep.subr.bf16.mxu0 %v842
      %939 = vmatpush1.bf16.msra.mxu0 %v841
      %940 = vmatprep.subr.bf16.mxu0 %v846
      %941 = vmatpush1.bf16.msra.mxu0 %v845
      %942 = vmatprep.subr.bf16.mxu0 %v850
      %943 = vmatpush1.bf16.msra.mxu0 %v849
      %944 = vmatprep.subr.bf16.mxu0 %v854
      %945 = vmatpush1.bf16.msra.mxu0 %v853
      %946 = vmatprep.subr.bf16.mxu0 0
      %947 = vmatpush1.bf16.msra.mxu0 0
      %948 = vmatprep.subr.bf16.mxu0 0
      %949 = vmatpush1.bf16.msra.mxu0 0
      %950 = vmatprep.subr.bf16.mxu0 0
      %951 = vmatpush1.bf16.msra.mxu0 0
      %952 = vmatprep.subr.bf16.mxu0 0
      %953 = vmatpush1.bf16.msra.mxu0 0
      %954 = vmatprep.subr.bf16.mxu0 0
      %955 = vmatpush1.bf16.msra.mxu0 0
      %956 = vmatprep.subr.bf16.mxu0 0
      %957 = vmatpush1.bf16.msra.mxu0 0
      %958 = vmatprep.subr.bf16.mxu0 0
      %959 = vmatpush1.bf16.msra.mxu0 0
      %960 = vmatprep.subr.bf16.mxu0 0
      %961 = vmatpush1.bf16.msra.mxu0 0
      %962 = vmatprep.mubr.bf16.mxu0 0
      %963 = vmatmul.mubr.bf16.gmra.mrb[0].mxu0 0
      %v964 = vpop.f32.mrb[0].mxu0
      %v965 = vadd.f32 0.0, %v964
      %v966 = vpop.f32.mrb[0].mxu0
      %v967 = vadd.f32 0.0, %v966
      %v968 = vpop.f32.mrb[0].mxu0
      %v969 = vadd.f32 0.0, %v968
      %v970 = vpop.f32.mrb[0].mxu0
      %v971 = vadd.f32 0.0, %v970
      %972 = vdwg.mxu0
      %v973 = vadd.f32 %v719, %v922
      %v974 = vadd.f32 %v720, %v924
      %v975 = vadd.f32 %v721, %v965
      %v976 = vadd.f32 %v722, %v967
      %v977 = vadd.f32 %v723, %v926
      %v978 = vadd.f32 %v724, %v928
      %v979 = vadd.f32 %v725, %v969
      %v980 = vadd.f32 %v726, %v971
      %v981 = vxor.u32 %v973, 2147483648
      %v982 = vxor.u32 %v977, 2147483648
      %v983 = vmul.f32 %v981, 1.442695
      %v984 = vpow.pop %v983
      %v985 = vmul.f32 %v982, 1.442695
      %v986 = vpow.pop %v985
      %v987 = vadd.f32 %v984, 1.0
      %v988 = vadd.f32 %v986, 1.0
      %v989 = vrcp.pop %v987
      %v990 = vmul.f32 1.0, %v989
      %v991 = vrcp.pop %v988
      %v992 = vmul.f32 1.0, %v991
      %v993 = vxor.u32 %v974, 2147483648
      %v994 = vxor.u32 %v978, 2147483648
      %v995 = vmul.f32 %v993, 1.442695
      %v996 = vpow.pop %v995
      %v997 = vmul.f32 %v994, 1.442695
      %v998 = vpow.pop %v997
      %v999 = vadd.f32 %v996, 1.0
      %v1000 = vadd.f32 %v998, 1.0
      %v1001 = vrcp.pop %v999
      %v1002 = vmul.f32 1.0, %v1001
      %v1003 = vrcp.pop %v1000
      %v1004 = vmul.f32 1.0, %v1003
      %v1005 = vtanh.pop %v975
      %v1006 = vtanh.pop %v979
      %v1007 = vxor.u32 %v976, 2147483648
      %v1008 = vxor.u32 %v980, 2147483648
      %v1009 = vmul.f32 %v1007, 1.442695
      %v1010 = vpow.pop %v1009
      %v1011 = vmul.f32 %v1008, 1.442695
      %v1012 = vpow.pop %v1011
      %v1013 = vadd.f32 %v1010, 1.0
      %v1014 = vadd.f32 %v1012, 1.0
      %v1015 = vrcp.pop %v1013
      %v1016 = vmul.f32 1.0, %v1015
      %v1017 = vrcp.pop %v1014
      %v1018 = vmul.f32 1.0, %v1017
      %v1019 = vmul.f32 %v1002, 0.0
      %v1020 = vmul.f32 %v1004, 0.0
      %v1021 = vmul.f32 %v990, %v1005
      %v1022 = vmul.f32 %v992, %v1006
      %v1023 = vadd.f32 %v1019, %v1021
      %v1024 = vadd.f32 %v1020, %v1022
      %v1025 = vtanh.pop %v1023
      %v1026 = vtanh.pop %v1024
      %v1027 = vmul.f32 %v1016, %v1025
      %v1028 = vmul.f32 %v1018, %v1026
      %vm1029 = vcmp.gt.s32.totalorder %v717, 0
      %vm1030 = vcmp.gt.s32.totalorder %v718, 0
      %v1031 = vsel %vm1029, 1, 0
      %v1032 = vsel %vm1030, 1, 0
      %1033 = vset.pattern.permute.xlu0 0
      %1034 = vperm.xlu0 %1033, %v1031
      %v1035 = vpop.permute.xlu0 %1034
      %1036 = vset.pattern.permute.xlu0 0
      %1037 = vperm.xlu0 %1036, %v1032
      %v1038 = vpop.permute.xlu0 %1037
      %vm1039 = vcmp.eq.s32.totalorder %v1035, 1
      %vm1040 = vcmp.eq.s32.totalorder %v1038, 1
      %v1041 = vsel %vm1039, %v1027, 0.0
      %v1042 = vsel %vm1040, %v1028, 0.0
      %v1043 = vsel %vm1039, %v1023, 0.0
      %v1044 = vsel %vm1040, %v1024, 0.0
      %s1045 = scalar_lea.vmem [#allocation2], 64
      %v1046 = vld [vmem:[%s1045] sm:$0xff]
      %v1047 = vld [vmem:[%s1045 + $0x8] sm:$0xff]
      %v1048 = vld [vmem:[%s1045 + $0x10] sm:$0xff]
      %v1049 = vld [vmem:[%s1045 + $0x18] sm:$0xff]
      %v1050 = vld [vmem:[%s1045 + $0x20] sm:$0xff]
      %v1051 = vld [vmem:[%s1045 + $0x28] sm:$0xff]
      %v1052 = vld [vmem:[%s1045 + $0x30] sm:$0xff]
      %v1053 = vld [vmem:[%s1045 + $0x38] sm:$0xff]
      %v1054 = vpack.c.bf16 %v1042, %v1041
      %1055 = vmatprep.subr.bf16.mxu0 %v824
      %1056 = vmatpush1.bf16.msra.mxu0 %v823
      %1057 = vmatprep.subr.bf16.mxu0 %v828
      %1058 = vmatpush1.bf16.msra.mxu0 %v827
      %1059 = vmatprep.subr.bf16.mxu0 %v832
      %1060 = vmatpush1.bf16.msra.mxu0 %v831
      %1061 = vmatprep.subr.bf16.mxu0 %v836
      %1062 = vmatpush1.bf16.msra.mxu0 %v835
      %1063 = vmatprep.subr.bf16.mxu0 %v840
      %1064 = vmatpush1.bf16.msra.mxu0 %v839
      %1065 = vmatprep.subr.bf16.mxu0 %v844
      %1066 = vmatpush1.bf16.msra.mxu0 %v843
      %1067 = vmatprep.subr.bf16.mxu0 %v848
      %1068 = vmatpush1.bf16.msra.mxu0 %v847
      %1069 = vmatprep.subr.bf16.mxu0 %v852
      %1070 = vmatpush1.bf16.msra.mxu0 %v851
      %1071 = vmatprep.subr.bf16.mxu0 0
      %1072 = vmatpush1.bf16.msra.mxu0 0
      %1073 = vmatprep.subr.bf16.mxu0 0
      %1074 = vmatpush1.bf16.msra.mxu0 0
      %1075 = vmatprep.subr.bf16.mxu0 0
      %1076 = vmatpush1.bf16.msra.mxu0 0
      %1077 = vmatprep.subr.bf16.mxu0 0
      %1078 = vmatpush1.bf16.msra.mxu0 0
      %1079 = vmatprep.subr.bf16.mxu0 0
      %1080 = vmatpush1.bf16.msra.mxu0 0
      %1081 = vmatprep.subr.bf16.mxu0 0
      %1082 = vmatpush1.bf16.msra.mxu0 0
      %1083 = vmatprep.subr.bf16.mxu0 0
      %1084 = vmatpush1.bf16.msra.mxu0 0
      %1085 = vmatprep.subr.bf16.mxu0 0
      %1086 = vmatpush1.bf16.msra.mxu0 0
      %1087 = vmatprep.mubr.bf16.mxu0 0
      %1088 = vmatmul.mubr.bf16.gmra.mrb[0].mxu0 %v1054
      %v1089 = vpop.f32.mrb[0].mxu0
      %v1090 = vadd.f32 0.0, %v1089
      %v1091 = vpop.f32.mrb[0].mxu0
      %v1092 = vadd.f32 0.0, %v1091
      %v1093 = vpop.f32.mrb[0].mxu0
      %v1094 = vadd.f32 0.0, %v1093
      %v1095 = vpop.f32.mrb[0].mxu0
      %v1096 = vadd.f32 0.0, %v1095
      %1097 = vdwg.mxu0
      %1098 = vmatprep.subr.bf16.mxu0 %v826
      %1099 = vmatpush1.bf16.msra.mxu0 %v825
      %1100 = vmatprep.subr.bf16.mxu0 %v830
      %1101 = vmatpush1.bf16.msra.mxu0 %v829
      %1102 = vmatprep.subr.bf16.mxu0 %v834
      %1103 = vmatpush1.bf16.msra.mxu0 %v833
      %1104 = vmatprep.subr.bf16.mxu0 %v838
      %1105 = vmatpush1.bf16.msra.mxu0 %v837
      %1106 = vmatprep.subr.bf16.mxu0 %v842
      %1107 = vmatpush1.bf16.msra.mxu0 %v841
      %1108 = vmatprep.subr.bf16.mxu0 %v846
      %1109 = vmatpush1.bf16.msra.mxu0 %v845
      %1110 = vmatprep.subr.bf16.mxu0 %v850
      %1111 = vmatpush1.bf16.msra.mxu0 %v849
      %1112 = vmatprep.subr.bf16.mxu0 %v854
      %1113 = vmatpush1.bf16.msra.mxu0 %v853
      %1114 = vmatprep.subr.bf16.mxu0 0
      %1115 = vmatpush1.bf16.msra.mxu0 0
      %1116 = vmatprep.subr.bf16.mxu0 0
      %1117 = vmatpush1.bf16.msra.mxu0 0
      %1118 = vmatprep.subr.bf16.mxu0 0
      %1119 = vmatpush1.bf16.msra.mxu0 0
      %1120 = vmatprep.subr.bf16.mxu0 0
      %1121 = vmatpush1.bf16.msra.mxu0 0
      %1122 = vmatprep.subr.bf16.mxu0 0
      %1123 = vmatpush1.bf16.msra.mxu0 0
      %1124 = vmatprep.subr.bf16.mxu0 0
      %1125 = vmatpush1.bf16.msra.mxu0 0
      %1126 = vmatprep.subr.bf16.mxu0 0
      %1127 = vmatpush1.bf16.msra.mxu0 0
      %1128 = vmatprep.subr.bf16.mxu0 0
      %1129 = vmatpush1.bf16.msra.mxu0 0
      %1130 = vmatprep.mubr.bf16.mxu0 0
      %1131 = vmatmul.mubr.bf16.gmra.mrb[0].mxu0 %v1054
      %v1132 = vpop.f32.mrb[0].mxu0
      %v1133 = vadd.f32 0.0, %v1132
      %v1134 = vpop.f32.mrb[0].mxu0
      %v1135 = vadd.f32 0.0, %v1134
      %v1136 = vpop.f32.mrb[0].mxu0
      %v1137 = vadd.f32 0.0, %v1136
      %v1138 = vpop.f32.mrb[0].mxu0
      %v1139 = vadd.f32 0.0, %v1138
      %1140 = vdwg.mxu0
      %v1141 = vadd.f32 %v1046, %v1090
      %v1142 = vadd.f32 %v1047, %v1092
      %v1143 = vadd.f32 %v1048, %v1133
      %v1144 = vadd.f32 %v1049, %v1135
      %v1145 = vadd.f32 %v1050, %v1094
      %v1146 = vadd.f32 %v1051, %v1096
      %v1147 = vadd.f32 %v1052, %v1137
      %v1148 = vadd.f32 %v1053, %v1139
      %v1149 = vxor.u32 %v1141, 2147483648
      %v1150 = vxor.u32 %v1145, 2147483648
      %v1151 = vmul.f32 %v1149, 1.442695
      %v1152 = vpow.pop %v1151
      %v1153 = vmul.f32 %v1150, 1.442695
      %v1154 = vpow.pop %v1153
      %v1155 = vadd.f32 %v1152, 1.0
      %v1156 = vadd.f32 %v1154, 1.0
      %v1157 = vrcp.pop %v1155
      %v1158 = vmul.f32 1.0, %v1157
      %v1159 = vrcp.pop %v1156
      %v1160 = vmul.f32 1.0, %v1159
      %v1161 = vxor.u32 %v1142, 2147483648
      %v1162 = vxor.u32 %v1146, 2147483648
      %v1163 = vmul.f32 %v1161, 1.442695
      %v1164 = vpow.pop %v1163
      %v1165 = vmul.f32 %v1162, 1.442695
      %v1166 = vpow.pop %v1165
      %v1167 = vadd.f32 %v1164, 1.0
      %v1168 = vadd.f32 %v1166, 1.0
      %v1169 = vrcp.pop %v1167
      %v1170 = vmul.f32 1.0, %v1169
      %v1171 = vrcp.pop %v1168
      %v1172 = vmul.f32 1.0, %v1171
      %v1173 = vtanh.pop %v1143
      %v1174 = vtanh.pop %v1147
      %v1175 = vxor.u32 %v1144, 2147483648
      %v1176 = vxor.u32 %v1148, 2147483648
      %v1177 = vmul.f32 %v1175, 1.442695
      %v1178 = vpow.pop %v1177
      %v1179 = vmul.f32 %v1176, 1.442695
      %v1180 = vpow.pop %v1179
      %v1181 = vadd.f32 %v1178, 1.0
      %v1182 = vadd.f32 %v1180, 1.0
      %v1183 = vrcp.pop %v1181
      %v1184 = vmul.f32 1.0, %v1183
      %v1185 = vrcp.pop %v1182
      %v1186 = vmul.f32 1.0, %v1185
      %v1187 = vmul.f32 %v1170, %v1043
      %v1188 = vmul.f32 %v1172, %v1044
      %v1189 = vmul.f32 %v1158, %v1173
      %v1190 = vmul.f32 %v1160, %v1174
      %v1191 = vadd.f32 %v1187, %v1189
      %v1192 = vadd.f32 %v1188, %v1190
      %v1193 = vtanh.pop %v1191
      %v1194 = vtanh.pop %v1192
      %v1195 = vmul.f32 %v1184, %v1193
      %v1196 = vmul.f32 %v1186, %v1194
      %vm1197 = vcmp.gt.s32.totalorder %v717, 1
      %vm1198 = vcmp.gt.s32.totalorder %v718, 1
      %v1199 = vsel %vm1197, 1, 0
      %v1200 = vsel %vm1198, 1, 0
      %1201 = vset.pattern.permute.xlu0 0
      %1202 = vperm.xlu0 %1201, %v1199
      %v1203 = vpop.permute.xlu0 %1202
      %1204 = vset.pattern.permute.xlu0 0
      %1205 = vperm.xlu0 %1204, %v1200
      %v1206 = vpop.permute.xlu0 %1205
      %vm1207 = vcmp.eq.s32.totalorder %v1203, 1
      %vm1208 = vcmp.eq.s32.totalorder %v1206, 1
      %v1209 = vsel %vm1207, %v1195, %v1041
      %v1210 = vsel %vm1208, %v1196, %v1042
      %v1211 = vsel %vm1207, %v1191, %v1043
      %v1212 = vsel %vm1208, %v1192, %v1044
      %s1213 = scalar_lea.vmem [#allocation2], 128
      %v1214 = vld [vmem:[%s1213] sm:$0xff]
      %v1215 = vld [vmem:[%s1213 + $0x8] sm:$0xff]
      %v1216 = vld [vmem:[%s1213 + $0x10] sm:$0xff]
      %v1217 = vld [vmem:[%s1213 + $0x18] sm:$0xff]
      %v1218 = vld [vmem:[%s1213 + $0x20] sm:$0xff]
      %v1219 = vld [vmem:[%s1213 + $0x28] sm:$0xff]
      %v1220 = vld [vmem:[%s1213 + $0x30] sm:$0xff]
      %v1221 = vld [vmem:[%s1213 + $0x38] sm:$0xff]
      %v1222 = vpack.c.bf16 %v1210, %v1209
      %1223 = vmatprep.subr.bf16.mxu0 %v824
      %1224 = vmatpush1.bf16.msra.mxu0 %v823
      %1225 = vmatprep.subr.bf16.mxu0 %v828
      %1226 = vmatpush1.bf16.msra.mxu0 %v827
      %1227 = vmatprep.subr.bf16.mxu0 %v832
      %1228 = vmatpush1.bf16.msra.mxu0 %v831
      %1229 = vmatprep.subr.bf16.mxu0 %v836
      %1230 = vmatpush1.bf16.msra.mxu0 %v835
      %1231 = vmatprep.subr.bf16.mxu0 %v840
      %1232 = vmatpush1.bf16.msra.mxu0 %v839
      %1233 = vmatprep.subr.bf16.mxu0 %v844
      %1234 = vmatpush1.bf16.msra.mxu0 %v843
      %1235 = vmatprep.subr.bf16.mxu0 %v848
      %1236 = vmatpush1.bf16.msra.mxu0 %v847
      %1237 = vmatprep.subr.bf16.mxu0 %v852
      %1238 = vmatpush1.bf16.msra.mxu0 %v851
      %1239 = vmatprep.subr.bf16.mxu0 0
      %1240 = vmatpush1.bf16.msra.mxu0 0
      %1241 = vmatprep.subr.bf16.mxu0 0
      %1242 = vmatpush1.bf16.msra.mxu0 0
      %1243 = vmatprep.subr.bf16.mxu0 0
      %1244 = vmatpush1.bf16.msra.mxu0 0
      %1245 = vmatprep.subr.bf16.mxu0 0
      %1246 = vmatpush1.bf16.msra.mxu0 0
      %1247 = vmatprep.subr.bf16.mxu0 0
      %1248 = vmatpush1.bf16.msra.mxu0 0
      %1249 = vmatprep.subr.bf16.mxu0 0
      %1250 = vmatpush1.bf16.msra.mxu0 0
      %1251 = vmatprep.subr.bf16.mxu0 0
      %1252 = vmatpush1.bf16.msra.mxu0 0
      %1253 = vmatprep.subr.bf16.mxu0 0
      %1254 = vmatpush1.bf16.msra.mxu0 0
      %1255 = vmatprep.mubr.bf16.mxu0 0
      %1256 = vmatmul.mubr.bf16.gmra.mrb[0].mxu0 %v1222
      %v1257 = vpop.f32.mrb[0].mxu0
      %v1258 = vadd.f32 0.0, %v1257
      %v1259 = vpop.f32.mrb[0].mxu0
      %v1260 = vadd.f32 0.0, %v1259
      %v1261 = vpop.f32.mrb[0].mxu0
      %v1262 = vadd.f32 0.0, %v1261
      %v1263 = vpop.f32.mrb[0].mxu0
      %v1264 = vadd.f32 0.0, %v1263
      %1265 = vdwg.mxu0
      %1266 = vmatprep.subr.bf16.mxu0 %v826
      %1267 = vmatpush1.bf16.msra.mxu0 %v825
      %1268 = vmatprep.subr.bf16.mxu0 %v830
      %1269 = vmatpush1.bf16.msra.mxu0 %v829
      %1270 = vmatprep.subr.bf16.mxu0 %v834
      %1271 = vmatpush1.bf16.msra.mxu0 %v833
      %1272 = vmatprep.subr.bf16.mxu0 %v838
      %1273 = vmatpush1.bf16.msra.mxu0 %v837
      %1274 = vmatprep.subr.bf16.mxu0 %v842
      %1275 = vmatpush1.bf16.msra.mxu0 %v841
      %1276 = vmatprep.subr.bf16.mxu0 %v846
      %1277 = vmatpush1.bf16.msra.mxu0 %v845
      %1278 = vmatprep.subr.bf16.mxu0 %v850
      %1279 = vmatpush1.bf16.msra.mxu0 %v849
      %1280 = vmatprep.subr.bf16.mxu0 %v854
      %1281 = vmatpush1.bf16.msra.mxu0 %v853
      %1282 = vmatprep.subr.bf16.mxu0 0
      %1283 = vmatpush1.bf16.msra.mxu0 0
      %1284 = vmatprep.subr.bf16.mxu0 0
      %1285 = vmatpush1.bf16.msra.mxu0 0
      %1286 = vmatprep.subr.bf16.mxu0 0
      %1287 = vmatpush1.bf16.msra.mxu0 0
      %1288 = vmatprep.subr.bf16.mxu0 0
      %1289 = vmatpush1.bf16.msra.mxu0 0
      %1290 = vmatprep.subr.bf16.mxu0 0
      %1291 = vmatpush1.bf16.msra.mxu0 0
      %1292 = vmatprep.subr.bf16.mxu0 0
      %1293 = vmatpush1.bf16.msra.mxu0 0
      %1294 = vmatprep.subr.bf16.mxu0 0
      %1295 = vmatpush1.bf16.msra.mxu0 0
      %1296 = vmatprep.subr.bf16.mxu0 0
      %1297 = vmatpush1.bf16.msra.mxu0 0
      %1298 = vmatprep.mubr.bf16.mxu0 0
      %1299 = vmatmul.mubr.bf16.gmra.mrb[0].mxu0 %v1222
      %v1300 = vpop.f32.mrb[0].mxu0
      %v1301 = vadd.f32 0.0, %v1300
      %v1302 = vpop.f32.mrb[0].mxu0
      %v1303 = vadd.f32 0.0, %v1302
      %v1304 = vpop.f32.mrb[0].mxu0
      %v1305 = vadd.f32 0.0, %v1304
      %v1306 = vpop.f32.mrb[0].mxu0
      %v1307 = vadd.f32 0.0, %v1306
      %1308 = vdwg.mxu0
      %v1309 = vadd.f32 %v1214, %v1258
      %v1310 = vadd.f32 %v1215, %v1260
      %v1311 = vadd.f32 %v1216, %v1301
      %v1312 = vadd.f32 %v1217, %v1303
      %v1313 = vadd.f32 %v1218, %v1262
      %v1314 = vadd.f32 %v1219, %v1264
      %v1315 = vadd.f32 %v1220, %v1305
      %v1316 = vadd.f32 %v1221, %v1307
      %v1317 = vxor.u32 %v1309, 2147483648
      %v1318 = vxor.u32 %v1313, 2147483648
      %v1319 = vmul.f32 %v1317, 1.442695
      %v1320 = vpow.pop %v1319
      %v1321 = vmul.f32 %v1318, 1.442695
      %v1322 = vpow.pop %v1321
      %v1323 = vadd.f32 %v1320, 1.0
      %v1324 = vadd.f32 %v1322, 1.0
      %v1325 = vrcp.pop %v1323
      %v1326 = vmul.f32 1.0, %v1325
      %v1327 = vrcp.pop %v1324
      %v1328 = vmul.f32 1.0, %v1327
      %v1329 = vxor.u32 %v1310, 2147483648
      %v1330 = vxor.u32 %v1314, 2147483648
      %v1331 = vmul.f32 %v1329, 1.442695
      %v1332 = vpow.pop %v1331
      %v1333 = vmul.f32 %v1330, 1.442695
      %v1334 = vpow.pop %v1333
      %v1335 = vadd.f32 %v1332, 1.0
      %v1336 = vadd.f32 %v1334, 1.0
      %v1337 = vrcp.pop %v1335
      %v1338 = vmul.f32 1.0, %v1337
      %v1339 = vrcp.pop %v1336
      %v1340 = vmul.f32 1.0, %v1339
      %v1341 = vtanh.pop %v1311
      %v1342 = vtanh.pop %v1315
      %v1343 = vxor.u32 %v1312, 2147483648
      %v1344 = vxor.u32 %v1316, 2147483648
      %v1345 = vmul.f32 %v1343, 1.442695
      %v1346 = vpow.pop %v1345
      %v1347 = vmul.f32 %v1344, 1.442695
      %v1348 = vpow.pop %v1347
      %v1349 = vadd.f32 %v1346, 1.0
      %v1350 = vadd.f32 %v1348, 1.0
      %v1351 = vrcp.pop %v1349
      %v1352 = vmul.f32 1.0, %v1351
      %v1353 = vrcp.pop %v1350
      %v1354 = vmul.f32 1.0, %v1353
      %v1355 = vmul.f32 %v1338, %v1211
      %v1356 = vmul.f32 %v1340, %v1212
      %v1357 = vmul.f32 %v1326, %v1341
      %v1358 = vmul.f32 %v1328, %v1342
      %v1359 = vadd.f32 %v1355, %v1357
      %v1360 = vadd.f32 %v1356, %v1358
      %v1361 = vtanh.pop %v1359
      %v1362 = vtanh.pop %v1360
      %v1363 = vmul.f32 %v1352, %v1361
      %v1364 = vmul.f32 %v1354, %v1362
      %vm1365 = vcmp.gt.s32.totalorder %v717, 2
      %vm1366 = vcmp.gt.s32.totalorder %v718, 2
      %v1367 = vsel %vm1365, 1, 0
      %v1368 = vsel %vm1366, 1, 0
      %1369 = vset.pattern.permute.xlu0 0
      %1370 = vperm.xlu0 %1369, %v1367
      %v1371 = vpop.permute.xlu0 %1370
      %1372 = vset.pattern.permute.xlu0 0
      %1373 = vperm.xlu0 %1372, %v1368
      %v1374 = vpop.permute.xlu0 %1373
      %vm1375 = vcmp.eq.s32.totalorder %v1371, 1
      %vm1376 = vcmp.eq.s32.totalorder %v1374, 1
      %v1377 = vsel %vm1375, %v1363, %v1209
      %v1378 = vsel %vm1376, %v1364, %v1210
      %v1379 = vsel %vm1375, %v1359, %v1211
      %v1380 = vsel %vm1376, %v1360, %v1212
      %s1381 = scalar_lea.vmem [#allocation2], 192
      %v1382 = vld [vmem:[%s1381] sm:$0xff]
      %v1383 = vld [vmem:[%s1381 + $0x8] sm:$0xff]
      %v1384 = vld [vmem:[%s1381 + $0x10] sm:$0xff]
      %v1385 = vld [vmem:[%s1381 + $0x18] sm:$0xff]
      %v1386 = vld [vmem:[%s1381 + $0x20] sm:$0xff]
      %v1387 = vld [vmem:[%s1381 + $0x28] sm:$0xff]
      %v1388 = vld [vmem:[%s1381 + $0x30] sm:$0xff]
      %v1389 = vld [vmem:[%s1381 + $0x38] sm:$0xff]
      %v1390 = vpack.c.bf16 %v1378, %v1377
      %1391 = vmatprep.subr.bf16.mxu0 %v824
      %1392 = vmatpush1.bf16.msra.mxu0 %v823
      %1393 = vmatprep.subr.bf16.mxu0 %v828
      %1394 = vmatpush1.bf16.msra.mxu0 %v827
      %1395 = vmatprep.subr.bf16.mxu0 %v832
      %1396 = vmatpush1.bf16.msra.mxu0 %v831
      %1397 = vmatprep.subr.bf16.mxu0 %v836
      %1398 = vmatpush1.bf16.msra.mxu0 %v835
      %1399 = vmatprep.subr.bf16.mxu0 %v840
      %1400 = vmatpush1.bf16.msra.mxu0 %v839
      %1401 = vmatprep.subr.bf16.mxu0 %v844
      %1402 = vmatpush1.bf16.msra.mxu0 %v843
      %1403 = vmatprep.subr.bf16.mxu0 %v848
      %1404 = vmatpush1.bf16.msra.mxu0 %v847
      %1405 = vmatprep.subr.bf16.mxu0 %v852
      %1406 = vmatpush1.bf16.msra.mxu0 %v851
      %1407 = vmatprep.subr.bf16.mxu0 0
      %1408 = vmatpush1.bf16.msra.mxu0 0
      %1409 = vmatprep.subr.bf16.mxu0 0
      %1410 = vmatpush1.bf16.msra.mxu0 0
      %1411 = vmatprep.subr.bf16.mxu0 0
      %1412 = vmatpush1.bf16.msra.mxu0 0
      %1413 = vmatprep.subr.bf16.mxu0 0
      %1414 = vmatpush1.bf16.msra.mxu0 0
      %1415 = vmatprep.subr.bf16.mxu0 0
      %1416 = vmatpush1.bf16.msra.mxu0 0
      %1417 = vmatprep.subr.bf16.mxu0 0
      %1418 = vmatpush1.bf16.msra.mxu0 0
      %1419 = vmatprep.subr.bf16.mxu0 0
      %1420 = vmatpush1.bf16.msra.mxu0 0
      %1421 = vmatprep.subr.bf16.mxu0 0
      %1422 = vmatpush1.bf16.msra.mxu0 0
      %1423 = vmatprep.mubr.bf16.mxu0 0
      %1424 = vmatmul.mubr.bf16.gmra.mrb[0].mxu0 %v1390
      %v1425 = vpop.f32.mrb[0].mxu0
      %v1426 = vadd.f32 0.0, %v1425
      %v1427 = vpop.f32.mrb[0].mxu0
      %v1428 = vadd.f32 0.0, %v1427
      %v1429 = vpop.f32.mrb[0].mxu0
      %v1430 = vadd.f32 0.0, %v1429
      %v1431 = vpop.f32.mrb[0].mxu0
      %v1432 = vadd.f32 0.0, %v1431
      %1433 = vdwg.mxu0
      %1434 = vmatprep.subr.bf16.mxu0 %v826
      %1435 = vmatpush1.bf16.msra.mxu0 %v825
      %1436 = vmatprep.subr.bf16.mxu0 %v830
      %1437 = vmatpush1.bf16.msra.mxu0 %v829
      %1438 = vmatprep.subr.bf16.mxu0 %v834
      %1439 = vmatpush1.bf16.msra.mxu0 %v833
      %1440 = vmatprep.subr.bf16.mxu0 %v838
      %1441 = vmatpush1.bf16.msra.mxu0 %v837
      %1442 = vmatprep.subr.bf16.mxu0 %v842
      %1443 = vmatpush1.bf16.msra.mxu0 %v841
      %1444 = vmatprep.subr.bf16.mxu0 %v846
      %1445 = vmatpush1.bf16.msra.mxu0 %v845
      %1446 = vmatprep.subr.bf16.mxu0 %v850
      %1447 = vmatpush1.bf16.msra.mxu0 %v849
      %1448 = vmatprep.subr.bf16.mxu0 %v854
      %1449 = vmatpush1.bf16.msra.mxu0 %v853
      %1450 = vmatprep.subr.bf16.mxu0 0
      %1451 = vmatpush1.bf16.msra.mxu0 0
      %1452 = vmatprep.subr.bf16.mxu0 0
      %1453 = vmatpush1.bf16.msra.mxu0 0
      %1454 = vmatprep.subr.bf16.mxu0 0
      %1455 = vmatpush1.bf16.msra.mxu0 0
      %1456 = vmatprep.subr.bf16.mxu0 0
      %1457 = vmatpush1.bf16.msra.mxu0 0
      %1458 = vmatprep.subr.bf16.mxu0 0
      %1459 = vmatpush1.bf16.msra.mxu0 0
      %1460 = vmatprep.subr.bf16.mxu0 0
      %1461 = vmatpush1.bf16.msra.mxu0 0
      %1462 = vmatprep.subr.bf16.mxu0 0
      %1463 = vmatpush1.bf16.msra.mxu0 0
      %1464 = vmatprep.subr.bf16.mxu0 0
      %1465 = vmatpush1.bf16.msra.mxu0 0
      %1466 = vmatprep.mubr.bf16.mxu0 0
      %1467 = vmatmul.mubr.bf16.gmra.mrb[0].mxu0 %v1390
      %v1468 = vpop.f32.mrb[0].mxu0
      %v1469 = vadd.f32 0.0, %v1468
      %v1470 = vpop.f32.mrb[0].mxu0
      %v1471 = vadd.f32 0.0, %v1470
      %v1472 = vpop.f32.mrb[0].mxu0
      %v1473 = vadd.f32 0.0, %v1472
      %v1474 = vpop.f32.mrb[0].mxu0
      %v1475 = vadd.f32 0.0, %v1474
      %1476 = vdwg.mxu0
      %v1477 = vadd.f32 %v1382, %v1426
      %v1478 = vadd.f32 %v1383, %v1428
      %v1479 = vadd.f32 %v1384, %v1469
      %v1480 = vadd.f32 %v1385, %v1471
      %v1481 = vadd.f32 %v1386, %v1430
      %v1482 = vadd.f32 %v1387, %v1432
      %v1483 = vadd.f32 %v1388, %v1473
      %v1484 = vadd.f32 %v1389, %v1475
      %v1485 = vxor.u32 %v1477, 2147483648
      %v1486 = vxor.u32 %v1481, 2147483648
      %v1487 = vmul.f32 %v1485, 1.442695
      %v1488 = vpow.pop %v1487
      %v1489 = vmul.f32 %v1486, 1.442695
      %v1490 = vpow.pop %v1489
      %v1491 = vadd.f32 %v1488, 1.0
      %v1492 = vadd.f32 %v1490, 1.0
      %v1493 = vrcp.pop %v1491
      %v1494 = vmul.f32 1.0, %v1493
      %v1495 = vrcp.pop %v1492
      %v1496 = vmul.f32 1.0, %v1495
      %v1497 = vxor.u32 %v1478, 2147483648
      %v1498 = vxor.u32 %v1482, 2147483648
      %v1499 = vmul.f32 %v1497, 1.442695
      %v1500 = vpow.pop %v1499
      %v1501 = vmul.f32 %v1498, 1.442695
      %v1502 = vpow.pop %v1501
      %v1503 = vadd.f32 %v1500, 1.0
      %v1504 = vadd.f32 %v1502, 1.0
      %v1505 = vrcp.pop %v1503
      %v1506 = vmul.f32 1.0, %v1505
      %v1507 = vrcp.pop %v1504
      %v1508 = vmul.f32 1.0, %v1507
      %v1509 = vtanh.pop %v1479
      %v1510 = vtanh.pop %v1483
      %v1511 = vxor.u32 %v1480, 2147483648
      %v1512 = vxor.u32 %v1484, 2147483648
      %v1513 = vmul.f32 %v1511, 1.442695
      %v1514 = vpow.pop %v1513
      %v1515 = vmul.f32 %v1512, 1.442695
      %v1516 = vpow.pop %v1515
      %v1517 = vadd.f32 %v1514, 1.0
      %v1518 = vadd.f32 %v1516, 1.0
      %v1519 = vrcp.pop %v1517
      %v1520 = vmul.f32 1.0, %v1519
      %v1521 = vrcp.pop %v1518
      %v1522 = vmul.f32 1.0, %v1521
      %v1523 = vmul.f32 %v1506, %v1379
      %v1524 = vmul.f32 %v1508, %v1380
      %v1525 = vmul.f32 %v1494, %v1509
      %v1526 = vmul.f32 %v1496, %v1510
      %v1527 = vadd.f32 %v1523, %v1525
      %v1528 = vadd.f32 %v1524, %v1526
      %v1529 = vtanh.pop %v1527
      %v1530 = vtanh.pop %v1528
      %v1531 = vmul.f32 %v1520, %v1529
      %v1532 = vmul.f32 %v1522, %v1530
      %vm1533 = vcmp.gt.s32.totalorder %v717, 3
      %vm1534 = vcmp.gt.s32.totalorder %v718, 3
      %v1535 = vsel %vm1533, 1, 0
      %v1536 = vsel %vm1534, 1, 0
      %1537 = vset.pattern.permute.xlu0 0
      %1538 = vperm.xlu0 %1537, %v1535
      %v1539 = vpop.permute.xlu0 %1538
      %1540 = vset.pattern.permute.xlu0 0
      %1541 = vperm.xlu0 %1540, %v1536
      %v1542 = vpop.permute.xlu0 %1541
      %vm1543 = vcmp.eq.s32.totalorder %v1539, 1
      %vm1544 = vcmp.eq.s32.totalorder %v1542, 1
      %v1545 = vsel %vm1543, %v1531, %v1377
      %v1546 = vsel %vm1544, %v1532, %v1378
      %v1547 = vsel %vm1543, %v1527, %v1379
      %v1548 = vsel %vm1544, %v1528, %v1380
      %s1549 = scalar_lea.vmem [#allocation2], 256
      %v1550 = vld [vmem:[%s1549] sm:$0xff]
      %v1551 = vld [vmem:[%s1549 + $0x8] sm:$0xff]
      %v1552 = vld [vmem:[%s1549 + $0x10] sm:$0xff]
      %v1553 = vld [vmem:[%s1549 + $0x18] sm:$0xff]
      %v1554 = vld [vmem:[%s1549 + $0x20] sm:$0xff]
      %v1555 = vld [vmem:[%s1549 + $0x28] sm:$0xff]
      %v1556 = vld [vmem:[%s1549 + $0x30] sm:$0xff]
      %v1557 = vld [vmem:[%s1549 + $0x38] sm:$0xff]
      %v1558 = vpack.c.bf16 %v1546, %v1545
      %1559 = vmatprep.subr.bf16.mxu0 %v824
      %1560 = vmatpush1.bf16.msra.mxu0 %v823
      %1561 = vmatprep.subr.bf16.mxu0 %v828
      %1562 = vmatpush1.bf16.msra.mxu0 %v827
      %1563 = vmatprep.subr.bf16.mxu0 %v832
      %1564 = vmatpush1.bf16.msra.mxu0 %v831
      %1565 = vmatprep.subr.bf16.mxu0 %v836
      %1566 = vmatpush1.bf16.msra.mxu0 %v835
      %1567 = vmatprep.subr.bf16.mxu0 %v840
      %1568 = vmatpush1.bf16.msra.mxu0 %v839
      %1569 = vmatprep.subr.bf16.mxu0 %v844
      %1570 = vmatpush1.bf16.msra.mxu0 %v843
      %1571 = vmatprep.subr.bf16.mxu0 %v848
      %1572 = vmatpush1.bf16.msra.mxu0 %v847
      %1573 = vmatprep.subr.bf16.mxu0 %v852
      %1574 = vmatpush1.bf16.msra.mxu0 %v851
      %1575 = vmatprep.subr.bf16.mxu0 0
      %1576 = vmatpush1.bf16.msra.mxu0 0
      %1577 = vmatprep.subr.bf16.mxu0 0
      %1578 = vmatpush1.bf16.msra.mxu0 0
      %1579 = vmatprep.subr.bf16.mxu0 0
      %1580 = vmatpush1.bf16.msra.mxu0 0
      %1581 = vmatprep.subr.bf16.mxu0 0
      %1582 = vmatpush1.bf16.msra.mxu0 0
      %1583 = vmatprep.subr.bf16.mxu0 0
      %1584 = vmatpush1.bf16.msra.mxu0 0
      %1585 = vmatprep.subr.bf16.mxu0 0
      %1586 = vmatpush1.bf16.msra.mxu0 0
      %1587 = vmatprep.subr.bf16.mxu0 0
      %1588 = vmatpush1.bf16.msra.mxu0 0
      %1589 = vmatprep.subr.bf16.mxu0 0
      %1590 = vmatpush1.bf16.msra.mxu0 0
      %1591 = vmatprep.mubr.bf16.mxu0 0
      %1592 = vmatmul.mubr.bf16.gmra.mrb[0].mxu0 %v1558
      %v1593 = vpop.f32.mrb[0].mxu0
      %v1594 = vadd.f32 0.0, %v1593
      %v1595 = vpop.f32.mrb[0].mxu0
      %v1596 = vadd.f32 0.0, %v1595
      %v1597 = vpop.f32.mrb[0].mxu0
      %v1598 = vadd.f32 0.0, %v1597
      %v1599 = vpop.f32.mrb[0].mxu0
      %v1600 = vadd.f32 0.0, %v1599
      %1601 = vdwg.mxu0
      %1602 = vmatprep.subr.bf16.mxu0 %v826
      %1603 = vmatpush1.bf16.msra.mxu0 %v825
      %1604 = vmatprep.subr.bf16.mxu0 %v830
      %1605 = vmatpush1.bf16.msra.mxu0 %v829
      %1606 = vmatprep.subr.bf16.mxu0 %v834
      %1607 = vmatpush1.bf16.msra.mxu0 %v833
      %1608 = vmatprep.subr.bf16.mxu0 %v838
      %1609 = vmatpush1.bf16.msra.mxu0 %v837
      %1610 = vmatprep.subr.bf16.mxu0 %v842
      %1611 = vmatpush1.bf16.msra.mxu0 %v841
      %1612 = vmatprep.subr.bf16.mxu0 %v846
      %1613 = vmatpush1.bf16.msra.mxu0 %v845
      %1614 = vmatprep.subr.bf16.mxu0 %v850
      %1615 = vmatpush1.bf16.msra.mxu0 %v849
      %1616 = vmatprep.subr.bf16.mxu0 %v854
      %1617 = vmatpush1.bf16.msra.mxu0 %v853
      %1618 = vmatprep.subr.bf16.mxu0 0
      %1619 = vmatpush1.bf16.msra.mxu0 0
      %1620 = vmatprep.subr.bf16.mxu0 0
      %1621 = vmatpush1.bf16.msra.mxu0 0
      %1622 = vmatprep.subr.bf16.mxu0 0
      %1623 = vmatpush1.bf16.msra.mxu0 0
      %1624 = vmatprep.subr.bf16.mxu0 0
      %1625 = vmatpush1.bf16.msra.mxu0 0
      %1626 = vmatprep.subr.bf16.mxu0 0
      %1627 = vmatpush1.bf16.msra.mxu0 0
      %1628 = vmatprep.subr.bf16.mxu0 0
      %1629 = vmatpush1.bf16.msra.mxu0 0
      %1630 = vmatprep.subr.bf16.mxu0 0
      %1631 = vmatpush1.bf16.msra.mxu0 0
      %1632 = vmatprep.subr.bf16.mxu0 0
      %1633 = vmatpush1.bf16.msra.mxu0 0
      %1634 = vmatprep.mubr.bf16.mxu0 0
      %1635 = vmatmul.mubr.bf16.gmra.mrb[0].mxu0 %v1558
      %v1636 = vpop.f32.mrb[0].mxu0
      %v1637 = vadd.f32 0.0, %v1636
      %v1638 = vpop.f32.mrb[0].mxu0
      %v1639 = vadd.f32 0.0, %v1638
      %v1640 = vpop.f32.mrb[0].mxu0
      %v1641 = vadd.f32 0.0, %v1640
      %v1642 = vpop.f32.mrb[0].mxu0
      %v1643 = vadd.f32 0.0, %v1642
      %1644 = vdwg.mxu0
      %v1645 = vadd.f32 %v1550, %v1594
      %v1646 = vadd.f32 %v1551, %v1596
      %v1647 = vadd.f32 %v1552, %v1637
      %v1648 = vadd.f32 %v1553, %v1639
      %v1649 = vadd.f32 %v1554, %v1598
      %v1650 = vadd.f32 %v1555, %v1600
      %v1651 = vadd.f32 %v1556, %v1641
      %v1652 = vadd.f32 %v1557, %v1643
      %v1653 = vxor.u32 %v1645, 2147483648
      %v1654 = vxor.u32 %v1649, 2147483648
      %v1655 = vmul.f32 %v1653, 1.442695
      %v1656 = vpow.pop %v1655
      %v1657 = vmul.f32 %v1654, 1.442695
      %v1658 = vpow.pop %v1657
      %v1659 = vadd.f32 %v1656, 1.0
      %v1660 = vadd.f32 %v1658, 1.0
      %v1661 = vrcp.pop %v1659
      %v1662 = vmul.f32 1.0, %v1661
      %v1663 = vrcp.pop %v1660
      %v1664 = vmul.f32 1.0, %v1663
      %v1665 = vxor.u32 %v1646, 2147483648
      %v1666 = vxor.u32 %v1650, 2147483648
      %v1667 = vmul.f32 %v1665, 1.442695
      %v1668 = vpow.pop %v1667
      %v1669 = vmul.f32 %v1666, 1.442695
      %v1670 = vpow.pop %v1669
      %v1671 = vadd.f32 %v1668, 1.0
      %v1672 = vadd.f32 %v1670, 1.0
      %v1673 = vrcp.pop %v1671
      %v1674 = vmul.f32 1.0, %v1673
      %v1675 = vrcp.pop %v1672
      %v1676 = vmul.f32 1.0, %v1675
      %v1677 = vtanh.pop %v1647
      %v1678 = vtanh.pop %v1651
      %v1679 = vxor.u32 %v1648, 2147483648
      %v1680 = vxor.u32 %v1652, 2147483648
      %v1681 = vmul.f32 %v1679, 1.442695
      %v1682 = vpow.pop %v1681
      %v1683 = vmul.f32 %v1680, 1.442695
      %v1684 = vpow.pop %v1683
      %v1685 = vadd.f32 %v1682, 1.0
      %v1686 = vadd.f32 %v1684, 1.0
      %v1687 = vrcp.pop %v1685
      %v1688 = vmul.f32 1.0, %v1687
      %v1689 = vrcp.pop %v1686
      %v1690 = vmul.f32 1.0, %v1689
      %v1691 = vmul.f32 %v1674, %v1547
      %v1692 = vmul.f32 %v1676, %v1548
      %v1693 = vmul.f32 %v1662, %v1677
      %v1694 = vmul.f32 %v1664, %v1678
      %v1695 = vadd.f32 %v1691, %v1693
      %v1696 = vadd.f32 %v1692, %v1694
      %v1697 = vtanh.pop %v1695
      %v1698 = vtanh.pop %v1696
      %v1699 = vmul.f32 %v1688, %v1697
      %v1700 = vmul.f32 %v1690, %v1698
      %vm1701 = vcmp.gt.s32.totalorder %v717, 4
      %vm1702 = vcmp.gt.s32.totalorder %v718, 4
      %v1703 = vsel %vm1701, 1, 0
      %v1704 = vsel %vm1702, 1, 0
      %1705 = vset.pattern.permute.xlu0 0
      %1706 = vperm.xlu0 %1705, %v1703
      %v1707 = vpop.permute.xlu0 %1706
      %1708 = vset.pattern.permute.xlu0 0
      %1709 = vperm.xlu0 %1708, %v1704
      %v1710 = vpop.permute.xlu0 %1709
      %vm1711 = vcmp.eq.s32.totalorder %v1707, 1
      %vm1712 = vcmp.eq.s32.totalorder %v1710, 1
      %v1713 = vsel %vm1711, %v1699, %v1545
      %v1714 = vsel %vm1712, %v1700, %v1546
      %v1715 = vsel %vm1711, %v1695, %v1547
      %v1716 = vsel %vm1712, %v1696, %v1548
      %s1717 = scalar_lea.vmem [#allocation2], 320
      %v1718 = vld [vmem:[%s1717] sm:$0xff]
      %v1719 = vld [vmem:[%s1717 + $0x8] sm:$0xff]
      %v1720 = vld [vmem:[%s1717 + $0x10] sm:$0xff]
      %v1721 = vld [vmem:[%s1717 + $0x18] sm:$0xff]
      %v1722 = vld [vmem:[%s1717 + $0x20] sm:$0xff]
      %v1723 = vld [vmem:[%s1717 + $0x28] sm:$0xff]
      %v1724 = vld [vmem:[%s1717 + $0x30] sm:$0xff]
      %v1725 = vld [vmem:[%s1717 + $0x38] sm:$0xff]
      %v1726 = vpack.c.bf16 %v1714, %v1713
      %1727 = vmatprep.subr.bf16.mxu0 %v824
      %1728 = vmatpush1.bf16.msra.mxu0 %v823
      %1729 = vmatprep.subr.bf16.mxu0 %v828
      %1730 = vmatpush1.bf16.msra.mxu0 %v827
      %1731 = vmatprep.subr.bf16.mxu0 %v832
      %1732 = vmatpush1.bf16.msra.mxu0 %v831
      %1733 = vmatprep.subr.bf16.mxu0 %v836
      %1734 = vmatpush1.bf16.msra.mxu0 %v835
      %1735 = vmatprep.subr.bf16.mxu0 %v840
      %1736 = vmatpush1.bf16.msra.mxu0 %v839
      %1737 = vmatprep.subr.bf16.mxu0 %v844
      %1738 = vmatpush1.bf16.msra.mxu0 %v843
      %1739 = vmatprep.subr.bf16.mxu0 %v848
      %1740 = vmatpush1.bf16.msra.mxu0 %v847
      %1741 = vmatprep.subr.bf16.mxu0 %v852
      %1742 = vmatpush1.bf16.msra.mxu0 %v851
      %1743 = vmatprep.subr.bf16.mxu0 0
      %1744 = vmatpush1.bf16.msra.mxu0 0
      %1745 = vmatprep.subr.bf16.mxu0 0
      %1746 = vmatpush1.bf16.msra.mxu0 0
      %1747 = vmatprep.subr.bf16.mxu0 0
      %1748 = vmatpush1.bf16.msra.mxu0 0
      %1749 = vmatprep.subr.bf16.mxu0 0
      %1750 = vmatpush1.bf16.msra.mxu0 0
      %1751 = vmatprep.subr.bf16.mxu0 0
      %1752 = vmatpush1.bf16.msra.mxu0 0
      %1753 = vmatprep.subr.bf16.mxu0 0
      %1754 = vmatpush1.bf16.msra.mxu0 0
      %1755 = vmatprep.subr.bf16.mxu0 0
      %1756 = vmatpush1.bf16.msra.mxu0 0
      %1757 = vmatprep.subr.bf16.mxu0 0
      %1758 = vmatpush1.bf16.msra.mxu0 0
      %1759 = vmatprep.mubr.bf16.mxu0 0
      %1760 = vmatmul.mubr.bf16.gmra.mrb[0].mxu0 %v1726
      %v1761 = vpop.f32.mrb[0].mxu0
      %v1762 = vadd.f32 0.0, %v1761
      %v1763 = vpop.f32.mrb[0].mxu0
      %v1764 = vadd.f32 0.0, %v1763
      %v1765 = vpop.f32.mrb[0].mxu0
      %v1766 = vadd.f32 0.0, %v1765
      %v1767 = vpop.f32.mrb[0].mxu0
      %v1768 = vadd.f32 0.0, %v1767
      %1769 = vdwg.mxu0
      %1770 = vmatprep.subr.bf16.mxu0 %v826
      %1771 = vmatpush1.bf16.msra.mxu0 %v825
      %1772 = vmatprep.subr.bf16.mxu0 %v830
      %1773 = vmatpush1.bf16.msra.mxu0 %v829
      %1774 = vmatprep.subr.bf16.mxu0 %v834
      %1775 = vmatpush1.bf16.msra.mxu0 %v833
      %1776 = vmatprep.subr.bf16.mxu0 %v838
      %1777 = vmatpush1.bf16.msra.mxu0 %v837
      %1778 = vmatprep.subr.bf16.mxu0 %v842
      %1779 = vmatpush1.bf16.msra.mxu0 %v841
      %1780 = vmatprep.subr.bf16.mxu0 %v846
      %1781 = vmatpush1.bf16.msra.mxu0 %v845
      %1782 = vmatprep.subr.bf16.mxu0 %v850
      %1783 = vmatpush1.bf16.msra.mxu0 %v849
      %1784 = vmatprep.subr.bf16.mxu0 %v854
      %1785 = vmatpush1.bf16.msra.mxu0 %v853
      %1786 = vmatprep.subr.bf16.mxu0 0
      %1787 = vmatpush1.bf16.msra.mxu0 0
      %1788 = vmatprep.subr.bf16.mxu0 0
      %1789 = vmatpush1.bf16.msra.mxu0 0
      %1790 = vmatprep.subr.bf16.mxu0 0
      %1791 = vmatpush1.bf16.msra.mxu0 0
      %1792 = vmatprep.subr.bf16.mxu0 0
      %1793 = vmatpush1.bf16.msra.mxu0 0
      %1794 = vmatprep.subr.bf16.mxu0 0
      %1795 = vmatpush1.bf16.msra.mxu0 0
      %1796 = vmatprep.subr.bf16.mxu0 0
      %1797 = vmatpush1.bf16.msra.mxu0 0
      %1798 = vmatprep.subr.bf16.mxu0 0
      %1799 = vmatpush1.bf16.msra.mxu0 0
      %1800 = vmatprep.subr.bf16.mxu0 0
      %1801 = vmatpush1.bf16.msra.mxu0 0
      %1802 = vmatprep.mubr.bf16.mxu0 0
      %1803 = vmatmul.mubr.bf16.gmra.mrb[0].mxu0 %v1726
      %v1804 = vpop.f32.mrb[0].mxu0
      %v1805 = vadd.f32 0.0, %v1804
      %v1806 = vpop.f32.mrb[0].mxu0
      %v1807 = vadd.f32 0.0, %v1806
      %v1808 = vpop.f32.mrb[0].mxu0
      %v1809 = vadd.f32 0.0, %v1808
      %v1810 = vpop.f32.mrb[0].mxu0
      %v1811 = vadd.f32 0.0, %v1810
      %1812 = vdwg.mxu0
      %v1813 = vadd.f32 %v1718, %v1762
      %v1814 = vadd.f32 %v1719, %v1764
      %v1815 = vadd.f32 %v1720, %v1805
      %v1816 = vadd.f32 %v1721, %v1807
      %v1817 = vadd.f32 %v1722, %v1766
      %v1818 = vadd.f32 %v1723, %v1768
      %v1819 = vadd.f32 %v1724, %v1809
      %v1820 = vadd.f32 %v1725, %v1811
      %v1821 = vxor.u32 %v1813, 2147483648
      %v1822 = vxor.u32 %v1817, 2147483648
      %v1823 = vmul.f32 %v1821, 1.442695
      %v1824 = vpow.pop %v1823
      %v1825 = vmul.f32 %v1822, 1.442695
      %v1826 = vpow.pop %v1825
      %v1827 = vadd.f32 %v1824, 1.0
      %v1828 = vadd.f32 %v1826, 1.0
      %v1829 = vrcp.pop %v1827
      %v1830 = vmul.f32 1.0, %v1829
      %v1831 = vrcp.pop %v1828
      %v1832 = vmul.f32 1.0, %v1831
      %v1833 = vxor.u32 %v1814, 2147483648
      %v1834 = vxor.u32 %v1818, 2147483648
      %v1835 = vmul.f32 %v1833, 1.442695
      %v1836 = vpow.pop %v1835
      %v1837 = vmul.f32 %v1834, 1.442695
      %v1838 = vpow.pop %v1837
      %v1839 = vadd.f32 %v1836, 1.0
      %v1840 = vadd.f32 %v1838, 1.0
      %v1841 = vrcp.pop %v1839
      %v1842 = vmul.f32 1.0, %v1841
      %v1843 = vrcp.pop %v1840
      %v1844 = vmul.f32 1.0, %v1843
      %v1845 = vtanh.pop %v1815
      %v1846 = vtanh.pop %v1819
      %v1847 = vxor.u32 %v1816, 2147483648
      %v1848 = vxor.u32 %v1820, 2147483648
      %v1849 = vmul.f32 %v1847, 1.442695
      %v1850 = vpow.pop %v1849
      %v1851 = vmul.f32 %v1848, 1.442695
      %v1852 = vpow.pop %v1851
      %v1853 = vadd.f32 %v1850, 1.0
      %v1854 = vadd.f32 %v1852, 1.0
      %v1855 = vrcp.pop %v1853
      %v1856 = vmul.f32 1.0, %v1855
      %v1857 = vrcp.pop %v1854
      %v1858 = vmul.f32 1.0, %v1857
      %v1859 = vmul.f32 %v1842, %v1715
      %v1860 = vmul.f32 %v1844, %v1716
      %v1861 = vmul.f32 %v1830, %v1845
      %v1862 = vmul.f32 %v1832, %v1846
      %v1863 = vadd.f32 %v1859, %v1861
      %v1864 = vadd.f32 %v1860, %v1862
      %v1865 = vtanh.pop %v1863
      %v1866 = vtanh.pop %v1864
      %v1867 = vmul.f32 %v1856, %v1865
      %v1868 = vmul.f32 %v1858, %v1866
      %vm1869 = vcmp.gt.s32.totalorder %v717, 5
      %vm1870 = vcmp.gt.s32.totalorder %v718, 5
      %v1871 = vsel %vm1869, 1, 0
      %v1872 = vsel %vm1870, 1, 0
      %1873 = vset.pattern.permute.xlu0 0
      %1874 = vperm.xlu0 %1873, %v1871
      %v1875 = vpop.permute.xlu0 %1874
      %1876 = vset.pattern.permute.xlu0 0
      %1877 = vperm.xlu0 %1876, %v1872
      %v1878 = vpop.permute.xlu0 %1877
      %vm1879 = vcmp.eq.s32.totalorder %v1875, 1
      %vm1880 = vcmp.eq.s32.totalorder %v1878, 1
      %v1881 = vsel %vm1879, %v1867, %v1713
      %v1882 = vsel %vm1880, %v1868, %v1714
      %v1883 = vpack.c.bf16 %v1882, %v1881
      %v1885 = vunpack.c.l.b16 %v1883
      %v1886 = vunpack.c.h.b16 %v1883
      %v1887 = vpack.c.b16 %v1885, %v1885
      %v1888 = vpack.c.b16 %v1886, %v1886
      %1891 = vst [vmem:[%s341] sm:$0xf] %v1887
      %1892 = vst [vmem:[%s341 + $0x4] sm:$0xf] %v1888
      %s1893 = smul.u32 2, %s21
      %p1894 = scmp.lt.s32.totalorder %s20, 1
      %s1895 = scalar_select %p1894, %s20, 1
      %p1896 = scmp.lt.s32.totalorder %s1893, 1
      %s1897 = scalar_select %p1896, %s1893, 1
      %s1898 = smul.addr %s1895, 2
      %s1899 = sadd.s32 %s1897, %s1898
      %s1900 = smul.addr %s1899, 4
      %s1901 = scalar_lea.vmem %s5, %s1900
      // Predicated region
      $region41: #{bilstm_crf_forward.3} parent=39 // pred_check
        %p1902 = pneg %p180
      $region42: #{bilstm_crf_forward.3} parent=39 // pred_check_branch
        %1904 = sbr.rel (%p1902) target = $region44
      $region43: #{bilstm_crf_forward.3} parent=39 // pred_region
        %s1905 = smul.u32 2, %s21
      $region44: #{bilstm_crf_forward.3} parent=39 // pred_fallthru
        _
    $region40: #{bilstm_crf_forward.3} parent=5 // pred_fallthru
      _
    %p1906 = scmp.le.s32.totalorder 2, %s11
    // Predicated region
    $region45: #{bilstm_crf_forward.3} parent=5 // pred_check
      %p1907 = pneg %p1906
    $region46: #{bilstm_crf_forward.3} parent=5 // pred_check_branch
      %1909 = sbr.rel (%p1907) target = $region48
    $region47: #{bilstm_crf_forward.3} parent=5 // pred_region
      %s1910 = ssub.s32 %s11, 2
      // Predicated region
      $region49: #{bilstm_crf_forward.3} parent=47 // pred_check
        %p1911 = pneg %p186
      $region50: #{bilstm_crf_forward.3} parent=47 // pred_check_branch
        %1913 = sbr.rel (%p1911) target = $region52
      $region51: #{bilstm_crf_forward.3} parent=47 // pred_region
        %s1914 = smul.u32 2, %s23
        %p1915 = scmp.lt.s32.totalorder %s22, 1
        %s1916 = scalar_select %p1915, %s22, 1
        %p1917 = scmp.lt.s32.totalorder %s1914, 1
        %s1918 = scalar_select %p1917, %s1914, 1
        %s1919 = smul.addr %s1916, 2
        %s1920 = sadd.s32 %s1918, %s1919
        %s1921 = smul.addr %s1920, 4
        %s1922 = scalar_lea.vmem %s5, %s1921
      $region52: #{bilstm_crf_forward.3} parent=47 // pred_fallthru
        _
    $region48: #{bilstm_crf_forward.3} parent=5 // pred_fallthru
      _
  $region6: #{bilstm_crf_forward.3} parent=0 // loop_footer
    %s15 = sadd.s32 1, %s11
  $region7: #{bilstm_crf_forward.3} parent=0 // loop_footer_branch
    %10 = sbr.rel target = $region3
  $region8: #{bilstm_crf_forward.3} parent=0 // loop_exit
    _

// kernel: bilstm_crf_forward.5
$region0: #{bilstm_crf_forward.5}
  #allocation0 [shape = 'u32[]', space=smem, size = 0x4, offset = 0x4, fixed_abs, tag = 'smem constant byte address 0x4 - core index']
  #allocation1 [shape = 'u32[144,128]{1,0:T(1,128)}', space=vmem, size = 0x12000, scoped, tag = 'internal scratch']
  %s0 = inlined_call_operand.vmem [shape: bf16[16,32], index: 0, kind: input, shape index: {}]
  %s1 = inlined_call_operand.vmem [shape: bf16[32,128], index: 1, kind: input, shape index: {}]
  %s2 = inlined_call_operand.vmem [shape: f32[1,128], index: 2, kind: input, shape index: {}]
  %s3 = inlined_call_operand.vmem [shape: bf16[128,128], index: 3, kind: input, shape index: {}]
  %s4 = inlined_call_operand.vmem [shape: f32[1,128], index: 4, kind: input, shape index: {}]
  %s5 = inlined_call_operand.vmem [shape: f32[16,128], index: 5, kind: output, shape index: {}]
  %s6 = sld [smem:[#allocation0]]
  $region30: #{bilstm_crf_forward.5} parent=0
    _
  %s8 = ssub.s32 1, %s6
  %s9 = scalar_select 0, %s8, %s6
  // Predicated region
  $region2: #{bilstm_crf_forward.5} parent=0 // pred_check
    _
  $region3: #{bilstm_crf_forward.5} parent=0 // pred_check_branch
    %11 = sbr.rel (0) target = $region5
  $region4: #{bilstm_crf_forward.5} parent=0 // pred_region
    _
  $region5: #{bilstm_crf_forward.5} parent=0 // pred_fallthru
    _
  // Predicated region
  $region6: #{bilstm_crf_forward.5} parent=0 // pred_check
    _
  $region7: #{bilstm_crf_forward.5} parent=0 // pred_check_branch
    %13 = sbr.rel (0) target = $region9
  $region8: #{bilstm_crf_forward.5} parent=0 // pred_region
    _
  $region9: #{bilstm_crf_forward.5} parent=0 // pred_fallthru
    _
  // Predicated region
  $region10: #{bilstm_crf_forward.5} parent=0 // pred_check
    _
  $region11: #{bilstm_crf_forward.5} parent=0 // pred_check_branch
    %15 = sbr.rel (0) target = $region13
  $region12: #{bilstm_crf_forward.5} parent=0 // pred_region
    _
  $region13: #{bilstm_crf_forward.5} parent=0 // pred_fallthru
    _
  // Predicated region
  $region14: #{bilstm_crf_forward.5} parent=0 // pred_check
    _
  $region15: #{bilstm_crf_forward.5} parent=0 // pred_check_branch
    %17 = sbr.rel (0) target = $region17
  $region16: #{bilstm_crf_forward.5} parent=0 // pred_region
    _
  $region17: #{bilstm_crf_forward.5} parent=0 // pred_fallthru
    _
  // Predicated region
  $region18: #{bilstm_crf_forward.5} parent=0 // pred_check
    _
  $region19: #{bilstm_crf_forward.5} parent=0 // pred_check_branch
    %19 = sbr.rel (0) target = $region21
  $region20: #{bilstm_crf_forward.5} parent=0 // pred_region
    _
  $region21: #{bilstm_crf_forward.5} parent=0 // pred_fallthru
    _
  %v21 = vld [vmem:[%s0] sm:$0xf]
  %v22 = vld [vmem:[%s0 + $0x4] sm:$0xf]
  %v23 = vld [vmem:[%s1] sm:$0xf]
  %v24 = vld [vmem:[%s1 + $0x4] sm:$0xf]
  %v25 = vld [vmem:[%s1 + $0x8] sm:$0xf]
  %v26 = vld [vmem:[%s1 + $0xc] sm:$0xf]
  %v27 = vld [vmem:[%s2] sm:$0x1]
  %v29 = vlaneseq
  %v30 = vshrl.u32 %v29, 7
  %v31 = vsub.s32 0, %v30
  %v32 = vrot.slane %v27, %v31
  %v36 = vunpack.c.l.b16 %v21
  %v37 = vunpack.c.l.b16 %v22
  %v38 = vpack.c.b16 %v37, %v36
  %v43 = vunpack.c.l.b16 %v23
  %v44 = vunpack.c.l.b16 %v24
  %v45 = vunpack.c.l.b16 %v25
  %v46 = vunpack.c.l.b16 %v26
  %v47 = vpack.c.b16 %v44, %v43
  %v48 = vpack.c.b16 %v46, %v45
  %vm51 = vcmask 261120
  %v53 = vsel %vm51, %v38, 0
  %55 = vmatprep.subr.bf16.mxu0 0
  %56 = vmatpush1.bf16.msra.mxu0 %v47
  %57 = vmatprep.subr.bf16.mxu0 0
  %58 = vmatpush1.bf16.msra.mxu0 %v48
  %59 = vmatprep.subr.bf16.mxu0 0
  %60 = vmatpush1.bf16.msra.mxu0 0
  %61 = vmatprep.subr.bf16.mxu0 0
  %62 = vmatpush1.bf16.msra.mxu0 0
  %63 = vmatprep.subr.bf16.mxu0 0
  %64 = vmatpush1.bf16.msra.mxu0 0
  %65 = vmatprep.subr.bf16.mxu0 0
  %66 = vmatpush1.bf16.msra.mxu0 0
  %67 = vmatprep.subr.bf16.mxu0 0
  %68 = vmatpush1.bf16.msra.mxu0 0
  %69 = vmatprep.subr.bf16.mxu0 0
  %70 = vmatpush1.bf16.msra.mxu0 0
  %71 = vmatprep.subr.bf16.mxu0 0
  %72 = vmatpush1.bf16.msra.mxu0 0
  %73 = vmatprep.subr.bf16.mxu0 0
  %74 = vmatpush1.bf16.msra.mxu0 0
  %75 = vmatprep.subr.bf16.mxu0 0
  %76 = vmatpush1.bf16.msra.mxu0 0
  %77 = vmatprep.subr.bf16.mxu0 0
  %78 = vmatpush1.bf16.msra.mxu0 0
  %79 = vmatprep.subr.bf16.mxu0 0
  %80 = vmatpush1.bf16.msra.mxu0 0
  %81 = vmatprep.subr.bf16.mxu0 0
  %82 = vmatpush1.bf16.msra.mxu0 0
  %83 = vmatprep.subr.bf16.mxu0 0
  %84 = vmatpush1.bf16.msra.mxu0 0
  %85 = vmatprep.subr.bf16.mxu0 0
  %86 = vmatpush1.bf16.msra.mxu0 0
  %87 = vmatprep.mubr.bf16.mxu0 0
  %88 = vmatmul.mubr.bf16.gmra.mrb[0].mxu0 %v53
  %v89 = vpop.f32.mrb[0].mxu0
  %v90 = vadd.f32 %v32, %v89
  %v91 = vpop.f32.mrb[0].mxu0
  %v92 = vpop.f32.mrb[0].mxu0
  %v93 = vadd.f32 %v32, %v92
  %v94 = vpop.f32.mrb[0].mxu0
  %95 = vdwg.mxu0
  %v96 = vtanh.pop %v90
  %v97 = vtanh.pop %v93
  %v98 = vpack.c.bf16 %v97, %v96
  %v99 = vld [vmem:[%s3] sm:$0xf]
  %v100 = vld [vmem:[%s3 + $0x4] sm:$0xf]
  %v101 = vld [vmem:[%s3 + $0x8] sm:$0xf]
  %v102 = vld [vmem:[%s3 + $0xc] sm:$0xf]
  %v103 = vld [vmem:[%s3 + $0x10] sm:$0xf]
  %v104 = vld [vmem:[%s3 + $0x14] sm:$0xf]
  %v105 = vld [vmem:[%s3 + $0x18] sm:$0xf]
  %v106 = vld [vmem:[%s3 + $0x1c] sm:$0xf]
  %v107 = vld [vmem:[%s3 + $0x20] sm:$0xf]
  %v108 = vld [vmem:[%s3 + $0x24] sm:$0xf]
  %v109 = vld [vmem:[%s3 + $0x28] sm:$0xf]
  %v110 = vld [vmem:[%s3 + $0x2c] sm:$0xf]
  %v111 = vld [vmem:[%s3 + $0x30] sm:$0xf]
  %v112 = vld [vmem:[%s3 + $0x34] sm:$0xf]
  %v113 = vld [vmem:[%s3 + $0x38] sm:$0xf]
  %v114 = vld [vmem:[%s3 + $0x3c] sm:$0xf]
  %v115 = vld [vmem:[%s4] sm:$0x1]
  %v117 = vlaneseq
  %v118 = vshrl.u32 %v117, 7
  %v119 = vsub.s32 0, %v118
  %v120 = vrot.slane %v115, %v119
  %v138 = vunpack.c.l.b16 %v99
  %v139 = vunpack.c.l.b16 %v100
  %v140 = vunpack.c.l.b16 %v101
  %v141 = vunpack.c.l.b16 %v102
  %v142 = vunpack.c.l.b16 %v103
  %v143 = vunpack.c.l.b16 %v104
  %v144 = vunpack.c.l.b16 %v105
  %v145 = vunpack.c.l.b16 %v106
  %v146 = vunpack.c.l.b16 %v107
  %v147 = vunpack.c.l.b16 %v108
  %v148 = vunpack.c.l.b16 %v109
  %v149 = vunpack.c.l.b16 %v110
  %v150 = vunpack.c.l.b16 %v111
  %v151 = vunpack.c.l.b16 %v112
  %v152 = vunpack.c.l.b16 %v113
  %v153 = vunpack.c.l.b16 %v114
  %v154 = vpack.c.b16 %v139, %v138
  %v155 = vpack.c.b16 %v141, %v140
  %v156 = vpack.c.b16 %v143, %v142
  %v157 = vpack.c.b16 %v145, %v144
  %v158 = vpack.c.b16 %v147, %v146
  %v159 = vpack.c.b16 %v149, %v148
  %v160 = vpack.c.b16 %v151, %v150
  %v161 = vpack.c.b16 %v153, %v152
  %170 = vmatprep.subr.bf16.mxu0 0
  %171 = vmatpush1.bf16.msra.mxu0 %v154
  %172 = vmatprep.subr.bf16.mxu0 0
  %173 = vmatpush1.bf16.msra.mxu0 %v155
  %174 = vmatprep.subr.bf16.mxu0 0
  %175 = vmatpush1.bf16.msra.mxu0 %v156
  %176 = vmatprep.subr.bf16.mxu0 0
  %177 = vmatpush1.bf16.msra.mxu0 %v157
  %178 = vmatprep.subr.bf16.mxu0 0
  %179 = vmatpush1.bf16.msra.mxu0 %v158
  %180 = vmatprep.subr.bf16.mxu0 0
  %181 = vmatpush1.bf16.msra.mxu0 %v159
  %182 = vmatprep.subr.bf16.mxu0 0
  %183 = vmatpush1.bf16.msra.mxu0 %v160
  %184 = vmatprep.subr.bf16.mxu0 0
  %185 = vmatpush1.bf16.msra.mxu0 %v161
  %186 = vmatprep.subr.bf16.mxu0 0
  %187 = vmatpush1.bf16.msra.mxu0 0
  %188 = vmatprep.subr.bf16.mxu0 0
  %189 = vmatpush1.bf16.msra.mxu0 0
  %190 = vmatprep.subr.bf16.mxu0 0
  %191 = vmatpush1.bf16.msra.mxu0 0
  %192 = vmatprep.subr.bf16.mxu0 0
  %193 = vmatpush1.bf16.msra.mxu0 0
  %194 = vmatprep.subr.bf16.mxu0 0
  %195 = vmatpush1.bf16.msra.mxu0 0
  %196 = vmatprep.subr.bf16.mxu0 0
  %197 = vmatpush1.bf16.msra.mxu0 0
  %198 = vmatprep.subr.bf16.mxu0 0
  %199 = vmatpush1.bf16.msra.mxu0 0
  %200 = vmatprep.subr.bf16.mxu0 0
  %201 = vmatpush1.bf16.msra.mxu0 0
  %202 = vmatprep.mubr.bf16.mxu0 0
  %203 = vmatmul.mubr.bf16.gmra.mrb[0].mxu0 %v98
  %v204 = vpop.f32.mrb[0].mxu0
  %v205 = vadd.f32 %v120, %v204
  %v206 = vpop.f32.mrb[0].mxu0
  %v207 = vpop.f32.mrb[0].mxu0
  %v208 = vadd.f32 %v120, %v207
  %v209 = vpop.f32.mrb[0].mxu0
  %210 = vdwg.mxu0
  %211 = vst [vmem:[%s5] sm:$0xff] %v205
  %212 = vst [vmem:[%s5 + $0x8] sm:$0xff] %v208
  // Predicated region
  $region22: #{bilstm_crf_forward.5} parent=0 // pred_check
    _
  $region23: #{bilstm_crf_forward.5} parent=0 // pred_check_branch
    %214 = sbr.rel (0) target = $region25
  $region24: #{bilstm_crf_forward.5} parent=0 // pred_region
    _
  $region25: #{bilstm_crf_forward.5} parent=0 // pred_fallthru
    _
  // Predicated region
  $region26: #{bilstm_crf_forward.5} parent=0 // pred_check
    _
  $region27: #{bilstm_crf_forward.5} parent=0 // pred_check_branch
    %216 = sbr.rel (0) target = $region29
  $region28: #{bilstm_crf_forward.5} parent=0 // pred_region
    _
  $region29: #{bilstm_crf_forward.5} parent=0 // pred_fallthru
    _

// kernel: bilstm_crf_forward.4
$region0: #{bilstm_crf_forward.4}
  #allocation0 [shape = 'u32[]', space=smem, size = 0x4, offset = 0x4, fixed_abs, tag = 'smem constant byte address 0x4 - core index']
  #allocation1 [shape = 'u32[144,128]{1,0:T(1,128)}', space=vmem, size = 0x12000, scoped, tag = 'internal scratch']
  #allocation2 [shape = 'f32[8,16,512]{2,1,0:T(8,128)}', space=vmem, size = 0x40000, scoped, tag = 'scratch operand']
  %s0 = inlined_call_operand.vmem [shape: bf16[2,8,16,48], index: 0, kind: input, shape index: {}]
  %s1 = inlined_call_operand.vmem [shape: s32[16,1], index: 1, kind: input, shape index: {}]
  %s2 = inlined_call_operand.vmem [shape: bf16[2,48,512], index: 2, kind: input, shape index: {}]
  %s3 = inlined_call_operand.vmem [shape: bf16[2,128,512], index: 3, kind: input, shape index: {}]
  %s4 = inlined_call_operand.vmem [shape: f32[2,1,512], index: 4, kind: input, shape index: {}]
  %s5 = inlined_call_operand.vmem [shape: bf16[2,8,16,128], index: 5, kind: output, shape index: {}]
  %s6 = sld [smem:[#allocation0]]
  $region53: #{bilstm_crf_forward.4} parent=0
    _
  %s8 = ssub.s32 1, %s6
  %s9 = scalar_select 0, %s8, %s6
  loop: start=0, step=1, limit=4
  $region2: #{bilstm_crf_forward.4} parent=0 // loop_pre_header
    _
  $region3: #{bilstm_crf_forward.4} parent=0 // loop_header
    %s11 = sphi 0, %s15
    %p12 = scmp.ge.s32.totalorder %s11, 4
    %s18 = sphi 0, %s30
    %s19 = sphi 0, %s26
    %s20 = sphi 0, %s18
    %s21 = sphi 0, %s19
    %s22 = sphi 0, %s20
    %s23 = sphi 0, %s21
    %s35 = sphi 0, %s37
    %s38 = sphi 0, %s35
    %s39 = sphi 0, %s38
    %s55 = sphi 0, %s39
    %s61 = sphi 0, %s63
    %s64 = sphi 0, %s61
    %s65 = sphi 0, %s64
    %s81 = sphi 0, %s65
    %s87 = sphi 0, %s89
    %s90 = sphi 0, %s87
    %s91 = sphi 0, %s90
    %s107 = sphi 0, %s91
    %s113 = sphi 0, %s115
    %s116 = sphi 0, %s113
    %s117 = sphi 0, %s116
    %s133 = sphi 0, %s117
    %s139 = sphi 0, %s141
    %s142 = sphi 0, %s139
    %s143 = sphi 0, %s142
    %s159 = sphi 0, %s143
    %s167 = sphi 0, %s169
    %s170 = sphi 0, %s167
    %s171 = sphi 0, %s170
    %s187 = sphi 0, %s171
  $region4: #{bilstm_crf_forward.4} parent=0 // loop_header_branch
    %14 = sbr.rel (%p12) target = $region8
  $region5: #{bilstm_crf_forward.4} parent=0 // loop_body
    %s16 = ssub.s32 %s11, 1
    %s17 = ssub.s32 %s11, 2
    %s24 = sadd.s32 1, %s19
    %p25 = scmp.ge.s32.totalorder %s24, 1
    %s26 = scalar_select %p25, 0, %s24
    %s27 = sadd.s32 1, %s18
    %s28 = scalar_select %p25, %s27, %s18
    %p29 = scmp.ge.s32.totalorder %s28, 2
    %s30 = scalar_select %p29, 0, %s28
    %s31 = ssub.s32 %s18, %s30
    %s32 = ssub.s32 %s19, %s26
    %s33 = sor.u32 %s31, %s32
    %p34 = scmp.eq.s32.totalorder %s33, 0
    %s36 = sadd.s32 %s35, 1
    %s37 = scalar_select %p34, %s35, %s36
    %p40 = pneg %p34
    %p41 = scmp.eq.s32.totalorder %s11, 1
    %p42 = por %p40, %p41
    %p43 = scmp.ne.s32.totalorder %s35, %s38
    %p44 = scmp.eq.s32.totalorder %s11, 0
    %p45 = por %p43, %p44
    %p46 = scmp.ne.s32.totalorder %s35, %s38
    %p47 = scmp.eq.s32.totalorder %s16, 1
    %p48 = por %p46, %p47
    %p49 = scmp.ne.s32.totalorder %s38, %s39
    %p50 = scmp.eq.s32.totalorder %s16, 0
    %p51 = por %p49, %p50
    %p52 = scmp.ne.s32.totalorder %s38, %s39
    %p53 = scmp.eq.s32.totalorder %s17, 1
    %p54 = por %p52, %p53
    %p56 = scmp.ne.s32.totalorder %s39, %s55
    %p57 = scmp.eq.s32.totalorder %s17, 0
    %p58 = por %p56, %p57
    %s59 = ssub.s32 %s19, %s26
    %p60 = scmp.eq.s32.totalorder %s59, 0
    %s62 = sadd.s32 %s61, 1
    %s63 = scalar_select %p60, %s61, %s62
    %p66 = pneg %p60
    %p67 = scmp.eq.s32.totalorder %s11, 1
    %p68 = por %p66, %p67
    %p69 = scmp.ne.s32.totalorder %s61, %s64
    %p70 = scmp.eq.s32.totalorder %s11, 0
    %p71 = por %p69, %p70
    %p72 = scmp.ne.s32.totalorder %s61, %s64
    %p73 = scmp.eq.s32.totalorder %s16, 1
    %p74 = por %p72, %p73
    %p75 = scmp.ne.s32.totalorder %s64, %s65
    %p76 = scmp.eq.s32.totalorder %s16, 0
    %p77 = por %p75, %p76
    %p78 = scmp.ne.s32.totalorder %s64, %s65
    %p79 = scmp.eq.s32.totalorder %s17, 1
    %p80 = por %p78, %p79
    %p82 = scmp.ne.s32.totalorder %s65, %s81
    %p83 = scmp.eq.s32.totalorder %s17, 0
    %p84 = por %p82, %p83
    %s85 = ssub.s32 %s18, %s30
    %p86 = scmp.eq.s32.totalorder %s85, 0
    %s88 = sadd.s32 %s87, 1
    %s89 = scalar_select %p86, %s87, %s88
    %p92 = pneg %p86
    %p93 = scmp.eq.s32.totalorder %s11, 1
    %p94 = por %p92, %p93
    %p95 = scmp.ne.s32.totalorder %s87, %s90
    %p96 = scmp.eq.s32.totalorder %s11, 0
    %p97 = por %p95, %p96
    %p98 = scmp.ne.s32.totalorder %s87, %s90
    %p99 = scmp.eq.s32.totalorder %s16, 1
    %p100 = por %p98, %p99
    %p101 = scmp.ne.s32.totalorder %s90, %s91
    %p102 = scmp.eq.s32.totalorder %s16, 0
    %p103 = por %p101, %p102
    %p104 = scmp.ne.s32.totalorder %s90, %s91
    %p105 = scmp.eq.s32.totalorder %s17, 1
    %p106 = por %p104, %p105
    %p108 = scmp.ne.s32.totalorder %s91, %s107
    %p109 = scmp.eq.s32.totalorder %s17, 0
    %p110 = por %p108, %p109
    %s111 = ssub.s32 %s18, %s30
    %p112 = scmp.eq.s32.totalorder %s111, 0
    %s114 = sadd.s32 %s113, 1
    %s115 = scalar_select %p112, %s113, %s114
    %p118 = pneg %p112
    %p119 = scmp.eq.s32.totalorder %s11, 1
    %p120 = por %p118, %p119
    %p121 = scmp.ne.s32.totalorder %s113, %s116
    %p122 = scmp.eq.s32.totalorder %s11, 0
    %p123 = por %p121, %p122
    %p124 = scmp.ne.s32.totalorder %s113, %s116
    %p125 = scmp.eq.s32.totalorder %s16, 1
    %p126 = por %p124, %p125
    %p127 = scmp.ne.s32.totalorder %s116, %s117
    %p128 = scmp.eq.s32.totalorder %s16, 0
    %p129 = por %p127, %p128
    %p130 = scmp.ne.s32.totalorder %s116, %s117
    %p131 = scmp.eq.s32.totalorder %s17, 1
    %p132 = por %p130, %p131
    %p134 = scmp.ne.s32.totalorder %s117, %s133
    %p135 = scmp.eq.s32.totalorder %s17, 0
    %p136 = por %p134, %p135
    %s137 = ssub.s32 %s18, %s30
    %p138 = scmp.eq.s32.totalorder %s137, 0
    %s140 = sadd.s32 %s139, 1
    %s141 = scalar_select %p138, %s139, %s140
    %p144 = pneg %p138
    %p145 = scmp.eq.s32.totalorder %s11, 1
    %p146 = por %p144, %p145
    %p147 = scmp.ne.s32.totalorder %s139, %s142
    %p148 = scmp.eq.s32.totalorder %s11, 0
    %p149 = por %p147, %p148
    %p150 = scmp.ne.s32.totalorder %s139, %s142
    %p151 = scmp.eq.s32.totalorder %s16, 1
    %p152 = por %p150, %p151
    %p153 = scmp.ne.s32.totalorder %s142, %s143
    %p154 = scmp.eq.s32.totalorder %s16, 0
    %p155 = por %p153, %p154
    %p156 = scmp.ne.s32.totalorder %s142, %s143
    %p157 = scmp.eq.s32.totalorder %s17, 1
    %p158 = por %p156, %p157
    %p160 = scmp.ne.s32.totalorder %s143, %s159
    %p161 = scmp.eq.s32.totalorder %s17, 0
    %p162 = por %p160, %p161
    %s163 = ssub.s32 %s18, %s30
    %s164 = ssub.s32 %s19, %s26
    %s165 = sor.u32 %s163, %s164
    %p166 = scmp.eq.s32.totalorder %s165, 0
    %s168 = sadd.s32 %s167, 1
    %s169 = scalar_select %p166, %s167, %s168
    %p172 = pneg %p166
    %p173 = scmp.eq.s32.totalorder %s11, 1
    %p174 = por %p172, %p173
    %p175 = scmp.ne.s32.totalorder %s167, %s170
    %p176 = scmp.eq.s32.totalorder %s11, 0
    %p177 = por %p175, %p176
    %p178 = scmp.ne.s32.totalorder %s167, %s170
    %p179 = scmp.eq.s32.totalorder %s16, 1
    %p180 = por %p178, %p179
    %p181 = scmp.ne.s32.totalorder %s170, %s171
    %p182 = scmp.eq.s32.totalorder %s16, 0
    %p183 = por %p181, %p182
    %p184 = scmp.ne.s32.totalorder %s170, %s171
    %p185 = scmp.eq.s32.totalorder %s17, 1
    %p186 = por %p184, %p185
    %p188 = scmp.ne.s32.totalorder %s171, %s187
    %p189 = scmp.eq.s32.totalorder %s17, 0
    %p190 = por %p188, %p189
    %p191 = scmp.le.s32.totalorder 1, %s11
    %p192 = scmp.lt.s32.totalorder %s11, 3
    %p193 = pnand %p191, %p192
    %p194 = pneg %p193
    // Predicated region
    $region9: #{bilstm_crf_forward.4} parent=5 // pred_check
      _
    $region10: #{bilstm_crf_forward.4} parent=5 // pred_check_branch
      %196 = sbr.rel (%p193) target = $region12
    $region11: #{bilstm_crf_forward.4} parent=5 // pred_region
      %s197 = ssub.s32 %s11, 1
      // Predicated region
      $region13: #{bilstm_crf_forward.4} parent=11 // pred_check
        %p198 = pneg %p77
      $region14: #{bilstm_crf_forward.4} parent=11 // pred_check_branch
        %200 = sbr.rel (%p198) target = $region16
      $region15: #{bilstm_crf_forward.4} parent=11 // pred_region
        %s201 = smul.u32 2, %s21
        %p202 = scmp.lt.s32.totalorder %s201, 1
        %s203 = scalar_select %p202, %s201, 1
        %s204 = smul.addr %s203, 8
        %s205 = scalar_lea.vmem %s1, %s204
        %s206 = smul.u32 2, %s21
      $region16: #{bilstm_crf_forward.4} parent=11 // pred_fallthru
        _
    $region12: #{bilstm_crf_forward.4} parent=5 // pred_fallthru
      _
    %p207 = scmp.lt.s32.totalorder %s11, 2
    // Predicated region
    $region17: #{bilstm_crf_forward.4} parent=5 // pred_check
      %p208 = pneg %p207
    $region18: #{bilstm_crf_forward.4} parent=5 // pred_check_branch
      %210 = sbr.rel (%p208) target = $region20
    $region19: #{bilstm_crf_forward.4} parent=5 // pred_region
      // Predicated region
      $region21: #{bilstm_crf_forward.4} parent=19 // pred_check
        %p211 = pneg %p45
      $region22: #{bilstm_crf_forward.4} parent=19 // pred_check_branch
        %213 = sbr.rel (%p211) target = $region24
      $region23: #{bilstm_crf_forward.4} parent=19 // pred_region
        %s214 = smul.u32 2, %s19
        %p215 = scmp.lt.s32.totalorder %s18, 1
        %s216 = scalar_select %p215, %s18, 1
        %p217 = scmp.lt.s32.totalorder %s214, 1
        %s218 = scalar_select %p217, %s214, 1
        %s219 = smul.addr %s216, 16
        %s220 = sadd.s32 %s218, %s219
        %s221 = smul.addr %s220, 4
        %s222 = scalar_lea.vmem %s0, %s221
        %s223 = smul.u32 2, %s19
      $region24: #{bilstm_crf_forward.4} parent=19 // pred_fallthru
        _
      // Predicated region
      $region25: #{bilstm_crf_forward.4} parent=19 // pred_check
        %p224 = pneg %p97
      $region26: #{bilstm_crf_forward.4} parent=19 // pred_check_branch
        %226 = sbr.rel (%p224) target = $region28
      $region27: #{bilstm_crf_forward.4} parent=19 // pred_region
        %p227 = scmp.lt.s32.totalorder %s18, 1
        %s228 = scalar_select %p227, %s18, 1
        %s229 = smul.addr %s228, 24
        %s230 = smul.addr %s229, 4
        %s231 = scalar_lea.vmem %s2, %s230
      $region28: #{bilstm_crf_forward.4} parent=19 // pred_fallthru
        _
      // Predicated region
      $region29: #{bilstm_crf_forward.4} parent=19 // pred_check
        %p232 = pneg %p123
      $region30: #{bilstm_crf_forward.4} parent=19 // pred_check_branch
        %234 = sbr.rel (%p232) target = $region32
      $region31: #{bilstm_crf_forward.4} parent=19 // pred_region
        %p235 = scmp.lt.s32.totalorder %s18, 1
        %s236 = scalar_select %p235, %s18, 1
        %s237 = smul.addr %s236, 64
        %s238 = smul.addr %s237, 4
        %s239 = scalar_lea.vmem %s3, %s238
      $region32: #{bilstm_crf_forward.4} parent=19 // pred_fallthru
        _
      // Predicated region
      $region33: #{bilstm_crf_forward.4} parent=19 // pred_check
        %p240 = pneg %p149
      $region34: #{bilstm_crf_forward.4} parent=19 // pred_check_branch
        %242 = sbr.rel (%p240) target = $region36
      $region35: #{bilstm_crf_forward.4} parent=19 // pred_region
        %p243 = scmp.lt.s32.totalorder %s18, 1
        %s244 = scalar_select %p243, %s18, 1
        %s245 = smul.addr %s244, 4
        %s246 = scalar_lea.vmem %s4, %s245
      $region36: #{bilstm_crf_forward.4} parent=19 // pred_fallthru
        _
    $region20: #{bilstm_crf_forward.4} parent=5 // pred_fallthru
      _
    %p247 = scmp.le.s32.totalorder 1, %s11
    %p248 = scmp.lt.s32.totalorder %s11, 3
    %p249 = pnand %p247, %p248
    %p250 = pneg %p249
    // Predicated region
    $region37: #{bilstm_crf_forward.4} parent=5 // pred_check
      _
    $region38: #{bilstm_crf_forward.4} parent=5 // pred_check_branch
      %252 = sbr.rel (%p249) target = $region40
    $region39: #{bilstm_crf_forward.4} parent=5 // pred_region
      %s253 = ssub.s32 %s11, 1
      %s254 = smul.u32 2, %s21
      %p255 = scmp.lt.s32.totalorder %s20, 1
      %s256 = scalar_select %p255, %s20, 1
      %p257 = scmp.lt.s32.totalorder %s254, 1
      %s258 = scalar_select %p257, %s254, 1
      %s259 = smul.addr %s256, 16
      %s260 = sadd.s32 %s258, %s259
      %s261 = smul.addr %s260, 4
      %s262 = scalar_lea.vmem %s0, %s261
      %p263 = pneg %p51
      %p264 = pneg %p48
      %s265 = smul.u32 2, %s21
      %p266 = scmp.lt.s32.totalorder %s265, 1
      %s267 = scalar_select %p266, %s265, 1
      %s268 = smul.addr %s267, 8
      %s269 = scalar_lea.vmem %s1, %s268
      %p270 = pneg %p77
      %p271 = pneg %p74
      %p272 = scmp.lt.s32.totalorder %s20, 1
      %s273 = scalar_select %p272, %s20, 1
      %s274 = smul.addr %s273, 24
      %s275 = smul.addr %s274, 4
      %s276 = scalar_lea.vmem %s2, %s275
      %p277 = pneg %p103
      %p278 = pneg %p100
      %p279 = scmp.lt.s32.totalorder %s20, 1
      %s280 = scalar_select %p279, %s20, 1
      %s281 = smul.addr %s280, 64
      %s282 = smul.addr %s281, 4
      %s283 = scalar_lea.vmem %s3, %s282
      %p284 = pneg %p129
      %p285 = pneg %p126
      %p286 = scmp.lt.s32.totalorder %s20, 1
      %s287 = scalar_select %p286, %s20, 1
      %s288 = smul.addr %s287, 4
      %s289 = scalar_lea.vmem %s4, %s288
      %p290 = pneg %p155
      %p291 = pneg %p152
      %p292 = pneg %p183
      %p293 = pneg %p180
      %s294 = smul.u32 2, %s21
      %p295 = scmp.lt.s32.totalorder %s20, 1
      %s296 = scalar_select %p295, %s20, 1
      %p297 = scmp.lt.s32.totalorder %s294, 1
      %s298 = scalar_select %p297, %s294, 1
      %s299 = smul.addr %s296, 16
      %s300 = sadd.s32 %s298, %s299
      %s301 = smul.addr %s300, 4
      %s302 = scalar_lea.vmem %s5, %s301
      %s303 = smul.u32 2, %s21
      %p304 = scmp.lt.s32.totalorder %s20, 1
      %s305 = scalar_select %p304, %s20, 1
      %p306 = scmp.lt.s32.totalorder %s303, 1
      %s307 = scalar_select %p306, %s303, 1
      %s308 = smul.addr %s305, 16
      %s309 = sadd.s32 %s307, %s308
      %s310 = smul.addr %s309, 4
      %s311 = scalar_lea.vmem %s0, %s310
      %s312 = smul.u32 2, %s21
      %s313 = smul.u32 2, %s21
      %p314 = scmp.lt.s32.totalorder %s313, 1
      %s315 = scalar_select %p314, %s313, 1
      %s316 = smul.addr %s315, 8
      %s317 = scalar_lea.vmem %s1, %s316
      %s318 = smul.u32 2, %s21
      %p319 = scmp.lt.s32.totalorder %s20, 1
      %s320 = scalar_select %p319, %s20, 1
      %s321 = smul.addr %s320, 24
      %s322 = smul.addr %s321, 4
      %s323 = scalar_lea.vmem %s2, %s322
      %p324 = scmp.lt.s32.totalorder %s20, 1
      %s325 = scalar_select %p324, %s20, 1
      %s326 = smul.addr %s325, 64
      %s327 = smul.addr %s326, 4
      %s328 = scalar_lea.vmem %s3, %s327
      %p329 = scmp.lt.s32.totalorder %s20, 1
      %s330 = scalar_select %p329, %s20, 1
      %s331 = smul.addr %s330, 4
      %s332 = scalar_lea.vmem %s4, %s331
      %s333 = smul.u32 2, %s21
      %p334 = scmp.lt.s32.totalorder %s20, 1
      %s335 = scalar_select %p334, %s20, 1
      %p336 = scmp.lt.s32.totalorder %s333, 1
      %s337 = scalar_select %p336, %s333, 1
      %s338 = smul.addr %s335, 16
      %s339 = sadd.s32 %s337, %s338
      %s340 = smul.addr %s339, 4
      %s341 = scalar_lea.vmem %s5, %s340
      %s342 = smul.u32 2, %s21
      %v344 = vld [vmem:[%s311] sm:$0xf]
      %v345 = vld [vmem:[%s311 + $0x4] sm:$0xf]
      %v346 = vld [vmem:[%s311 + $0x8] sm:$0xf]
      %v347 = vld [vmem:[%s311 + $0xc] sm:$0xf]
      %v348 = vld [vmem:[%s311 + $0x10] sm:$0xf]
      %v349 = vld [vmem:[%s311 + $0x14] sm:$0xf]
      %v350 = vld [vmem:[%s311 + $0x18] sm:$0xf]
      %v351 = vld [vmem:[%s311 + $0x1c] sm:$0xf]
      %v352 = vld [vmem:[%s311 + $0x20] sm:$0xf]
      %v353 = vld [vmem:[%s311 + $0x24] sm:$0xf]
      %v354 = vld [vmem:[%s311 + $0x28] sm:$0xf]
      %v355 = vld [vmem:[%s311 + $0x2c] sm:$0xf]
      %v356 = vld [vmem:[%s311 + $0x30] sm:$0xf]
      %v357 = vld [vmem:[%s311 + $0x34] sm:$0xf]
      %v358 = vld [vmem:[%s311 + $0x38] sm:$0xf]
      %v359 = vld [vmem:[%s311 + $0x3c] sm:$0xf]
      %v360 = vld [vmem:[%s323] sm:$0xff]
      %v361 = vld [vmem:[%s323 + $0x8] sm:$0xff]
      %v362 = vld [vmem:[%s323 + $0x10] sm:$0xff]
      %v363 = vld [vmem:[%s323 + $0x18] sm:$0xff]
      %v364 = vld [vmem:[%s323 + $0x20] sm:$0xff]
      %v365 = vld [vmem:[%s323 + $0x28] sm:$0xff]
      %v366 = vld [vmem:[%s323 + $0x30] sm:$0xff]
      %v367 = vld [vmem:[%s323 + $0x38] sm:$0xff]
      %v368 = vld [vmem:[%s323 + $0x40] sm:$0xff]
      %v369 = vld [vmem:[%s323 + $0x48] sm:$0xff]
      %v370 = vld [vmem:[%s323 + $0x50] sm:$0xff]
      %v371 = vld [vmem:[%s323 + $0x58] sm:$0xff]
      %v372 = vld [vmem:[%s332] sm:$0xf]
      %v374 = vlaneseq
      %v375 = vshrl.u32 %v374, 7
      %v376 = vsub.s32 0, %v375
      %v377 = vrot.slane %v372, %v376
      %v378 = vlaneseq
      %v379 = vshrl.u32 %v378, 7
      %v380 = vsub.s32 1, %v379
      %v381 = vrot.slane %v372, %v380
      %v382 = vlaneseq
      %v383 = vshrl.u32 %v382, 7
      %v384 = vsub.s32 2, %v383
      %v385 = vrot.slane %v372, %v384
      %v386 = vlaneseq
      %v387 = vshrl.u32 %v386, 7
      %v388 = vsub.s32 3, %v387
      %v389 = vrot.slane %v372, %v388
      %v410 = vunpack.c.l.b16 %v344
      %v411 = vunpack.c.l.b16 %v345
      %v412 = vunpack.c.l.b16 %v346
      %v413 = vunpack.c.l.b16 %v347
      %v414 = vunpack.c.l.b16 %v348
      %v415 = vunpack.c.l.b16 %v349
      %v416 = vunpack.c.l.b16 %v350
      %v417 = vunpack.c.l.b16 %v351
      %v418 = vunpack.c.l.b16 %v352
      %v419 = vunpack.c.l.b16 %v353
      %v420 = vunpack.c.l.b16 %v354
      %v421 = vunpack.c.l.b16 %v355
      %v422 = vunpack.c.l.b16 %v356
      %v423 = vunpack.c.l.b16 %v357
      %v424 = vunpack.c.l.b16 %v358
      %v425 = vunpack.c.l.b16 %v359
      %v426 = vpack.c.b16 %v411, %v410
      %v427 = vpack.c.b16 %v413, %v412
      %v428 = vpack.c.b16 %v415, %v414
      %v429 = vpack.c.b16 %v417, %v416
      %v430 = vpack.c.b16 %v419, %v418
      %v431 = vpack.c.b16 %v421, %v420
      %v432 = vpack.c.b16 %v423, %v422
      %v433 = vpack.c.b16 %v425, %v424
      %v446 = vunpack.c.l.b16 %v360
      %v447 = vunpack.c.h.b16 %v360
      %v448 = vunpack.c.l.b16 %v361
      %v449 = vunpack.c.h.b16 %v361
      %v450 = vunpack.c.l.b16 %v362
      %v451 = vunpack.c.h.b16 %v362
      %v452 = vunpack.c.l.b16 %v363
      %v453 = vunpack.c.h.b16 %v363
      %v454 = vunpack.c.l.b16 %v364
      %v455 = vunpack.c.h.b16 %v364
      %v456 = vunpack.c.l.b16 %v365
      %v457 = vunpack.c.h.b16 %v365
      %v458 = vunpack.c.l.b16 %v366
      %v459 = vunpack.c.h.b16 %v366
      %v460 = vunpack.c.l.b16 %v367
      %v461 = vunpack.c.h.b16 %v367
      %v462 = vunpack.c.l.b16 %v368
      %v463 = vunpack.c.h.b16 %v368
      %v464 = vunpack.c.l.b16 %v369
      %v465 = vunpack.c.h.b16 %v369
      %v466 = vunpack.c.l.b16 %v370
      %v467 = vunpack.c.h.b16 %v370
      %v468 = vunpack.c.l.b16 %v371
      %v469 = vunpack.c.h.b16 %v371
      %v470 = vpack.c.b16 %v450, %v446
      %v471 = vpack.c.b16 %v451, %v447
      %v472 = vpack.c.b16 %v452, %v448
      %v473 = vpack.c.b16 %v453, %v449
      %v474 = vpack.c.b16 %v458, %v454
      %v475 = vpack.c.b16 %v459, %v455
      %v476 = vpack.c.b16 %v460, %v456
      %v477 = vpack.c.b16 %v461, %v457
      %v478 = vpack.c.b16 %v466, %v462
      %v479 = vpack.c.b16 %v467, %v463
      %v480 = vpack.c.b16 %v468, %v464
      %v481 = vpack.c.b16 %v469, %v465
      %vm494 = vcmask 392192
      %v496 = vsel %vm494, %v426, 0
      %v499 = vsel %vm494, %v427, 0
      %v502 = vsel %vm494, %v428, 0
      %v505 = vsel %vm494, %v429, 0
      %v508 = vsel %vm494, %v430, 0
      %v511 = vsel %vm494, %v431, 0
      %v514 = vsel %vm494, %v432, 0
      %v517 = vsel %vm494, %v433, 0
      %519 = vmatprep.subr.bf16.mxu0 %v471
      %520 = vmatpush1.bf16.msra.mxu0 %v470
      %521 = vmatprep.subr.bf16.mxu0 %v475
      %522 = vmatpush1.bf16.msra.mxu0 %v474
      %523 = vmatprep.subr.bf16.mxu0 %v479
      %524 = vmatpush1.bf16.msra.mxu0 %v478
      %525 = vmatprep.subr.bf16.mxu0 0
      %526 = vmatpush1.bf16.msra.mxu0 0
      %527 = vmatprep.subr.bf16.mxu0 0
      %528 = vmatpush1.bf16.msra.mxu0 0
      %529 = vmatprep.subr.bf16.mxu0 0
      %530 = vmatpush1.bf16.msra.mxu0 0
      %531 = vmatprep.subr.bf16.mxu0 0
      %532 = vmatpush1.bf16.msra.mxu0 0
      %533 = vmatprep.subr.bf16.mxu0 0
      %534 = vmatpush1.bf16.msra.mxu0 0
      %535 = vmatprep.subr.bf16.mxu0 0
      %536 = vmatpush1.bf16.msra.mxu0 0
      %537 = vmatprep.subr.bf16.mxu0 0
      %538 = vmatpush1.bf16.msra.mxu0 0
      %539 = vmatprep.subr.bf16.mxu0 0
      %540 = vmatpush1.bf16.msra.mxu0 0
      %541 = vmatprep.subr.bf16.mxu0 0
      %542 = vmatpush1.bf16.msra.mxu0 0
      %543 = vmatprep.subr.bf16.mxu0 0
      %544 = vmatpush1.bf16.msra.mxu0 0
      %545 = vmatprep.subr.bf16.mxu0 0
      %546 = vmatpush1.bf16.msra.mxu0 0
      %547 = vmatprep.subr.bf16.mxu0 0
      %548 = vmatpush1.bf16.msra.mxu0 0
      %549 = vmatprep.subr.bf16.mxu0 0
      %550 = vmatpush1.bf16.msra.mxu0 0
      %551 = vmatprep.mubr.bf16.mxu0 0
      %552 = vmatmul.mubr.bf16.gmra.mrb[0].mxu0 %v496
      %v553 = vpop.f32.mrb[0].mxu0
      %v554 = vadd.f32 %v377, %v553
      %v555 = vpop.f32.mrb[0].mxu0
      %v556 = vadd.f32 %v381, %v555
      %v557 = vpop.f32.mrb[0].mxu0
      %v558 = vadd.f32 %v377, %v557
      %v559 = vpop.f32.mrb[0].mxu0
      %v560 = vadd.f32 %v381, %v559
      %561 = vmatprep.mubr.bf16.mxu0 0
      %562 = vmatmul.mubr.bf16.gmra.mrb[0].mxu0 %v499
      %v563 = vpop.f32.mrb[0].mxu0
      %v564 = vadd.f32 %v377, %v563
      %v565 = vpop.f32.mrb[0].mxu0
      %v566 = vadd.f32 %v381, %v565
      %v567 = vpop.f32.mrb[0].mxu0
      %v568 = vadd.f32 %v377, %v567
      %v569 = vpop.f32.mrb[0].mxu0
      %v570 = vadd.f32 %v381, %v569
      %571 = vmatprep.mubr.bf16.mxu0 0
      %572 = vmatmul.mubr.bf16.gmra.mrb[0].mxu0 %v502
      %v573 = vpop.f32.mrb[0].mxu0
      %v574 = vadd.f32 %v377, %v573
      %v575 = vpop.f32.mrb[0].mxu0
      %v576 = vadd.f32 %v381, %v575
      %v577 = vpop.f32.mrb[0].mxu0
      %v578 = vadd.f32 %v377, %v577
      %v579 = vpop.f32.mrb[0].mxu0
      %v580 = vadd.f32 %v381, %v579
      %581 = vmatprep.mubr.bf16.mxu0 0
      %582 = vmatmul.mubr.bf16.gmra.mrb[0].mxu0 %v505
      %v583 = vpop.f32.mrb[0].mxu0
      %v584 = vadd.f32 %v377, %v583
      %v585 = vpop.f32.mrb[0].mxu0
      %v586 = vadd.f32 %v381, %v585
      %v587 = vpop.f32.mrb[0].mxu0
      %v588 = vadd.f32 %v377, %v587
      %v589 = vpop.f32.mrb[0].mxu0
      %v590 = vadd.f32 %v381, %v589
      %591 = vmatprep.mubr.bf16.mxu0 0
      %592 = vmatmul.mubr.bf16.gmra.mrb[0].mxu0 %v508
      %v593 = vpop.f32.mrb[0].mxu0
      %v594 = vadd.f32 %v377, %v593
      %v595 = vpop.f32.mrb[0].mxu0
      %v596 = vadd.f32 %v381, %v595
      %v597 = vpop.f32.mrb[0].mxu0
      %v598 = vadd.f32 %v377, %v597
      %v599 = vpop.f32.mrb[0].mxu0
      %v600 = vadd.f32 %v381, %v599
      %601 = vmatprep.mubr.bf16.mxu0 0
      %602 = vmatmul.mubr.bf16.gmra.mrb[0].mxu0 %v511
      %v603 = vpop.f32.mrb[0].mxu0
      %v604 = vadd.f32 %v377, %v603
      %v605 = vpop.f32.mrb[0].mxu0
      %v606 = vadd.f32 %v381, %v605
      %v607 = vpop.f32.mrb[0].mxu0
      %v608 = vadd.f32 %v377, %v607
      %v609 = vpop.f32.mrb[0].mxu0
      %v610 = vadd.f32 %v381, %v609
      %611 = vmatprep.mubr.bf16.mxu0 0
      %612 = vmatmul.mubr.bf16.gmra.mrb[0].mxu0 %v514
      %v613 = vpop.f32.mrb[0].mxu0
      %v614 = vadd.f32 %v377, %v613
      %v615 = vpop.f32.mrb[0].mxu0
      %v616 = vadd.f32 %v381, %v615
      %v617 = vpop.f32.mrb[0].mxu0
      %v618 = vadd.f32 %v377, %v617
      %v619 = vpop.f32.mrb[0].mxu0
      %v620 = vadd.f32 %v381, %v619
      %621 = vmatprep.mubr.bf16.mxu0 0
      %622 = vmatmul.mubr.bf16.gmra.mrb[0].mxu0 %v517
      %v623 = vpop.f32.mrb[0].mxu0
      %v624 = vadd.f32 %v377, %v623
      %v625 = vpop.f32.mrb[0].mxu0
      %v626 = vadd.f32 %v381, %v625
      %v627 = vpop.f32.mrb[0].mxu0
      %v628 = vadd.f32 %v377, %v627
      %v629 = vpop.f32.mrb[0].mxu0
      %v630 = vadd.f32 %v381, %v629
      %631 = vdwg.mxu0
      %632 = vmatprep.subr.bf16.mxu0 %v473
      %633 = vmatpush1.bf16.msra.mxu0 %v472
      %634 = vmatprep.subr.bf16.mxu0 %v477
      %635 = vmatpush1.bf16.msra.mxu0 %v476
      %636 = vmatprep.subr.bf16.mxu0 %v481
      %637 = vmatpush1.bf16.msra.mxu0 %v480
      %638 = vmatprep.subr.bf16.mxu0 0
      %639 = vmatpush1.bf16.msra.mxu0 0
      %640 = vmatprep.subr.bf16.mxu0 0
      %641 = vmatpush1.bf16.msra.mxu0 0
      %642 = vmatprep.subr.bf16.mxu0 0
      %643 = vmatpush1.bf16.msra.mxu0 0
      %644 = vmatprep.subr.bf16.mxu0 0
      %645 = vmatpush1.bf16.msra.mxu0 0
      %646 = vmatprep.subr.bf16.mxu0 0
      %647 = vmatpush1.bf16.msra.mxu0 0
      %648 = vmatprep.subr.bf16.mxu0 0
      %649 = vmatpush1.bf16.msra.mxu0 0
      %650 = vmatprep.subr.bf16.mxu0 0
      %651 = vmatpush1.bf16.msra.mxu0 0
      %652 = vmatprep.subr.bf16.mxu0 0
      %653 = vmatpush1.bf16.msra.mxu0 0
      %654 = vmatprep.subr.bf16.mxu0 0
      %655 = vmatpush1.bf16.msra.mxu0 0
      %656 = vmatprep.subr.bf16.mxu0 0
      %657 = vmatpush1.bf16.msra.mxu0 0
      %658 = vmatprep.subr.bf16.mxu0 0
      %659 = vmatpush1.bf16.msra.mxu0 0
      %660 = vmatprep.subr.bf16.mxu0 0
      %661 = vmatpush1.bf16.msra.mxu0 0
      %662 = vmatprep.subr.bf16.mxu0 0
      %663 = vmatpush1.bf16.msra.mxu0 0
      %664 = vmatprep.mubr.bf16.mxu0 0
      %665 = vmatmul.mubr.bf16.gmra.mrb[0].mxu0 %v496
      %v666 = vpop.f32.mrb[0].mxu0
      %v667 = vadd.f32 %v385, %v666
      %v668 = vpop.f32.mrb[0].mxu0
      %v669 = vadd.f32 %v389, %v668
      %v670 = vpop.f32.mrb[0].mxu0
      %v671 = vadd.f32 %v385, %v670
      %v672 = vpop.f32.mrb[0].mxu0
      %v673 = vadd.f32 %v389, %v672
      %674 = vmatprep.mubr.bf16.mxu0 0
      %675 = vmatmul.mubr.bf16.gmra.mrb[0].mxu0 %v499
      %v676 = vpop.f32.mrb[0].mxu0
      %v677 = vadd.f32 %v385, %v676
      %v678 = vpop.f32.mrb[0].mxu0
      %v679 = vadd.f32 %v389, %v678
      %v680 = vpop.f32.mrb[0].mxu0
      %v681 = vadd.f32 %v385, %v680
      %v682 = vpop.f32.mrb[0].mxu0
      %v683 = vadd.f32 %v389, %v682
      %684 = vmatprep.mubr.bf16.mxu0 0
      %685 = vmatmul.mubr.bf16.gmra.mrb[0].mxu0 %v502
      %v686 = vpop.f32.mrb[0].mxu0
      %v687 = vadd.f32 %v385, %v686
      %v688 = vpop.f32.mrb[0].mxu0
      %v689 = vadd.f32 %v389, %v688
      %v690 = vpop.f32.mrb[0].mxu0
      %v691 = vadd.f32 %v385, %v690
      %v692 = vpop.f32.mrb[0].mxu0
      %v693 = vadd.f32 %v389, %v692
      %694 = vmatprep.mubr.bf16.mxu0 0
      %695 = vmatmul.mubr.bf16.gmra.mrb[0].mxu0 %v505
      %v696 = vpop.f32.mrb[0].mxu0
      %v697 = vadd.f32 %v385, %v696
      %v698 = vpop.f32.mrb[0].mxu0
      %v699 = vadd.f32 %v389, %v698
      %v700 = vpop.f32.mrb[0].mxu0
      %v701 = vadd.f32 %v385, %v700
      %v702 = vpop.f32.mrb[0].mxu0
      %v703 = vadd.f32 %v389, %v702
      %704 = vmatprep.mubr.bf16.mxu0 0
      %705 = vmatmul.mubr.bf16.gmra.mrb[0].mxu0 %v508
      %v706 = vpop.f32.mrb[0].mxu0
      %v707 = vadd.f32 %v385, %v706
      %v708 = vpop.f32.mrb[0].mxu0
      %v709 = vadd.f32 %v389, %v708
      %v710 = vpop.f32.mrb[0].mxu0
      %v711 = vadd.f32 %v385, %v710
      %v712 = vpop.f32.mrb[0].mxu0
      %v713 = vadd.f32 %v389, %v712
      %714 = vmatprep.mubr.bf16.mxu0 0
      %715 = vmatmul.mubr.bf16.gmra.mrb[0].mxu0 %v511
      %v716 = vpop.f32.mrb[0].mxu0
      %v717 = vadd.f32 %v385, %v716
      %v718 = vpop.f32.mrb[0].mxu0
      %v719 = vadd.f32 %v389, %v718
      %v720 = vpop.f32.mrb[0].mxu0
      %v721 = vadd.f32 %v385, %v720
      %v722 = vpop.f32.mrb[0].mxu0
      %v723 = vadd.f32 %v389, %v722
      %724 = vmatprep.mubr.bf16.mxu0 0
      %725 = vmatmul.mubr.bf16.gmra.mrb[0].mxu0 %v514
      %v726 = vpop.f32.mrb[0].mxu0
      %v727 = vadd.f32 %v385, %v726
      %v728 = vpop.f32.mrb[0].mxu0
      %v729 = vadd.f32 %v389, %v728
      %v730 = vpop.f32.mrb[0].mxu0
      %v731 = vadd.f32 %v385, %v730
      %v732 = vpop.f32.mrb[0].mxu0
      %v733 = vadd.f32 %v389, %v732
      %734 = vmatprep.mubr.bf16.mxu0 0
      %735 = vmatmul.mubr.bf16.gmra.mrb[0].mxu0 %v517
      %v736 = vpop.f32.mrb[0].mxu0
      %v737 = vadd.f32 %v385, %v736
      %v738 = vpop.f32.mrb[0].mxu0
      %v739 = vadd.f32 %v389, %v738
      %v740 = vpop.f32.mrb[0].mxu0
      %v741 = vadd.f32 %v385, %v740
      %v742 = vpop.f32.mrb[0].mxu0
      %v743 = vadd.f32 %v389, %v742
      %744 = vdwg.mxu0
      %745 = vst [vmem:[#allocation2] sm:$0xff] %v554
      %746 = vst [vmem:[#allocation2 + $0x8] sm:$0xff] %v556
      %747 = vst [vmem:[#allocation2 + $0x10] sm:$0xff] %v667
      %748 = vst [vmem:[#allocation2 + $0x18] sm:$0xff] %v669
      %749 = vst [vmem:[#allocation2 + $0x20] sm:$0xff] %v558
      %750 = vst [vmem:[#allocation2 + $0x28] sm:$0xff] %v560
      %751 = vst [vmem:[#allocation2 + $0x30] sm:$0xff] %v671
      %752 = vst [vmem:[#allocation2 + $0x38] sm:$0xff] %v673
      %753 = vst [vmem:[#allocation2 + $0x40] sm:$0xff] %v564
      %754 = vst [vmem:[#allocation2 + $0x48] sm:$0xff] %v566
      %755 = vst [vmem:[#allocation2 + $0x50] sm:$0xff] %v677
      %756 = vst [vmem:[#allocation2 + $0x58] sm:$0xff] %v679
      %757 = vst [vmem:[#allocation2 + $0x60] sm:$0xff] %v568
      %758 = vst [vmem:[#allocation2 + $0x68] sm:$0xff] %v570
      %759 = vst [vmem:[#allocation2 + $0x70] sm:$0xff] %v681
      %760 = vst [vmem:[#allocation2 + $0x78] sm:$0xff] %v683
      %761 = vst [vmem:[#allocation2 + $0x80] sm:$0xff] %v574
      %762 = vst [vmem:[#allocation2 + $0x88] sm:$0xff] %v576
      %763 = vst [vmem:[#allocation2 + $0x90] sm:$0xff] %v687
      %764 = vst [vmem:[#allocation2 + $0x98] sm:$0xff] %v689
      %765 = vst [vmem:[#allocation2 + $0xa0] sm:$0xff] %v578
      %766 = vst [vmem:[#allocation2 + $0xa8] sm:$0xff] %v580
      %767 = vst [vmem:[#allocation2 + $0xb0] sm:$0xff] %v691
      %768 = vst [vmem:[#allocation2 + $0xb8] sm:$0xff] %v693
      %769 = vst [vmem:[#allocation2 + $0xc0] sm:$0xff] %v584
      %770 = vst [vmem:[#allocation2 + $0xc8] sm:$0xff] %v586
      %771 = vst [vmem:[#allocation2 + $0xd0] sm:$0xff] %v697
      %772 = vst [vmem:[#allocation2 + $0xd8] sm:$0xff] %v699
      %773 = vst [vmem:[#allocation2 + $0xe0] sm:$0xff] %v588
      %774 = vst [vmem:[#allocation2 + $0xe8] sm:$0xff] %v590
      %775 = vst [vmem:[#allocation2 + $0xf0] sm:$0xff] %v701
      %776 = vst [vmem:[#allocation2 + $0xf8] sm:$0xff] %v703
      %777 = vst [vmem:[#allocation2 + $0x100] sm:$0xff] %v594
      %778 = vst [vmem:[#allocation2 + $0x108] sm:$0xff] %v596
      %779 = vst [vmem:[#allocation2 + $0x110] sm:$0xff] %v707
      %780 = vst [vmem:[#allocation2 + $0x118] sm:$0xff] %v709
      %781 = vst [vmem:[#allocation2 + $0x120] sm:$0xff] %v598
      %782 = vst [vmem:[#allocation2 + $0x128] sm:$0xff] %v600
      %783 = vst [vmem:[#allocation2 + $0x130] sm:$0xff] %v711
      %784 = vst [vmem:[#allocation2 + $0x138] sm:$0xff] %v713
      %785 = vst [vmem:[#allocation2 + $0x140] sm:$0xff] %v604
      %786 = vst [vmem:[#allocation2 + $0x148] sm:$0xff] %v606
      %787 = vst [vmem:[#allocation2 + $0x150] sm:$0xff] %v717
      %788 = vst [vmem:[#allocation2 + $0x158] sm:$0xff] %v719
      %789 = vst [vmem:[#allocation2 + $0x160] sm:$0xff] %v608
      %790 = vst [vmem:[#allocation2 + $0x168] sm:$0xff] %v610
      %791 = vst [vmem:[#allocation2 + $0x170] sm:$0xff] %v721
      %792 = vst [vmem:[#allocation2 + $0x178] sm:$0xff] %v723
      %793 = vst [vmem:[#allocation2 + $0x180] sm:$0xff] %v614
      %794 = vst [vmem:[#allocation2 + $0x188] sm:$0xff] %v616
      %795 = vst [vmem:[#allocation2 + $0x190] sm:$0xff] %v727
      %796 = vst [vmem:[#allocation2 + $0x198] sm:$0xff] %v729
      %797 = vst [vmem:[#allocation2 + $0x1a0] sm:$0xff] %v618
      %798 = vst [vmem:[#allocation2 + $0x1a8] sm:$0xff] %v620
      %799 = vst [vmem:[#allocation2 + $0x1b0] sm:$0xff] %v731
      %800 = vst [vmem:[#allocation2 + $0x1b8] sm:$0xff] %v733
      %801 = vst [vmem:[#allocation2 + $0x1c0] sm:$0xff] %v624
      %802 = vst [vmem:[#allocation2 + $0x1c8] sm:$0xff] %v626
      %803 = vst [vmem:[#allocation2 + $0x1d0] sm:$0xff] %v737
      %804 = vst [vmem:[#allocation2 + $0x1d8] sm:$0xff] %v739
      %805 = vst [vmem:[#allocation2 + $0x1e0] sm:$0xff] %v628
      %806 = vst [vmem:[#allocation2 + $0x1e8] sm:$0xff] %v630
      %807 = vst [vmem:[#allocation2 + $0x1f0] sm:$0xff] %v741
      %808 = vst [vmem:[#allocation2 + $0x1f8] sm:$0xff] %v743
      %v809 = vld [vmem:[%s328] sm:$0xff]
      %v810 = vld [vmem:[%s328 + $0x8] sm:$0xff]
      %v811 = vld [vmem:[%s328 + $0x10] sm:$0xff]
      %v812 = vld [vmem:[%s328 + $0x18] sm:$0xff]
      %v813 = vld [vmem:[%s328 + $0x20] sm:$0xff]
      %v814 = vld [vmem:[%s328 + $0x28] sm:$0xff]
      %v815 = vld [vmem:[%s328 + $0x30] sm:$0xff]
      %v816 = vld [vmem:[%s328 + $0x38] sm:$0xff]
      %v817 = vld [vmem:[%s328 + $0x40] sm:$0xff]
      %v818 = vld [vmem:[%s328 + $0x48] sm:$0xff]
      %v819 = vld [vmem:[%s328 + $0x50] sm:$0xff]
      %v820 = vld [vmem:[%s328 + $0x58] sm:$0xff]
      %v821 = vld [vmem:[%s328 + $0x60] sm:$0xff]
      %v822 = vld [vmem:[%s328 + $0x68] sm:$0xff]
      %v823 = vld [vmem:[%s328 + $0x70] sm:$0xff]
      %v824 = vld [vmem:[%s328 + $0x78] sm:$0xff]
      %v825 = vld [vmem:[%s328 + $0x80] sm:$0xff]
      %v826 = vld [vmem:[%s328 + $0x88] sm:$0xff]
      %v827 = vld [vmem:[%s328 + $0x90] sm:$0xff]
      %v828 = vld [vmem:[%s328 + $0x98] sm:$0xff]
      %v829 = vld [vmem:[%s328 + $0xa0] sm:$0xff]
      %v830 = vld [vmem:[%s328 + $0xa8] sm:$0xff]
      %v831 = vld [vmem:[%s328 + $0xb0] sm:$0xff]
      %v832 = vld [vmem:[%s328 + $0xb8] sm:$0xff]
      %v833 = vld [vmem:[%s328 + $0xc0] sm:$0xff]
      %v834 = vld [vmem:[%s328 + $0xc8] sm:$0xff]
      %v835 = vld [vmem:[%s328 + $0xd0] sm:$0xff]
      %v836 = vld [vmem:[%s328 + $0xd8] sm:$0xff]
      %v837 = vld [vmem:[%s328 + $0xe0] sm:$0xff]
      %v838 = vld [vmem:[%s328 + $0xe8] sm:$0xff]
      %v839 = vld [vmem:[%s328 + $0xf0] sm:$0xff]
      %v840 = vld [vmem:[%s328 + $0xf8] sm:$0xff]
      %v841 = vld [vmem:[%s317] sm:$0xff]
      %v842 = vld [vmem:[%s317 + $0x8] sm:$0xff]
      %v843 = vld [vmem:[#allocation2] sm:$0xff]
      %v844 = vld [vmem:[#allocation2 + $0x8] sm:$0xff]
      %v845 = vld [vmem:[#allocation2 + $0x10] sm:$0xff]
      %v846 = vld [vmem:[#allocation2 + $0x18] sm:$0xff]
      %v847 = vld [vmem:[#allocation2 + $0x20] sm:$0xff]
      %v848 = vld [vmem:[#allocation2 + $0x28] sm:$0xff]
      %v849 = vld [vmem:[#allocation2 + $0x30] sm:$0xff]
      %v850 = vld [vmem:[#allocation2 + $0x38] sm:$0xff]
      %v883 = vunpack.c.l.b16 %v809
      %v884 = vunpack.c.h.b16 %v809
      %v885 = vunpack.c.l.b16 %v810
      %v886 = vunpack.c.h.b16 %v810
      %v887 = vunpack.c.l.b16 %v811
      %v888 = vunpack.c.h.b16 %v811
      %v889 = vunpack.c.l.b16 %v812
      %v890 = vunpack.c.h.b16 %v812
      %v891 = vunpack.c.l.b16 %v813
      %v892 = vunpack.c.h.b16 %v813
      %v893 = vunpack.c.l.b16 %v814
      %v894 = vunpack.c.h.b16 %v814
      %v895 = vunpack.c.l.b16 %v815
      %v896 = vunpack.c.h.b16 %v815
      %v897 = vunpack.c.l.b16 %v816
      %v898 = vunpack.c.h.b16 %v816
      %v899 = vunpack.c.l.b16 %v817
      %v900 = vunpack.c.h.b16 %v817
      %v901 = vunpack.c.l.b16 %v818
      %v902 = vunpack.c.h.b16 %v818
      %v903 = vunpack.c.l.b16 %v819
      %v904 = vunpack.c.h.b16 %v819
      %v905 = vunpack.c.l.b16 %v820
      %v906 = vunpack.c.h.b16 %v820
      %v907 = vunpack.c.l.b16 %v821
      %v908 = vunpack.c.h.b16 %v821
      %v909 = vunpack.c.l.b16 %v822
      %v910 = vunpack.c.h.b16 %v822
      %v911 = vunpack.c.l.b16 %v823
      %v912 = vunpack.c.h.b16 %v823
      %v913 = vunpack.c.l.b16 %v824
      %v914 = vunpack.c.h.b16 %v824
      %v915 = vunpack.c.l.b16 %v825
      %v916 = vunpack.c.h.b16 %v825
      %v917 = vunpack.c.l.b16 %v826
      %v918 = vunpack.c.h.b16 %v826
      %v919 = vunpack.c.l.b16 %v827
      %v920 = vunpack.c.h.b16 %v827
      %v921 = vunpack.c.l.b16 %v828
      %v922 = vunpack.c.h.b16 %v828
      %v923 = vunpack.c.l.b16 %v829
      %v924 = vunpack.c.h.b16 %v829
      %v925 = vunpack.c.l.b16 %v830
      %v926 = vunpack.c.h.b16 %v830
      %v927 = vunpack.c.l.b16 %v831
      %v928 = vunpack.c.h.b16 %v831
      %v929 = vunpack.c.l.b16 %v832
      %v930 = vunpack.c.h.b16 %v832
      %v931 = vunpack.c.l.b16 %v833
      %v932 = vunpack.c.h.b16 %v833
      %v933 = vunpack.c.l.b16 %v834
      %v934 = vunpack.c.h.b16 %v834
      %v935 = vunpack.c.l.b16 %v835
      %v936 = vunpack.c.h.b16 %v835
      %v937 = vunpack.c.l.b16 %v836
      %v938 = vunpack.c.h.b16 %v836
      %v939 = vunpack.c.l.b16 %v837
      %v940 = vunpack.c.h.b16 %v837
      %v941 = vunpack.c.l.b16 %v838
      %v942 = vunpack.c.h.b16 %v838
      %v943 = vunpack.c.l.b16 %v839
      %v944 = vunpack.c.h.b16 %v839
      %v945 = vunpack.c.l.b16 %v840
      %v946 = vunpack.c.h.b16 %v840
      %v947 = vpack.c.b16 %v887, %v883
      %v948 = vpack.c.b16 %v888, %v884
      %v949 = vpack.c.b16 %v889, %v885
      %v950 = vpack.c.b16 %v890, %v886
      %v951 = vpack.c.b16 %v895, %v891
      %v952 = vpack.c.b16 %v896, %v892
      %v953 = vpack.c.b16 %v897, %v893
      %v954 = vpack.c.b16 %v898, %v894
      %v955 = vpack.c.b16 %v903, %v899
      %v956 = vpack.c.b16 %v904, %v900
      %v957 = vpack.c.b16 %v905, %v901
      %v958 = vpack.c.b16 %v906, %v902
      %v959 = vpack.c.b16 %v911, %v907
      %v960 = vpack.c.b16 %v912, %v908
      %v961 = vpack.c.b16 %v913, %v909
      %v962 = vpack.c.b16 %v914, %v910
      %v963 = vpack.c.b16 %v919, %v915
      %v964 = vpack.c.b16 %v920, %v916
      %v965 = vpack.c.b16 %v921, %v917
      %v966 = vpack.c.b16 %v922, %v918
      %v967 = vpack.c.b16 %v927, %v923
      %v968 = vpack.c.b16 %v928, %v924
      %v969 = vpack.c.b16 %v929, %v925
      %v970 = vpack.c.b16 %v930, %v926
      %v971 = vpack.c.b16 %v935, %v931
      %v972 = vpack.c.b16 %v936, %v932
      %v973 = vpack.c.b16 %v937, %v933
      %v974 = vpack.c.b16 %v938, %v934
      %v975 = vpack.c.b16 %v943, %v939
      %v976 = vpack.c.b16 %v944, %v940
      %v977 = vpack.c.b16 %v945, %v941
      %v978 = vpack.c.b16 %v946, %v942
      %1011 = vmatprep.subr.bf16.mxu0 %v948
      %1012 = vmatpush1.bf16.msra.mxu0 %v947
      %1013 = vmatprep.subr.bf16.mxu0 %v952
      %1014 = vmatpush1.bf16.msra.mxu0 %v951
      %1015 = vmatprep.subr.bf16.mxu0 %v956
      %1016 = vmatpush1.bf16.msra.mxu0 %v955
      %1017 = vmatprep.subr.bf16.mxu0 %v960
      %1018 = vmatpush1.bf16.msra.mxu0 %v959
      %1019 = vmatprep.subr.bf16.mxu0 %v964
      %1020 = vmatpush1.bf16.msra.mxu0 %v963
      %1021 = vmatprep.subr.bf16.mxu0 %v968
      %1022 = vmatpush1.bf16.msra.mxu0 %v967
      %1023 = vmatprep.subr.bf16.mxu0 %v972
      %1024 = vmatpush1.bf16.msra.mxu0 %v971
      %1025 = vmatprep.subr.bf16.mxu0 %v976
      %1026 = vmatpush1.bf16.msra.mxu0 %v975
      %1027 = vmatprep.subr.bf16.mxu0 0
      %1028 = vmatpush1.bf16.msra.mxu0 0
      %1029 = vmatprep.subr.bf16.mxu0 0
      %1030 = vmatpush1.bf16.msra.mxu0 0
      %1031 = vmatprep.subr.bf16.mxu0 0
      %1032 = vmatpush1.bf16.msra.mxu0 0
      %1033 = vmatprep.subr.bf16.mxu0 0
      %1034 = vmatpush1.bf16.msra.mxu0 0
      %1035 = vmatprep.subr.bf16.mxu0 0
      %1036 = vmatpush1.bf16.msra.mxu0 0
      %1037 = vmatprep.subr.bf16.mxu0 0
      %1038 = vmatpush1.bf16.msra.mxu0 0
      %1039 = vmatprep.subr.bf16.mxu0 0
      %1040 = vmatpush1.bf16.msra.mxu0 0
      %1041 = vmatprep.subr.bf16.mxu0 0
      %1042 = vmatpush1.bf16.msra.mxu0 0
      %1043 = vmatprep.mubr.bf16.mxu0 0
      %1044 = vmatmul.mubr.bf16.gmra.mrb[0].mxu0 0
      %v1045 = vpop.f32.mrb[0].mxu0
      %v1046 = vadd.f32 0.0, %v1045
      %v1047 = vpop.f32.mrb[0].mxu0
      %v1048 = vadd.f32 0.0, %v1047
      %v1049 = vpop.f32.mrb[0].mxu0
      %v1050 = vadd.f32 0.0, %v1049
      %v1051 = vpop.f32.mrb[0].mxu0
      %v1052 = vadd.f32 0.0, %v1051
      %1053 = vdwg.mxu0
      %1054 = vmatprep.subr.bf16.mxu0 %v950
      %1055 = vmatpush1.bf16.msra.mxu0 %v949
      %1056 = vmatprep.subr.bf16.mxu0 %v954
      %1057 = vmatpush1.bf16.msra.mxu0 %v953
      %1058 = vmatprep.subr.bf16.mxu0 %v958
      %1059 = vmatpush1.bf16.msra.mxu0 %v957
      %1060 = vmatprep.subr.bf16.mxu0 %v962
      %1061 = vmatpush1.bf16.msra.mxu0 %v961
      %1062 = vmatprep.subr.bf16.mxu0 %v966
      %1063 = vmatpush1.bf16.msra.mxu0 %v965
      %1064 = vmatprep.subr.bf16.mxu0 %v970
      %1065 = vmatpush1.bf16.msra.mxu0 %v969
      %1066 = vmatprep.subr.bf16.mxu0 %v974
      %1067 = vmatpush1.bf16.msra.mxu0 %v973
      %1068 = vmatprep.subr.bf16.mxu0 %v978
      %1069 = vmatpush1.bf16.msra.mxu0 %v977
      %1070 = vmatprep.subr.bf16.mxu0 0
      %1071 = vmatpush1.bf16.msra.mxu0 0
      %1072 = vmatprep.subr.bf16.mxu0 0
      %1073 = vmatpush1.bf16.msra.mxu0 0
      %1074 = vmatprep.subr.bf16.mxu0 0
      %1075 = vmatpush1.bf16.msra.mxu0 0
      %1076 = vmatprep.subr.bf16.mxu0 0
      %1077 = vmatpush1.bf16.msra.mxu0 0
      %1078 = vmatprep.subr.bf16.mxu0 0
      %1079 = vmatpush1.bf16.msra.mxu0 0
      %1080 = vmatprep.subr.bf16.mxu0 0
      %1081 = vmatpush1.bf16.msra.mxu0 0
      %1082 = vmatprep.subr.bf16.mxu0 0
      %1083 = vmatpush1.bf16.msra.mxu0 0
      %1084 = vmatprep.subr.bf16.mxu0 0
      %1085 = vmatpush1.bf16.msra.mxu0 0
      %1086 = vmatprep.mubr.bf16.mxu0 0
      %1087 = vmatmul.mubr.bf16.gmra.mrb[0].mxu0 0
      %v1088 = vpop.f32.mrb[0].mxu0
      %v1089 = vadd.f32 0.0, %v1088
      %v1090 = vpop.f32.mrb[0].mxu0
      %v1091 = vadd.f32 0.0, %v1090
      %v1092 = vpop.f32.mrb[0].mxu0
      %v1093 = vadd.f32 0.0, %v1092
      %v1094 = vpop.f32.mrb[0].mxu0
      %v1095 = vadd.f32 0.0, %v1094
      %1096 = vdwg.mxu0
      %v1097 = vadd.f32 %v843, %v1046
      %v1098 = vadd.f32 %v844, %v1048
      %v1099 = vadd.f32 %v845, %v1089
      %v1100 = vadd.f32 %v846, %v1091
      %v1101 = vadd.f32 %v847, %v1050
      %v1102 = vadd.f32 %v848, %v1052
      %v1103 = vadd.f32 %v849, %v1093
      %v1104 = vadd.f32 %v850, %v1095
      %v1105 = vxor.u32 %v1097, 2147483648
      %v1106 = vxor.u32 %v1101, 2147483648
      %v1107 = vmul.f32 %v1105, 1.442695
      %v1108 = vpow.pop %v1107
      %v1109 = vmul.f32 %v1106, 1.442695
      %v1110 = vpow.pop %v1109
      %v1111 = vadd.f32 %v1108, 1.0
      %v1112 = vadd.f32 %v1110, 1.0
      %v1113 = vrcp.pop %v1111
      %v1114 = vmul.f32 1.0, %v1113
      %v1115 = vrcp.pop %v1112
      %v1116 = vmul.f32 1.0, %v1115
      %v1117 = vxor.u32 %v1098, 2147483648
      %v1118 = vxor.u32 %v1102, 2147483648
      %v1119 = vmul.f32 %v1117, 1.442695
      %v1120 = vpow.pop %v1119
      %v1121 = vmul.f32 %v1118, 1.442695
      %v1122 = vpow.pop %v1121
      %v1123 = vadd.f32 %v1120, 1.0
      %v1124 = vadd.f32 %v1122, 1.0
      %v1125 = vrcp.pop %v1123
      %v1126 = vmul.f32 1.0, %v1125
      %v1127 = vrcp.pop %v1124
      %v1128 = vmul.f32 1.0, %v1127
      %v1129 = vtanh.pop %v1099
      %v1130 = vtanh.pop %v1103
      %v1131 = vxor.u32 %v1100, 2147483648
      %v1132 = vxor.u32 %v1104, 2147483648
      %v1133 = vmul.f32 %v1131, 1.442695
      %v1134 = vpow.pop %v1133
      %v1135 = vmul.f32 %v1132, 1.442695
      %v1136 = vpow.pop %v1135
      %v1137 = vadd.f32 %v1134, 1.0
      %v1138 = vadd.f32 %v1136, 1.0
      %v1139 = vrcp.pop %v1137
      %v1140 = vmul.f32 1.0, %v1139
      %v1141 = vrcp.pop %v1138
      %v1142 = vmul.f32 1.0, %v1141
      %v1143 = vmul.f32 %v1126, 0.0
      %v1144 = vmul.f32 %v1128, 0.0
      %v1145 = vmul.f32 %v1114, %v1129
      %v1146 = vmul.f32 %v1116, %v1130
      %v1147 = vadd.f32 %v1143, %v1145
      %v1148 = vadd.f32 %v1144, %v1146
      %v1149 = vtanh.pop %v1147
      %v1150 = vtanh.pop %v1148
      %v1151 = vmul.f32 %v1140, %v1149
      %v1152 = vmul.f32 %v1142, %v1150
      %vm1153 = vcmp.gt.s32.totalorder %v841, 0
      %vm1154 = vcmp.gt.s32.totalorder %v842, 0
      %v1155 = vsel %vm1153, 1, 0
      %v1156 = vsel %vm1154, 1, 0
      %1157 = vset.pattern.permute.xlu0 0
      %1158 = vperm.xlu0 %1157, %v1155
      %v1159 = vpop.permute.xlu0 %1158
      %1160 = vset.pattern.permute.xlu0 0
      %1161 = vperm.xlu0 %1160, %v1156
      %v1162 = vpop.permute.xlu0 %1161
      %vm1163 = vcmp.eq.s32.totalorder %v1159, 1
      %vm1164 = vcmp.eq.s32.totalorder %v1162, 1
      %v1165 = vsel %vm1163, %v1151, 0.0
      %v1166 = vsel %vm1164, %v1152, 0.0
      %v1167 = vpack.c.bf16 %v1166, %v1165
      %v1169 = vunpack.c.l.b16 %v1167
      %v1170 = vunpack.c.h.b16 %v1167
      %v1171 = vpack.c.b16 %v1169, %v1169
      %v1172 = vpack.c.b16 %v1170, %v1170
      %1175 = vst [vmem:[%s341] sm:$0xf] %v1171
      %1176 = vst [vmem:[%s341 + $0x4] sm:$0xf] %v1172
      %v1177 = vsel %vm1163, %v1147, 0.0
      %v1178 = vsel %vm1164, %v1148, 0.0
      %s1179 = scalar_lea.vmem [#allocation2], 64
      %v1180 = vld [vmem:[%s1179] sm:$0xff]
      %v1181 = vld [vmem:[%s1179 + $0x8] sm:$0xff]
      %v1182 = vld [vmem:[%s1179 + $0x10] sm:$0xff]
      %v1183 = vld [vmem:[%s1179 + $0x18] sm:$0xff]
      %v1184 = vld [vmem:[%s1179 + $0x20] sm:$0xff]
      %v1185 = vld [vmem:[%s1179 + $0x28] sm:$0xff]
      %v1186 = vld [vmem:[%s1179 + $0x30] sm:$0xff]
      %v1187 = vld [vmem:[%s1179 + $0x38] sm:$0xff]
      %1188 = vmatprep.subr.bf16.mxu0 %v948
      %1189 = vmatpush1.bf16.msra.mxu0 %v947
      %1190 = vmatprep.subr.bf16.mxu0 %v952
      %1191 = vmatpush1.bf16.msra.mxu0 %v951
      %1192 = vmatprep.subr.bf16.mxu0 %v956
      %1193 = vmatpush1.bf16.msra.mxu0 %v955
      %1194 = vmatprep.subr.bf16.mxu0 %v960
      %1195 = vmatpush1.bf16.msra.mxu0 %v959
      %1196 = vmatprep.subr.bf16.mxu0 %v964
      %1197 = vmatpush1.bf16.msra.mxu0 %v963
      %1198 = vmatprep.subr.bf16.mxu0 %v968
      %1199 = vmatpush1.bf16.msra.mxu0 %v967
      %1200 = vmatprep.subr.bf16.mxu0 %v972
      %1201 = vmatpush1.bf16.msra.mxu0 %v971
      %1202 = vmatprep.subr.bf16.mxu0 %v976
      %1203 = vmatpush1.bf16.msra.mxu0 %v975
      %1204 = vmatprep.subr.bf16.mxu0 0
      %1205 = vmatpush1.bf16.msra.mxu0 0
      %1206 = vmatprep.subr.bf16.mxu0 0
      %1207 = vmatpush1.bf16.msra.mxu0 0
      %1208 = vmatprep.subr.bf16.mxu0 0
      %1209 = vmatpush1.bf16.msra.mxu0 0
      %1210 = vmatprep.subr.bf16.mxu0 0
      %1211 = vmatpush1.bf16.msra.mxu0 0
      %1212 = vmatprep.subr.bf16.mxu0 0
      %1213 = vmatpush1.bf16.msra.mxu0 0
      %1214 = vmatprep.subr.bf16.mxu0 0
      %1215 = vmatpush1.bf16.msra.mxu0 0
      %1216 = vmatprep.subr.bf16.mxu0 0
      %1217 = vmatpush1.bf16.msra.mxu0 0
      %1218 = vmatprep.subr.bf16.mxu0 0
      %1219 = vmatpush1.bf16.msra.mxu0 0
      %1220 = vmatprep.mubr.bf16.mxu0 0
      %1221 = vmatmul.mubr.bf16.gmra.mrb[0].mxu0 %v1167
      %v1222 = vpop.f32.mrb[0].mxu0
      %v1223 = vadd.f32 0.0, %v1222
      %v1224 = vpop.f32.mrb[0].mxu0
      %v1225 = vadd.f32 0.0, %v1224
      %v1226 = vpop.f32.mrb[0].mxu0
      %v1227 = vadd.f32 0.0, %v1226
      %v1228 = vpop.f32.mrb[0].mxu0
      %v1229 = vadd.f32 0.0, %v1228
      %1230 = vdwg.mxu0
      %1231 = vmatprep.subr.bf16.mxu0 %v950
      %1232 = vmatpush1.bf16.msra.mxu0 %v949
      %1233 = vmatprep.subr.bf16.mxu0 %v954
      %1234 = vmatpush1.bf16.msra.mxu0 %v953
      %1235 = vmatprep.subr.bf16.mxu0 %v958
      %1236 = vmatpush1.bf16.msra.mxu0 %v957
      %1237 = vmatprep.subr.bf16.mxu0 %v962
      %1238 = vmatpush1.bf16.msra.mxu0 %v961
      %1239 = vmatprep.subr.bf16.mxu0 %v966
      %1240 = vmatpush1.bf16.msra.mxu0 %v965
      %1241 = vmatprep.subr.bf16.mxu0 %v970
      %1242 = vmatpush1.bf16.msra.mxu0 %v969
      %1243 = vmatprep.subr.bf16.mxu0 %v974
      %1244 = vmatpush1.bf16.msra.mxu0 %v973
      %1245 = vmatprep.subr.bf16.mxu0 %v978
      %1246 = vmatpush1.bf16.msra.mxu0 %v977
      %1247 = vmatprep.subr.bf16.mxu0 0
      %1248 = vmatpush1.bf16.msra.mxu0 0
      %1249 = vmatprep.subr.bf16.mxu0 0
      %1250 = vmatpush1.bf16.msra.mxu0 0
      %1251 = vmatprep.subr.bf16.mxu0 0
      %1252 = vmatpush1.bf16.msra.mxu0 0
      %1253 = vmatprep.subr.bf16.mxu0 0
      %1254 = vmatpush1.bf16.msra.mxu0 0
      %1255 = vmatprep.subr.bf16.mxu0 0
      %1256 = vmatpush1.bf16.msra.mxu0 0
      %1257 = vmatprep.subr.bf16.mxu0 0
      %1258 = vmatpush1.bf16.msra.mxu0 0
      %1259 = vmatprep.subr.bf16.mxu0 0
      %1260 = vmatpush1.bf16.msra.mxu0 0
      %1261 = vmatprep.subr.bf16.mxu0 0
      %1262 = vmatpush1.bf16.msra.mxu0 0
      %1263 = vmatprep.mubr.bf16.mxu0 0
      %1264 = vmatmul.mubr.bf16.gmra.mrb[0].mxu0 %v1167
      %v1265 = vpop.f32.mrb[0].mxu0
      %v1266 = vadd.f32 0.0, %v1265
      %v1267 = vpop.f32.mrb[0].mxu0
      %v1268 = vadd.f32 0.0, %v1267
      %v1269 = vpop.f32.mrb[0].mxu0
      %v1270 = vadd.f32 0.0, %v1269
      %v1271 = vpop.f32.mrb[0].mxu0
      %v1272 = vadd.f32 0.0, %v1271
      %1273 = vdwg.mxu0
      %v1274 = vadd.f32 %v1180, %v1223
      %v1275 = vadd.f32 %v1181, %v1225
      %v1276 = vadd.f32 %v1182, %v1266
      %v1277 = vadd.f32 %v1183, %v1268
      %v1278 = vadd.f32 %v1184, %v1227
      %v1279 = vadd.f32 %v1185, %v1229
      %v1280 = vadd.f32 %v1186, %v1270
      %v1281 = vadd.f32 %v1187, %v1272
      %v1282 = vxor.u32 %v1274, 2147483648
      %v1283 = vxor.u32 %v1278, 2147483648
      %v1284 = vmul.f32 %v1282, 1.442695
      %v1285 = vpow.pop %v1284
      %v1286 = vmul.f32 %v1283, 1.442695
      %v1287 = vpow.pop %v1286
      %v1288 = vadd.f32 %v1285, 1.0
      %v1289 = vadd.f32 %v1287, 1.0
      %v1290 = vrcp.pop %v1288
      %v1291 = vmul.f32 1.0, %v1290
      %v1292 = vrcp.pop %v1289
      %v1293 = vmul.f32 1.0, %v1292
      %v1294 = vxor.u32 %v1275, 2147483648
      %v1295 = vxor.u32 %v1279, 2147483648
      %v1296 = vmul.f32 %v1294, 1.442695
      %v1297 = vpow.pop %v1296
      %v1298 = vmul.f32 %v1295, 1.442695
      %v1299 = vpow.pop %v1298
      %v1300 = vadd.f32 %v1297, 1.0
      %v1301 = vadd.f32 %v1299, 1.0
      %v1302 = vrcp.pop %v1300
      %v1303 = vmul.f32 1.0, %v1302
      %v1304 = vrcp.pop %v1301
      %v1305 = vmul.f32 1.0, %v1304
      %v1306 = vtanh.pop %v1276
      %v1307 = vtanh.pop %v1280
      %v1308 = vxor.u32 %v1277, 2147483648
      %v1309 = vxor.u32 %v1281, 2147483648
      %v1310 = vmul.f32 %v1308, 1.442695
      %v1311 = vpow.pop %v1310
      %v1312 = vmul.f32 %v1309, 1.442695
      %v1313 = vpow.pop %v1312
      %v1314 = vadd.f32 %v1311, 1.0
      %v1315 = vadd.f32 %v1313, 1.0
      %v1316 = vrcp.pop %v1314
      %v1317 = vmul.f32 1.0, %v1316
      %v1318 = vrcp.pop %v1315
      %v1319 = vmul.f32 1.0, %v1318
      %v1320 = vmul.f32 %v1303, %v1177
      %v1321 = vmul.f32 %v1305, %v1178
      %v1322 = vmul.f32 %v1291, %v1306
      %v1323 = vmul.f32 %v1293, %v1307
      %v1324 = vadd.f32 %v1320, %v1322
      %v1325 = vadd.f32 %v1321, %v1323
      %v1326 = vtanh.pop %v1324
      %v1327 = vtanh.pop %v1325
      %v1328 = vmul.f32 %v1317, %v1326
      %v1329 = vmul.f32 %v1319, %v1327
      %vm1330 = vcmp.gt.s32.totalorder %v841, 1
      %vm1331 = vcmp.gt.s32.totalorder %v842, 1
      %v1332 = vsel %vm1330, 1, 0
      %v1333 = vsel %vm1331, 1, 0
      %1334 = vset.pattern.permute.xlu0 0
      %1335 = vperm.xlu0 %1334, %v1332
      %v1336 = vpop.permute.xlu0 %1335
      %1337 = vset.pattern.permute.xlu0 0
      %1338 = vperm.xlu0 %1337, %v1333
      %v1339 = vpop.permute.xlu0 %1338
      %vm1340 = vcmp.eq.s32.totalorder %v1336, 1
      %vm1341 = vcmp.eq.s32.totalorder %v1339, 1
      %v1342 = vsel %vm1340, %v1328, 0.0
      %v1343 = vsel %vm1341, %v1329, 0.0
      %v1344 = vpack.c.bf16 %v1343, %v1342
      %v1346 = vunpack.c.l.b16 %v1344
      %v1347 = vunpack.c.h.b16 %v1344
      %v1348 = vpack.c.b16 %v1346, %v1346
      %v1349 = vpack.c.b16 %v1347, %v1347
      %s1352 = scalar_lea.vmem %s341, 8
      %1353 = vst [vmem:[%s1352] sm:$0xf] %v1348
      %1354 = vst [vmem:[%s1352 + $0x4] sm:$0xf] %v1349
      %v1355 = vsel %vm1340, %v1328, %v1165
      %v1356 = vsel %vm1341, %v1329, %v1166
      %v1357 = vsel %vm1340, %v1324, %v1177
      %v1358 = vsel %vm1341, %v1325, %v1178
      %s1359 = scalar_lea.vmem [#allocation2], 128
      %v1360 = vld [vmem:[%s1359] sm:$0xff]
      %v1361 = vld [vmem:[%s1359 + $0x8] sm:$0xff]
      %v1362 = vld [vmem:[%s1359 + $0x10] sm:$0xff]
      %v1363 = vld [vmem:[%s1359 + $0x18] sm:$0xff]
      %v1364 = vld [vmem:[%s1359 + $0x20] sm:$0xff]
      %v1365 = vld [vmem:[%s1359 + $0x28] sm:$0xff]
      %v1366 = vld [vmem:[%s1359 + $0x30] sm:$0xff]
      %v1367 = vld [vmem:[%s1359 + $0x38] sm:$0xff]
      %v1368 = vpack.c.bf16 %v1356, %v1355
      %1369 = vmatprep.subr.bf16.mxu0 %v948
      %1370 = vmatpush1.bf16.msra.mxu0 %v947
      %1371 = vmatprep.subr.bf16.mxu0 %v952
      %1372 = vmatpush1.bf16.msra.mxu0 %v951
      %1373 = vmatprep.subr.bf16.mxu0 %v956
      %1374 = vmatpush1.bf16.msra.mxu0 %v955
      %1375 = vmatprep.subr.bf16.mxu0 %v960
      %1376 = vmatpush1.bf16.msra.mxu0 %v959
      %1377 = vmatprep.subr.bf16.mxu0 %v964
      %1378 = vmatpush1.bf16.msra.mxu0 %v963
      %1379 = vmatprep.subr.bf16.mxu0 %v968
      %1380 = vmatpush1.bf16.msra.mxu0 %v967
      %1381 = vmatprep.subr.bf16.mxu0 %v972
      %1382 = vmatpush1.bf16.msra.mxu0 %v971
      %1383 = vmatprep.subr.bf16.mxu0 %v976
      %1384 = vmatpush1.bf16.msra.mxu0 %v975
      %1385 = vmatprep.subr.bf16.mxu0 0
      %1386 = vmatpush1.bf16.msra.mxu0 0
      %1387 = vmatprep.subr.bf16.mxu0 0
      %1388 = vmatpush1.bf16.msra.mxu0 0
      %1389 = vmatprep.subr.bf16.mxu0 0
      %1390 = vmatpush1.bf16.msra.mxu0 0
      %1391 = vmatprep.subr.bf16.mxu0 0
      %1392 = vmatpush1.bf16.msra.mxu0 0
      %1393 = vmatprep.subr.bf16.mxu0 0
      %1394 = vmatpush1.bf16.msra.mxu0 0
      %1395 = vmatprep.subr.bf16.mxu0 0
      %1396 = vmatpush1.bf16.msra.mxu0 0
      %1397 = vmatprep.subr.bf16.mxu0 0
      %1398 = vmatpush1.bf16.msra.mxu0 0
      %1399 = vmatprep.subr.bf16.mxu0 0
      %1400 = vmatpush1.bf16.msra.mxu0 0
      %1401 = vmatprep.mubr.bf16.mxu0 0
      %1402 = vmatmul.mubr.bf16.gmra.mrb[0].mxu0 %v1368
      %v1403 = vpop.f32.mrb[0].mxu0
      %v1404 = vadd.f32 0.0, %v1403
      %v1405 = vpop.f32.mrb[0].mxu0
      %v1406 = vadd.f32 0.0, %v1405
      %v1407 = vpop.f32.mrb[0].mxu0
      %v1408 = vadd.f32 0.0, %v1407
      %v1409 = vpop.f32.mrb[0].mxu0
      %v1410 = vadd.f32 0.0, %v1409
      %1411 = vdwg.mxu0
      %1412 = vmatprep.subr.bf16.mxu0 %v950
      %1413 = vmatpush1.bf16.msra.mxu0 %v949
      %1414 = vmatprep.subr.bf16.mxu0 %v954
      %1415 = vmatpush1.bf16.msra.mxu0 %v953
      %1416 = vmatprep.subr.bf16.mxu0 %v958
      %1417 = vmatpush1.bf16.msra.mxu0 %v957
      %1418 = vmatprep.subr.bf16.mxu0 %v962
      %1419 = vmatpush1.bf16.msra.mxu0 %v961
      %1420 = vmatprep.subr.bf16.mxu0 %v966
      %1421 = vmatpush1.bf16.msra.mxu0 %v965
      %1422 = vmatprep.subr.bf16.mxu0 %v970
      %1423 = vmatpush1.bf16.msra.mxu0 %v969
      %1424 = vmatprep.subr.bf16.mxu0 %v974
      %1425 = vmatpush1.bf16.msra.mxu0 %v973
      %1426 = vmatprep.subr.bf16.mxu0 %v978
      %1427 = vmatpush1.bf16.msra.mxu0 %v977
      %1428 = vmatprep.subr.bf16.mxu0 0
      %1429 = vmatpush1.bf16.msra.mxu0 0
      %1430 = vmatprep.subr.bf16.mxu0 0
      %1431 = vmatpush1.bf16.msra.mxu0 0
      %1432 = vmatprep.subr.bf16.mxu0 0
      %1433 = vmatpush1.bf16.msra.mxu0 0
      %1434 = vmatprep.subr.bf16.mxu0 0
      %1435 = vmatpush1.bf16.msra.mxu0 0
      %1436 = vmatprep.subr.bf16.mxu0 0
      %1437 = vmatpush1.bf16.msra.mxu0 0
      %1438 = vmatprep.subr.bf16.mxu0 0
      %1439 = vmatpush1.bf16.msra.mxu0 0
      %1440 = vmatprep.subr.bf16.mxu0 0
      %1441 = vmatpush1.bf16.msra.mxu0 0
      %1442 = vmatprep.subr.bf16.mxu0 0
      %1443 = vmatpush1.bf16.msra.mxu0 0
      %1444 = vmatprep.mubr.bf16.mxu0 0
      %1445 = vmatmul.mubr.bf16.gmra.mrb[0].mxu0 %v1368
      %v1446 = vpop.f32.mrb[0].mxu0
      %v1447 = vadd.f32 0.0, %v1446
      %v1448 = vpop.f32.mrb[0].mxu0
      %v1449 = vadd.f32 0.0, %v1448
      %v1450 = vpop.f32.mrb[0].mxu0
      %v1451 = vadd.f32 0.0, %v1450
      %v1452 = vpop.f32.mrb[0].mxu0
      %v1453 = vadd.f32 0.0, %v1452
      %1454 = vdwg.mxu0
      %v1455 = vadd.f32 %v1360, %v1404
      %v1456 = vadd.f32 %v1361, %v1406
      %v1457 = vadd.f32 %v1362, %v1447
      %v1458 = vadd.f32 %v1363, %v1449
      %v1459 = vadd.f32 %v1364, %v1408
      %v1460 = vadd.f32 %v1365, %v1410
      %v1461 = vadd.f32 %v1366, %v1451
      %v1462 = vadd.f32 %v1367, %v1453
      %v1463 = vxor.u32 %v1455, 2147483648
      %v1464 = vxor.u32 %v1459, 2147483648
      %v1465 = vmul.f32 %v1463, 1.442695
      %v1466 = vpow.pop %v1465
      %v1467 = vmul.f32 %v1464, 1.442695
      %v1468 = vpow.pop %v1467
      %v1469 = vadd.f32 %v1466, 1.0
      %v1470 = vadd.f32 %v1468, 1.0
      %v1471 = vrcp.pop %v1469
      %v1472 = vmul.f32 1.0, %v1471
      %v1473 = vrcp.pop %v1470
      %v1474 = vmul.f32 1.0, %v1473
      %v1475 = vxor.u32 %v1456, 2147483648
      %v1476 = vxor.u32 %v1460, 2147483648
      %v1477 = vmul.f32 %v1475, 1.442695
      %v1478 = vpow.pop %v1477
      %v1479 = vmul.f32 %v1476, 1.442695
      %v1480 = vpow.pop %v1479
      %v1481 = vadd.f32 %v1478, 1.0
      %v1482 = vadd.f32 %v1480, 1.0
      %v1483 = vrcp.pop %v1481
      %v1484 = vmul.f32 1.0, %v1483
      %v1485 = vrcp.pop %v1482
      %v1486 = vmul.f32 1.0, %v1485
      %v1487 = vtanh.pop %v1457
      %v1488 = vtanh.pop %v1461
      %v1489 = vxor.u32 %v1458, 2147483648
      %v1490 = vxor.u32 %v1462, 2147483648
      %v1491 = vmul.f32 %v1489, 1.442695
      %v1492 = vpow.pop %v1491
      %v1493 = vmul.f32 %v1490, 1.442695
      %v1494 = vpow.pop %v1493
      %v1495 = vadd.f32 %v1492, 1.0
      %v1496 = vadd.f32 %v1494, 1.0
      %v1497 = vrcp.pop %v1495
      %v1498 = vmul.f32 1.0, %v1497
      %v1499 = vrcp.pop %v1496
      %v1500 = vmul.f32 1.0, %v1499
      %v1501 = vmul.f32 %v1484, %v1357
      %v1502 = vmul.f32 %v1486, %v1358
      %v1503 = vmul.f32 %v1472, %v1487
      %v1504 = vmul.f32 %v1474, %v1488
      %v1505 = vadd.f32 %v1501, %v1503
      %v1506 = vadd.f32 %v1502, %v1504
      %v1507 = vtanh.pop %v1505
      %v1508 = vtanh.pop %v1506
      %v1509 = vmul.f32 %v1498, %v1507
      %v1510 = vmul.f32 %v1500, %v1508
      %vm1511 = vcmp.gt.s32.totalorder %v841, 2
      %vm1512 = vcmp.gt.s32.totalorder %v842, 2
      %v1513 = vsel %vm1511, 1, 0
      %v1514 = vsel %vm1512, 1, 0
      %1515 = vset.pattern.permute.xlu0 0
      %1516 = vperm.xlu0 %1515, %v1513
      %v1517 = vpop.permute.xlu0 %1516
      %1518 = vset.pattern.permute.xlu0 0
      %1519 = vperm.xlu0 %1518, %v1514
      %v1520 = vpop.permute.xlu0 %1519
      %vm1521 = vcmp.eq.s32.totalorder %v1517, 1
      %vm1522 = vcmp.eq.s32.totalorder %v1520, 1
      %v1523 = vsel %vm1521, %v1509, 0.0
      %v1524 = vsel %vm1522, %v1510, 0.0
      %v1525 = vpack.c.bf16 %v1524, %v1523
      %v1527 = vunpack.c.l.b16 %v1525
      %v1528 = vunpack.c.h.b16 %v1525
      %v1529 = vpack.c.b16 %v1527, %v1527
      %v1530 = vpack.c.b16 %v1528, %v1528
      %s1533 = scalar_lea.vmem %s341, 16
      %1534 = vst [vmem:[%s1533] sm:$0xf] %v1529
      %1535 = vst [vmem:[%s1533 + $0x4] sm:$0xf] %v1530
      %v1536 = vsel %vm1521, %v1509, %v1355
      %v1537 = vsel %vm1522, %v1510, %v1356
      %v1538 = vsel %vm1521, %v1505, %v1357
      %v1539 = vsel %vm1522, %v1506, %v1358
      %s1540 = scalar_lea.vmem [#allocation2], 192
      %v1541 = vld [vmem:[%s1540] sm:$0xff]
      %v1542 = vld [vmem:[%s1540 + $0x8] sm:$0xff]
      %v1543 = vld [vmem:[%s1540 + $0x10] sm:$0xff]
      %v1544 = vld [vmem:[%s1540 + $0x18] sm:$0xff]
      %v1545 = vld [vmem:[%s1540 + $0x20] sm:$0xff]
      %v1546 = vld [vmem:[%s1540 + $0x28] sm:$0xff]
      %v1547 = vld [vmem:[%s1540 + $0x30] sm:$0xff]
      %v1548 = vld [vmem:[%s1540 + $0x38] sm:$0xff]
      %v1549 = vpack.c.bf16 %v1537, %v1536
      %1550 = vmatprep.subr.bf16.mxu0 %v948
      %1551 = vmatpush1.bf16.msra.mxu0 %v947
      %1552 = vmatprep.subr.bf16.mxu0 %v952
      %1553 = vmatpush1.bf16.msra.mxu0 %v951
      %1554 = vmatprep.subr.bf16.mxu0 %v956
      %1555 = vmatpush1.bf16.msra.mxu0 %v955
      %1556 = vmatprep.subr.bf16.mxu0 %v960
      %1557 = vmatpush1.bf16.msra.mxu0 %v959
      %1558 = vmatprep.subr.bf16.mxu0 %v964
      %1559 = vmatpush1.bf16.msra.mxu0 %v963
      %1560 = vmatprep.subr.bf16.mxu0 %v968
      %1561 = vmatpush1.bf16.msra.mxu0 %v967
      %1562 = vmatprep.subr.bf16.mxu0 %v972
      %1563 = vmatpush1.bf16.msra.mxu0 %v971
      %1564 = vmatprep.subr.bf16.mxu0 %v976
      %1565 = vmatpush1.bf16.msra.mxu0 %v975
      %1566 = vmatprep.subr.bf16.mxu0 0
      %1567 = vmatpush1.bf16.msra.mxu0 0
      %1568 = vmatprep.subr.bf16.mxu0 0
      %1569 = vmatpush1.bf16.msra.mxu0 0
      %1570 = vmatprep.subr.bf16.mxu0 0
      %1571 = vmatpush1.bf16.msra.mxu0 0
      %1572 = vmatprep.subr.bf16.mxu0 0
      %1573 = vmatpush1.bf16.msra.mxu0 0
      %1574 = vmatprep.subr.bf16.mxu0 0
      %1575 = vmatpush1.bf16.msra.mxu0 0
      %1576 = vmatprep.subr.bf16.mxu0 0
      %1577 = vmatpush1.bf16.msra.mxu0 0
      %1578 = vmatprep.subr.bf16.mxu0 0
      %1579 = vmatpush1.bf16.msra.mxu0 0
      %1580 = vmatprep.subr.bf16.mxu0 0
      %1581 = vmatpush1.bf16.msra.mxu0 0
      %1582 = vmatprep.mubr.bf16.mxu0 0
      %1583 = vmatmul.mubr.bf16.gmra.mrb[0].mxu0 %v1549
      %v1584 = vpop.f32.mrb[0].mxu0
      %v1585 = vadd.f32 0.0, %v1584
      %v1586 = vpop.f32.mrb[0].mxu0
      %v1587 = vadd.f32 0.0, %v1586
      %v1588 = vpop.f32.mrb[0].mxu0
      %v1589 = vadd.f32 0.0, %v1588
      %v1590 = vpop.f32.mrb[0].mxu0
      %v1591 = vadd.f32 0.0, %v1590
      %1592 = vdwg.mxu0
      %1593 = vmatprep.subr.bf16.mxu0 %v950
      %1594 = vmatpush1.bf16.msra.mxu0 %v949
      %1595 = vmatprep.subr.bf16.mxu0 %v954
      %1596 = vmatpush1.bf16.msra.mxu0 %v953
      %1597 = vmatprep.subr.bf16.mxu0 %v958
      %1598 = vmatpush1.bf16.msra.mxu0 %v957
      %1599 = vmatprep.subr.bf16.mxu0 %v962
      %1600 = vmatpush1.bf16.msra.mxu0 %v961
      %1601 = vmatprep.subr.bf16.mxu0 %v966
      %1602 = vmatpush1.bf16.msra.mxu0 %v965
      %1603 = vmatprep.subr.bf16.mxu0 %v970
      %1604 = vmatpush1.bf16.msra.mxu0 %v969
      %1605 = vmatprep.subr.bf16.mxu0 %v974
      %1606 = vmatpush1.bf16.msra.mxu0 %v973
      %1607 = vmatprep.subr.bf16.mxu0 %v978
      %1608 = vmatpush1.bf16.msra.mxu0 %v977
      %1609 = vmatprep.subr.bf16.mxu0 0
      %1610 = vmatpush1.bf16.msra.mxu0 0
      %1611 = vmatprep.subr.bf16.mxu0 0
      %1612 = vmatpush1.bf16.msra.mxu0 0
      %1613 = vmatprep.subr.bf16.mxu0 0
      %1614 = vmatpush1.bf16.msra.mxu0 0
      %1615 = vmatprep.subr.bf16.mxu0 0
      %1616 = vmatpush1.bf16.msra.mxu0 0
      %1617 = vmatprep.subr.bf16.mxu0 0
      %1618 = vmatpush1.bf16.msra.mxu0 0
      %1619 = vmatprep.subr.bf16.mxu0 0
      %1620 = vmatpush1.bf16.msra.mxu0 0
      %1621 = vmatprep.subr.bf16.mxu0 0
      %1622 = vmatpush1.bf16.msra.mxu0 0
      %1623 = vmatprep.subr.bf16.mxu0 0
      %1624 = vmatpush1.bf16.msra.mxu0 0
      %1625 = vmatprep.mubr.bf16.mxu0 0
      %1626 = vmatmul.mubr.bf16.gmra.mrb[0].mxu0 %v1549
      %v1627 = vpop.f32.mrb[0].mxu0
      %v1628 = vadd.f32 0.0, %v1627
      %v1629 = vpop.f32.mrb[0].mxu0
      %v1630 = vadd.f32 0.0, %v1629
      %v1631 = vpop.f32.mrb[0].mxu0
      %v1632 = vadd.f32 0.0, %v1631
      %v1633 = vpop.f32.mrb[0].mxu0
      %v1634 = vadd.f32 0.0, %v1633
      %1635 = vdwg.mxu0
      %v1636 = vadd.f32 %v1541, %v1585
      %v1637 = vadd.f32 %v1542, %v1587
      %v1638 = vadd.f32 %v1543, %v1628
      %v1639 = vadd.f32 %v1544, %v1630
      %v1640 = vadd.f32 %v1545, %v1589
      %v1641 = vadd.f32 %v1546, %v1591
      %v1642 = vadd.f32 %v1547, %v1632
      %v1643 = vadd.f32 %v1548, %v1634
      %v1644 = vxor.u32 %v1636, 2147483648
      %v1645 = vxor.u32 %v1640, 2147483648
      %v1646 = vmul.f32 %v1644, 1.442695
      %v1647 = vpow.pop %v1646
      %v1648 = vmul.f32 %v1645, 1.442695
      %v1649 = vpow.pop %v1648
      %v1650 = vadd.f32 %v1647, 1.0
      %v1651 = vadd.f32 %v1649, 1.0
      %v1652 = vrcp.pop %v1650
      %v1653 = vmul.f32 1.0, %v1652
      %v1654 = vrcp.pop %v1651
      %v1655 = vmul.f32 1.0, %v1654
      %v1656 = vxor.u32 %v1637, 2147483648
      %v1657 = vxor.u32 %v1641, 2147483648
      %v1658 = vmul.f32 %v1656, 1.442695
      %v1659 = vpow.pop %v1658
      %v1660 = vmul.f32 %v1657, 1.442695
      %v1661 = vpow.pop %v1660
      %v1662 = vadd.f32 %v1659, 1.0
      %v1663 = vadd.f32 %v1661, 1.0
      %v1664 = vrcp.pop %v1662
      %v1665 = vmul.f32 1.0, %v1664
      %v1666 = vrcp.pop %v1663
      %v1667 = vmul.f32 1.0, %v1666
      %v1668 = vtanh.pop %v1638
      %v1669 = vtanh.pop %v1642
      %v1670 = vxor.u32 %v1639, 2147483648
      %v1671 = vxor.u32 %v1643, 2147483648
      %v1672 = vmul.f32 %v1670, 1.442695
      %v1673 = vpow.pop %v1672
      %v1674 = vmul.f32 %v1671, 1.442695
      %v1675 = vpow.pop %v1674
      %v1676 = vadd.f32 %v1673, 1.0
      %v1677 = vadd.f32 %v1675, 1.0
      %v1678 = vrcp.pop %v1676
      %v1679 = vmul.f32 1.0, %v1678
      %v1680 = vrcp.pop %v1677
      %v1681 = vmul.f32 1.0, %v1680
      %v1682 = vmul.f32 %v1665, %v1538
      %v1683 = vmul.f32 %v1667, %v1539
      %v1684 = vmul.f32 %v1653, %v1668
      %v1685 = vmul.f32 %v1655, %v1669
      %v1686 = vadd.f32 %v1682, %v1684
      %v1687 = vadd.f32 %v1683, %v1685
      %v1688 = vtanh.pop %v1686
      %v1689 = vtanh.pop %v1687
      %v1690 = vmul.f32 %v1679, %v1688
      %v1691 = vmul.f32 %v1681, %v1689
      %vm1692 = vcmp.gt.s32.totalorder %v841, 3
      %vm1693 = vcmp.gt.s32.totalorder %v842, 3
      %v1694 = vsel %vm1692, 1, 0
      %v1695 = vsel %vm1693, 1, 0
      %1696 = vset.pattern.permute.xlu0 0
      %1697 = vperm.xlu0 %1696, %v1694
      %v1698 = vpop.permute.xlu0 %1697
      %1699 = vset.pattern.permute.xlu0 0
      %1700 = vperm.xlu0 %1699, %v1695
      %v1701 = vpop.permute.xlu0 %1700
      %vm1702 = vcmp.eq.s32.totalorder %v1698, 1
      %vm1703 = vcmp.eq.s32.totalorder %v1701, 1
      %v1704 = vsel %vm1702, %v1690, 0.0
      %v1705 = vsel %vm1703, %v1691, 0.0
      %v1706 = vpack.c.bf16 %v1705, %v1704
      %v1708 = vunpack.c.l.b16 %v1706
      %v1709 = vunpack.c.h.b16 %v1706
      %v1710 = vpack.c.b16 %v1708, %v1708
      %v1711 = vpack.c.b16 %v1709, %v1709
      %s1714 = scalar_lea.vmem %s341, 24
      %1715 = vst [vmem:[%s1714] sm:$0xf] %v1710
      %1716 = vst [vmem:[%s1714 + $0x4] sm:$0xf] %v1711
      %v1717 = vsel %vm1702, %v1690, %v1536
      %v1718 = vsel %vm1703, %v1691, %v1537
      %v1719 = vsel %vm1702, %v1686, %v1538
      %v1720 = vsel %vm1703, %v1687, %v1539
      %s1721 = scalar_lea.vmem [#allocation2], 256
      %v1722 = vld [vmem:[%s1721] sm:$0xff]
      %v1723 = vld [vmem:[%s1721 + $0x8] sm:$0xff]
      %v1724 = vld [vmem:[%s1721 + $0x10] sm:$0xff]
      %v1725 = vld [vmem:[%s1721 + $0x18] sm:$0xff]
      %v1726 = vld [vmem:[%s1721 + $0x20] sm:$0xff]
      %v1727 = vld [vmem:[%s1721 + $0x28] sm:$0xff]
      %v1728 = vld [vmem:[%s1721 + $0x30] sm:$0xff]
      %v1729 = vld [vmem:[%s1721 + $0x38] sm:$0xff]
      %v1730 = vpack.c.bf16 %v1718, %v1717
      %1731 = vmatprep.subr.bf16.mxu0 %v948
      %1732 = vmatpush1.bf16.msra.mxu0 %v947
      %1733 = vmatprep.subr.bf16.mxu0 %v952
      %1734 = vmatpush1.bf16.msra.mxu0 %v951
      %1735 = vmatprep.subr.bf16.mxu0 %v956
      %1736 = vmatpush1.bf16.msra.mxu0 %v955
      %1737 = vmatprep.subr.bf16.mxu0 %v960
      %1738 = vmatpush1.bf16.msra.mxu0 %v959
      %1739 = vmatprep.subr.bf16.mxu0 %v964
      %1740 = vmatpush1.bf16.msra.mxu0 %v963
      %1741 = vmatprep.subr.bf16.mxu0 %v968
      %1742 = vmatpush1.bf16.msra.mxu0 %v967
      %1743 = vmatprep.subr.bf16.mxu0 %v972
      %1744 = vmatpush1.bf16.msra.mxu0 %v971
      %1745 = vmatprep.subr.bf16.mxu0 %v976
      %1746 = vmatpush1.bf16.msra.mxu0 %v975
      %1747 = vmatprep.subr.bf16.mxu0 0
      %1748 = vmatpush1.bf16.msra.mxu0 0
      %1749 = vmatprep.subr.bf16.mxu0 0
      %1750 = vmatpush1.bf16.msra.mxu0 0
      %1751 = vmatprep.subr.bf16.mxu0 0
      %1752 = vmatpush1.bf16.msra.mxu0 0
      %1753 = vmatprep.subr.bf16.mxu0 0
      %1754 = vmatpush1.bf16.msra.mxu0 0
      %1755 = vmatprep.subr.bf16.mxu0 0
      %1756 = vmatpush1.bf16.msra.mxu0 0
      %1757 = vmatprep.subr.bf16.mxu0 0
      %1758 = vmatpush1.bf16.msra.mxu0 0
      %1759 = vmatprep.subr.bf16.mxu0 0
      %1760 = vmatpush1.bf16.msra.mxu0 0
      %1761 = vmatprep.subr.bf16.mxu0 0
      %1762 = vmatpush1.bf16.msra.mxu0 0
      %1763 = vmatprep.mubr.bf16.mxu0 0
      %1764 = vmatmul.mubr.bf16.gmra.mrb[0].mxu0 %v1730
      %v1765 = vpop.f32.mrb[0].mxu0
      %v1766 = vadd.f32 0.0, %v1765
      %v1767 = vpop.f32.mrb[0].mxu0
      %v1768 = vadd.f32 0.0, %v1767
      %v1769 = vpop.f32.mrb[0].mxu0
      %v1770 = vadd.f32 0.0, %v1769
      %v1771 = vpop.f32.mrb[0].mxu0
      %v1772 = vadd.f32 0.0, %v1771
      %1773 = vdwg.mxu0
      %1774 = vmatprep.subr.bf16.mxu0 %v950
      %1775 = vmatpush1.bf16.msra.mxu0 %v949
      %1776 = vmatprep.subr.bf16.mxu0 %v954
      %1777 = vmatpush1.bf16.msra.mxu0 %v953
      %1778 = vmatprep.subr.bf16.mxu0 %v958
      %1779 = vmatpush1.bf16.msra.mxu0 %v957
      %1780 = vmatprep.subr.bf16.mxu0 %v962
      %1781 = vmatpush1.bf16.msra.mxu0 %v961
      %1782 = vmatprep.subr.bf16.mxu0 %v966
      %1783 = vmatpush1.bf16.msra.mxu0 %v965
      %1784 = vmatprep.subr.bf16.mxu0 %v970
      %1785 = vmatpush1.bf16.msra.mxu0 %v969
      %1786 = vmatprep.subr.bf16.mxu0 %v974
      %1787 = vmatpush1.bf16.msra.mxu0 %v973
      %1788 = vmatprep.subr.bf16.mxu0 %v978
      %1789 = vmatpush1.bf16.msra.mxu0 %v977
      %1790 = vmatprep.subr.bf16.mxu0 0
      %1791 = vmatpush1.bf16.msra.mxu0 0
      %1792 = vmatprep.subr.bf16.mxu0 0
      %1793 = vmatpush1.bf16.msra.mxu0 0
      %1794 = vmatprep.subr.bf16.mxu0 0
      %1795 = vmatpush1.bf16.msra.mxu0 0
      %1796 = vmatprep.subr.bf16.mxu0 0
      %1797 = vmatpush1.bf16.msra.mxu0 0
      %1798 = vmatprep.subr.bf16.mxu0 0
      %1799 = vmatpush1.bf16.msra.mxu0 0
      %1800 = vmatprep.subr.bf16.mxu0 0
      %1801 = vmatpush1.bf16.msra.mxu0 0
      %1802 = vmatprep.subr.bf16.mxu0 0
      %1803 = vmatpush1.bf16.msra.mxu0 0
      %1804 = vmatprep.subr.bf16.mxu0 0
      %1805 = vmatpush1.bf16.msra.mxu0 0
      %1806 = vmatprep.mubr.bf16.mxu0 0
      %1807 = vmatmul.mubr.bf16.gmra.mrb[0].mxu0 %v1730
      %v1808 = vpop.f32.mrb[0].mxu0
      %v1809 = vadd.f32 0.0, %v1808
      %v1810 = vpop.f32.mrb[0].mxu0
      %v1811 = vadd.f32 0.0, %v1810
      %v1812 = vpop.f32.mrb[0].mxu0
      %v1813 = vadd.f32 0.0, %v1812
      %v1814 = vpop.f32.mrb[0].mxu0
      %v1815 = vadd.f32 0.0, %v1814
      %1816 = vdwg.mxu0
      %v1817 = vadd.f32 %v1722, %v1766
      %v1818 = vadd.f32 %v1723, %v1768
      %v1819 = vadd.f32 %v1724, %v1809
      %v1820 = vadd.f32 %v1725, %v1811
      %v1821 = vadd.f32 %v1726, %v1770
      %v1822 = vadd.f32 %v1727, %v1772
      %v1823 = vadd.f32 %v1728, %v1813
      %v1824 = vadd.f32 %v1729, %v1815
      %v1825 = vxor.u32 %v1817, 2147483648
      %v1826 = vxor.u32 %v1821, 2147483648
      %v1827 = vmul.f32 %v1825, 1.442695
      %v1828 = vpow.pop %v1827
      %v1829 = vmul.f32 %v1826, 1.442695
      %v1830 = vpow.pop %v1829
      %v1831 = vadd.f32 %v1828, 1.0
      %v1832 = vadd.f32 %v1830, 1.0
      %v1833 = vrcp.pop %v1831
      %v1834 = vmul.f32 1.0, %v1833
      %v1835 = vrcp.pop %v1832
      %v1836 = vmul.f32 1.0, %v1835
      %v1837 = vxor.u32 %v1818, 2147483648
      %v1838 = vxor.u32 %v1822, 2147483648
      %v1839 = vmul.f32 %v1837, 1.442695
      %v1840 = vpow.pop %v1839
      %v1841 = vmul.f32 %v1838, 1.442695
      %v1842 = vpow.pop %v1841
      %v1843 = vadd.f32 %v1840, 1.0
      %v1844 = vadd.f32 %v1842, 1.0
      %v1845 = vrcp.pop %v1843
      %v1846 = vmul.f32 1.0, %v1845
      %v1847 = vrcp.pop %v1844
      %v1848 = vmul.f32 1.0, %v1847
      %v1849 = vtanh.pop %v1819
      %v1850 = vtanh.pop %v1823
      %v1851 = vxor.u32 %v1820, 2147483648
      %v1852 = vxor.u32 %v1824, 2147483648
      %v1853 = vmul.f32 %v1851, 1.442695
      %v1854 = vpow.pop %v1853
      %v1855 = vmul.f32 %v1852, 1.442695
      %v1856 = vpow.pop %v1855
      %v1857 = vadd.f32 %v1854, 1.0
      %v1858 = vadd.f32 %v1856, 1.0
      %v1859 = vrcp.pop %v1857
      %v1860 = vmul.f32 1.0, %v1859
      %v1861 = vrcp.pop %v1858
      %v1862 = vmul.f32 1.0, %v1861
      %v1863 = vmul.f32 %v1846, %v1719
      %v1864 = vmul.f32 %v1848, %v1720
      %v1865 = vmul.f32 %v1834, %v1849
      %v1866 = vmul.f32 %v1836, %v1850
      %v1867 = vadd.f32 %v1863, %v1865
      %v1868 = vadd.f32 %v1864, %v1866
      %v1869 = vtanh.pop %v1867
      %v1870 = vtanh.pop %v1868
      %v1871 = vmul.f32 %v1860, %v1869
      %v1872 = vmul.f32 %v1862, %v1870
      %vm1873 = vcmp.gt.s32.totalorder %v841, 4
      %vm1874 = vcmp.gt.s32.totalorder %v842, 4
      %v1875 = vsel %vm1873, 1, 0
      %v1876 = vsel %vm1874, 1, 0
      %1877 = vset.pattern.permute.xlu0 0
      %1878 = vperm.xlu0 %1877, %v1875
      %v1879 = vpop.permute.xlu0 %1878
      %1880 = vset.pattern.permute.xlu0 0
      %1881 = vperm.xlu0 %1880, %v1876
      %v1882 = vpop.permute.xlu0 %1881
      %vm1883 = vcmp.eq.s32.totalorder %v1879, 1
      %vm1884 = vcmp.eq.s32.totalorder %v1882, 1
      %v1885 = vsel %vm1883, %v1871, 0.0
      %v1886 = vsel %vm1884, %v1872, 0.0
      %v1887 = vpack.c.bf16 %v1886, %v1885
      %v1889 = vunpack.c.l.b16 %v1887
      %v1890 = vunpack.c.h.b16 %v1887
      %v1891 = vpack.c.b16 %v1889, %v1889
      %v1892 = vpack.c.b16 %v1890, %v1890
      %s1895 = scalar_lea.vmem %s341, 32
      %1896 = vst [vmem:[%s1895] sm:$0xf] %v1891
      %1897 = vst [vmem:[%s1895 + $0x4] sm:$0xf] %v1892
      %v1898 = vsel %vm1883, %v1871, %v1717
      %v1899 = vsel %vm1884, %v1872, %v1718
      %v1900 = vsel %vm1883, %v1867, %v1719
      %v1901 = vsel %vm1884, %v1868, %v1720
      %s1902 = scalar_lea.vmem [#allocation2], 320
      %v1903 = vld [vmem:[%s1902] sm:$0xff]
      %v1904 = vld [vmem:[%s1902 + $0x8] sm:$0xff]
      %v1905 = vld [vmem:[%s1902 + $0x10] sm:$0xff]
      %v1906 = vld [vmem:[%s1902 + $0x18] sm:$0xff]
      %v1907 = vld [vmem:[%s1902 + $0x20] sm:$0xff]
      %v1908 = vld [vmem:[%s1902 + $0x28] sm:$0xff]
      %v1909 = vld [vmem:[%s1902 + $0x30] sm:$0xff]
      %v1910 = vld [vmem:[%s1902 + $0x38] sm:$0xff]
      %v1911 = vpack.c.bf16 %v1899, %v1898
      %1912 = vmatprep.subr.bf16.mxu0 %v948
      %1913 = vmatpush1.bf16.msra.mxu0 %v947
      %1914 = vmatprep.subr.bf16.mxu0 %v952
      %1915 = vmatpush1.bf16.msra.mxu0 %v951
      %1916 = vmatprep.subr.bf16.mxu0 %v956
      %1917 = vmatpush1.bf16.msra.mxu0 %v955
      %1918 = vmatprep.subr.bf16.mxu0 %v960
      %1919 = vmatpush1.bf16.msra.mxu0 %v959
      %1920 = vmatprep.subr.bf16.mxu0 %v964
      %1921 = vmatpush1.bf16.msra.mxu0 %v963
      %1922 = vmatprep.subr.bf16.mxu0 %v968
      %1923 = vmatpush1.bf16.msra.mxu0 %v967
      %1924 = vmatprep.subr.bf16.mxu0 %v972
      %1925 = vmatpush1.bf16.msra.mxu0 %v971
      %1926 = vmatprep.subr.bf16.mxu0 %v976
      %1927 = vmatpush1.bf16.msra.mxu0 %v975
      %1928 = vmatprep.subr.bf16.mxu0 0
      %1929 = vmatpush1.bf16.msra.mxu0 0
      %1930 = vmatprep.subr.bf16.mxu0 0
      %1931 = vmatpush1.bf16.msra.mxu0 0
      %1932 = vmatprep.subr.bf16.mxu0 0
      %1933 = vmatpush1.bf16.msra.mxu0 0
      %1934 = vmatprep.subr.bf16.mxu0 0
      %1935 = vmatpush1.bf16.msra.mxu0 0
      %1936 = vmatprep.subr.bf16.mxu0 0
      %1937 = vmatpush1.bf16.msra.mxu0 0
      %1938 = vmatprep.subr.bf16.mxu0 0
      %1939 = vmatpush1.bf16.msra.mxu0 0
      %1940 = vmatprep.subr.bf16.mxu0 0
      %1941 = vmatpush1.bf16.msra.mxu0 0
      %1942 = vmatprep.subr.bf16.mxu0 0
      %1943 = vmatpush1.bf16.msra.mxu0 0
      %1944 = vmatprep.mubr.bf16.mxu0 0
      %1945 = vmatmul.mubr.bf16.gmra.mrb[0].mxu0 %v1911
      %v1946 = vpop.f32.mrb[0].mxu0
      %v1947 = vadd.f32 0.0, %v1946
      %v1948 = vpop.f32.mrb[0].mxu0
      %v1949 = vadd.f32 0.0, %v1948
      %v1950 = vpop.f32.mrb[0].mxu0
      %v1951 = vadd.f32 0.0, %v1950
      %v1952 = vpop.f32.mrb[0].mxu0
      %v1953 = vadd.f32 0.0, %v1952
      %1954 = vdwg.mxu0
      %1955 = vmatprep.subr.bf16.mxu0 %v950
      %1956 = vmatpush1.bf16.msra.mxu0 %v949
      %1957 = vmatprep.subr.bf16.mxu0 %v954
      %1958 = vmatpush1.bf16.msra.mxu0 %v953
      %1959 = vmatprep.subr.bf16.mxu0 %v958
      %1960 = vmatpush1.bf16.msra.mxu0 %v957
      %1961 = vmatprep.subr.bf16.mxu0 %v962
      %1962 = vmatpush1.bf16.msra.mxu0 %v961
      %1963 = vmatprep.subr.bf16.mxu0 %v966
      %1964 = vmatpush1.bf16.msra.mxu0 %v965
      %1965 = vmatprep.subr.bf16.mxu0 %v970
      %1966 = vmatpush1.bf16.msra.mxu0 %v969
      %1967 = vmatprep.subr.bf16.mxu0 %v974
      %1968 = vmatpush1.bf16.msra.mxu0 %v973
      %1969 = vmatprep.subr.bf16.mxu0 %v978
      %1970 = vmatpush1.bf16.msra.mxu0 %v977
      %1971 = vmatprep.subr.bf16.mxu0 0
      %1972 = vmatpush1.bf16.msra.mxu0 0
      %1973 = vmatprep.subr.bf16.mxu0 0
      %1974 = vmatpush1.bf16.msra.mxu0 0
      %1975 = vmatprep.subr.bf16.mxu0 0
      %1976 = vmatpush1.bf16.msra.mxu0 0
      %1977 = vmatprep.subr.bf16.mxu0 0
      %1978 = vmatpush1.bf16.msra.mxu0 0
      %1979 = vmatprep.subr.bf16.mxu0 0
      %1980 = vmatpush1.bf16.msra.mxu0 0
      %1981 = vmatprep.subr.bf16.mxu0 0
      %1982 = vmatpush1.bf16.msra.mxu0 0
      %1983 = vmatprep.subr.bf16.mxu0 0
      %1984 = vmatpush1.bf16.msra.mxu0 0
      %1985 = vmatprep.subr.bf16.mxu0 0
      %1986 = vmatpush1.bf16.msra.mxu0 0
      %1987 = vmatprep.mubr.bf16.mxu0 0
      %1988 = vmatmul.mubr.bf16.gmra.mrb[0].mxu0 %v1911
      %v1989 = vpop.f32.mrb[0].mxu0
      %v1990 = vadd.f32 0.0, %v1989
      %v1991 = vpop.f32.mrb[0].mxu0
      %v1992 = vadd.f32 0.0, %v1991
      %v1993 = vpop.f32.mrb[0].mxu0
      %v1994 = vadd.f32 0.0, %v1993
      %v1995 = vpop.f32.mrb[0].mxu0
      %v1996 = vadd.f32 0.0, %v1995
      %1997 = vdwg.mxu0
      %v1998 = vadd.f32 %v1903, %v1947
      %v1999 = vadd.f32 %v1904, %v1949
      %v2000 = vadd.f32 %v1905, %v1990
      %v2001 = vadd.f32 %v1906, %v1992
      %v2002 = vadd.f32 %v1907, %v1951
      %v2003 = vadd.f32 %v1908, %v1953
      %v2004 = vadd.f32 %v1909, %v1994
      %v2005 = vadd.f32 %v1910, %v1996
      %v2006 = vxor.u32 %v1998, 2147483648
      %v2007 = vxor.u32 %v2002, 2147483648
      %v2008 = vmul.f32 %v2006, 1.442695
      %v2009 = vpow.pop %v2008
      %v2010 = vmul.f32 %v2007, 1.442695
      %v2011 = vpow.pop %v2010
      %v2012 = vadd.f32 %v2009, 1.0
      %v2013 = vadd.f32 %v2011, 1.0
      %v2014 = vrcp.pop %v2012
      %v2015 = vmul.f32 1.0, %v2014
      %v2016 = vrcp.pop %v2013
      %v2017 = vmul.f32 1.0, %v2016
      %v2018 = vxor.u32 %v1999, 2147483648
      %v2019 = vxor.u32 %v2003, 2147483648
      %v2020 = vmul.f32 %v2018, 1.442695
      %v2021 = vpow.pop %v2020
      %v2022 = vmul.f32 %v2019, 1.442695
      %v2023 = vpow.pop %v2022
      %v2024 = vadd.f32 %v2021, 1.0
      %v2025 = vadd.f32 %v2023, 1.0
      %v2026 = vrcp.pop %v2024
      %v2027 = vmul.f32 1.0, %v2026
      %v2028 = vrcp.pop %v2025
      %v2029 = vmul.f32 1.0, %v2028
      %v2030 = vtanh.pop %v2000
      %v2031 = vtanh.pop %v2004
      %v2032 = vxor.u32 %v2001, 2147483648
      %v2033 = vxor.u32 %v2005, 2147483648
      %v2034 = vmul.f32 %v2032, 1.442695
      %v2035 = vpow.pop %v2034
      %v2036 = vmul.f32 %v2033, 1.442695
      %v2037 = vpow.pop %v2036
      %v2038 = vadd.f32 %v2035, 1.0
      %v2039 = vadd.f32 %v2037, 1.0
      %v2040 = vrcp.pop %v2038
      %v2041 = vmul.f32 1.0, %v2040
      %v2042 = vrcp.pop %v2039
      %v2043 = vmul.f32 1.0, %v2042
      %v2044 = vmul.f32 %v2027, %v1900
      %v2045 = vmul.f32 %v2029, %v1901
      %v2046 = vmul.f32 %v2015, %v2030
      %v2047 = vmul.f32 %v2017, %v2031
      %v2048 = vadd.f32 %v2044, %v2046
      %v2049 = vadd.f32 %v2045, %v2047
      %v2050 = vtanh.pop %v2048
      %v2051 = vtanh.pop %v2049
      %v2052 = vmul.f32 %v2041, %v2050
      %v2053 = vmul.f32 %v2043, %v2051
      %vm2054 = vcmp.gt.s32.totalorder %v841, 5
      %vm2055 = vcmp.gt.s32.totalorder %v842, 5
      %v2056 = vsel %vm2054, 1, 0
      %v2057 = vsel %vm2055, 1, 0
      %2058 = vset.pattern.permute.xlu0 0
      %2059 = vperm.xlu0 %2058, %v2056
      %v2060 = vpop.permute.xlu0 %2059
      %2061 = vset.pattern.permute.xlu0 0
      %2062 = vperm.xlu0 %2061, %v2057
      %v2063 = vpop.permute.xlu0 %2062
      %vm2064 = vcmp.eq.s32.totalorder %v2060, 1
      %vm2065 = vcmp.eq.s32.totalorder %v2063, 1
      %v2066 = vsel %vm2064, %v2052, 0.0
      %v2067 = vsel %vm2065, %v2053, 0.0
      %v2068 = vpack.c.bf16 %v2067, %v2066
      %v2070 = vunpack.c.l.b16 %v2068
      %v2071 = vunpack.c.h.b16 %v2068
      %v2072 = vpack.c.b16 %v2070, %v2070
      %v2073 = vpack.c.b16 %v2071, %v2071
      %s2076 = scalar_lea.vmem %s341, 40
      %2077 = vst [vmem:[%s2076] sm:$0xf] %v2072
      %2078 = vst [vmem:[%s2076 + $0x4] sm:$0xf] %v2073
      %v2079 = vsel %vm2064, %v2052, %v1898
      %v2080 = vsel %vm2065, %v2053, %v1899
      %v2081 = vsel %vm2064, %v2048, %v1900
      %v2082 = vsel %vm2065, %v2049, %v1901
      %s2083 = scalar_lea.vmem [#allocation2], 384
      %v2084 = vld [vmem:[%s2083] sm:$0xff]
      %v2085 = vld [vmem:[%s2083 + $0x8] sm:$0xff]
      %v2086 = vld [vmem:[%s2083 + $0x10] sm:$0xff]
      %v2087 = vld [vmem:[%s2083 + $0x18] sm:$0xff]
      %v2088 = vld [vmem:[%s2083 + $0x20] sm:$0xff]
      %v2089 = vld [vmem:[%s2083 + $0x28] sm:$0xff]
      %v2090 = vld [vmem:[%s2083 + $0x30] sm:$0xff]
      %v2091 = vld [vmem:[%s2083 + $0x38] sm:$0xff]
      %v2092 = vpack.c.bf16 %v2080, %v2079
      %2093 = vmatprep.subr.bf16.mxu0 %v948
      %2094 = vmatpush1.bf16.msra.mxu0 %v947
      %2095 = vmatprep.subr.bf16.mxu0 %v952
      %2096 = vmatpush1.bf16.msra.mxu0 %v951
      %2097 = vmatprep.subr.bf16.mxu0 %v956
      %2098 = vmatpush1.bf16.msra.mxu0 %v955
      %2099 = vmatprep.subr.bf16.mxu0 %v960
      %2100 = vmatpush1.bf16.msra.mxu0 %v959
      %2101 = vmatprep.subr.bf16.mxu0 %v964
      %2102 = vmatpush1.bf16.msra.mxu0 %v963
      %2103 = vmatprep.subr.bf16.mxu0 %v968
      %2104 = vmatpush1.bf16.msra.mxu0 %v967
      %2105 = vmatprep.subr.bf16.mxu0 %v972
      %2106 = vmatpush1.bf16.msra.mxu0 %v971
      %2107 = vmatprep.subr.bf16.mxu0 %v976
      %2108 = vmatpush1.bf16.msra.mxu0 %v975
      %2109 = vmatprep.subr.bf16.mxu0 0
      %2110 = vmatpush1.bf16.msra.mxu0 0
      %2111 = vmatprep.subr.bf16.mxu0 0
      %2112 = vmatpush1.bf16.msra.mxu0 0
      %2113 = vmatprep.subr.bf16.mxu0 0
      %2114 = vmatpush1.bf16.msra.mxu0 0
      %2115 = vmatprep.subr.bf16.mxu0 0
      %2116 = vmatpush1.bf16.msra.mxu0 0
      %2117 = vmatprep.subr.bf16.mxu0 0
      %2118 = vmatpush1.bf16.msra.mxu0 0
      %2119 = vmatprep.subr.bf16.mxu0 0
      %2120 = vmatpush1.bf16.msra.mxu0 0
      %2121 = vmatprep.subr.bf16.mxu0 0
      %2122 = vmatpush1.bf16.msra.mxu0 0
      %2123 = vmatprep.subr.bf16.mxu0 0
      %2124 = vmatpush1.bf16.msra.mxu0 0
      %2125 = vmatprep.mubr.bf16.mxu0 0
      %2126 = vmatmul.mubr.bf16.gmra.mrb[0].mxu0 %v2092
      %v2127 = vpop.f32.mrb[0].mxu0
      %v2128 = vadd.f32 0.0, %v2127
      %v2129 = vpop.f32.mrb[0].mxu0
      %v2130 = vadd.f32 0.0, %v2129
      %v2131 = vpop.f32.mrb[0].mxu0
      %v2132 = vadd.f32 0.0, %v2131
      %v2133 = vpop.f32.mrb[0].mxu0
      %v2134 = vadd.f32 0.0, %v2133
      %2135 = vdwg.mxu0
      %2136 = vmatprep.subr.bf16.mxu0 %v950
      %2137 = vmatpush1.bf16.msra.mxu0 %v949
      %2138 = vmatprep.subr.bf16.mxu0 %v954
      %2139 = vmatpush1.bf16.msra.mxu0 %v953
      %2140 = vmatprep.subr.bf16.mxu0 %v958
      %2141 = vmatpush1.bf16.msra.mxu0 %v957
      %2142 = vmatprep.subr.bf16.mxu0 %v962
      %2143 = vmatpush1.bf16.msra.mxu0 %v961
      %2144 = vmatprep.subr.bf16.mxu0 %v966
      %2145 = vmatpush1.bf16.msra.mxu0 %v965
      %2146 = vmatprep.subr.bf16.mxu0 %v970
      %2147 = vmatpush1.bf16.msra.mxu0 %v969
      %2148 = vmatprep.subr.bf16.mxu0 %v974
      %2149 = vmatpush1.bf16.msra.mxu0 %v973
      %2150 = vmatprep.subr.bf16.mxu0 %v978
      %2151 = vmatpush1.bf16.msra.mxu0 %v977
      %2152 = vmatprep.subr.bf16.mxu0 0
      %2153 = vmatpush1.bf16.msra.mxu0 0
      %2154 = vmatprep.subr.bf16.mxu0 0
      %2155 = vmatpush1.bf16.msra.mxu0 0
      %2156 = vmatprep.subr.bf16.mxu0 0
      %2157 = vmatpush1.bf16.msra.mxu0 0
      %2158 = vmatprep.subr.bf16.mxu0 0
      %2159 = vmatpush1.bf16.msra.mxu0 0
      %2160 = vmatprep.subr.bf16.mxu0 0
      %2161 = vmatpush1.bf16.msra.mxu0 0
      %2162 = vmatprep.subr.bf16.mxu0 0
      %2163 = vmatpush1.bf16.msra.mxu0 0
      %2164 = vmatprep.subr.bf16.mxu0 0
      %2165 = vmatpush1.bf16.msra.mxu0 0
      %2166 = vmatprep.subr.bf16.mxu0 0
      %2167 = vmatpush1.bf16.msra.mxu0 0
      %2168 = vmatprep.mubr.bf16.mxu0 0
      %2169 = vmatmul.mubr.bf16.gmra.mrb[0].mxu0 %v2092
      %v2170 = vpop.f32.mrb[0].mxu0
      %v2171 = vadd.f32 0.0, %v2170
      %v2172 = vpop.f32.mrb[0].mxu0
      %v2173 = vadd.f32 0.0, %v2172
      %v2174 = vpop.f32.mrb[0].mxu0
      %v2175 = vadd.f32 0.0, %v2174
      %v2176 = vpop.f32.mrb[0].mxu0
      %v2177 = vadd.f32 0.0, %v2176
      %2178 = vdwg.mxu0
      %v2179 = vadd.f32 %v2084, %v2128
      %v2180 = vadd.f32 %v2085, %v2130
      %v2181 = vadd.f32 %v2086, %v2171
      %v2182 = vadd.f32 %v2087, %v2173
      %v2183 = vadd.f32 %v2088, %v2132
      %v2184 = vadd.f32 %v2089, %v2134
      %v2185 = vadd.f32 %v2090, %v2175
      %v2186 = vadd.f32 %v2091, %v2177
      %v2187 = vxor.u32 %v2179, 2147483648
      %v2188 = vxor.u32 %v2183, 2147483648
      %v2189 = vmul.f32 %v2187, 1.442695
      %v2190 = vpow.pop %v2189
      %v2191 = vmul.f32 %v2188, 1.442695
      %v2192 = vpow.pop %v2191
      %v2193 = vadd.f32 %v2190, 1.0
      %v2194 = vadd.f32 %v2192, 1.0
      %v2195 = vrcp.pop %v2193
      %v2196 = vmul.f32 1.0, %v2195
      %v2197 = vrcp.pop %v2194
      %v2198 = vmul.f32 1.0, %v2197
      %v2199 = vxor.u32 %v2180, 2147483648
      %v2200 = vxor.u32 %v2184, 2147483648
      %v2201 = vmul.f32 %v2199, 1.442695
      %v2202 = vpow.pop %v2201
      %v2203 = vmul.f32 %v2200, 1.442695
      %v2204 = vpow.pop %v2203
      %v2205 = vadd.f32 %v2202, 1.0
      %v2206 = vadd.f32 %v2204, 1.0
      %v2207 = vrcp.pop %v2205
      %v2208 = vmul.f32 1.0, %v2207
      %v2209 = vrcp.pop %v2206
      %v2210 = vmul.f32 1.0, %v2209
      %v2211 = vtanh.pop %v2181
      %v2212 = vtanh.pop %v2185
      %v2213 = vxor.u32 %v2182, 2147483648
      %v2214 = vxor.u32 %v2186, 2147483648
      %v2215 = vmul.f32 %v2213, 1.442695
      %v2216 = vpow.pop %v2215
      %v2217 = vmul.f32 %v2214, 1.442695
      %v2218 = vpow.pop %v2217
      %v2219 = vadd.f32 %v2216, 1.0
      %v2220 = vadd.f32 %v2218, 1.0
      %v2221 = vrcp.pop %v2219
      %v2222 = vmul.f32 1.0, %v2221
      %v2223 = vrcp.pop %v2220
      %v2224 = vmul.f32 1.0, %v2223
      %v2225 = vmul.f32 %v2208, %v2081
      %v2226 = vmul.f32 %v2210, %v2082
      %v2227 = vmul.f32 %v2196, %v2211
      %v2228 = vmul.f32 %v2198, %v2212
      %v2229 = vadd.f32 %v2225, %v2227
      %v2230 = vadd.f32 %v2226, %v2228
      %v2231 = vtanh.pop %v2229
      %v2232 = vtanh.pop %v2230
      %v2233 = vmul.f32 %v2222, %v2231
      %v2234 = vmul.f32 %v2224, %v2232
      %vm2235 = vcmp.gt.s32.totalorder %v841, 6
      %vm2236 = vcmp.gt.s32.totalorder %v842, 6
      %v2237 = vsel %vm2235, 1, 0
      %v2238 = vsel %vm2236, 1, 0
      %2239 = vset.pattern.permute.xlu0 0
      %2240 = vperm.xlu0 %2239, %v2237
      %v2241 = vpop.permute.xlu0 %2240
      %2242 = vset.pattern.permute.xlu0 0
      %2243 = vperm.xlu0 %2242, %v2238
      %v2244 = vpop.permute.xlu0 %2243
      %vm2245 = vcmp.eq.s32.totalorder %v2241, 1
      %vm2246 = vcmp.eq.s32.totalorder %v2244, 1
      %v2247 = vsel %vm2245, %v2233, 0.0
      %v2248 = vsel %vm2246, %v2234, 0.0
      %v2249 = vpack.c.bf16 %v2248, %v2247
      %v2251 = vunpack.c.l.b16 %v2249
      %v2252 = vunpack.c.h.b16 %v2249
      %v2253 = vpack.c.b16 %v2251, %v2251
      %v2254 = vpack.c.b16 %v2252, %v2252
      %s2257 = scalar_lea.vmem %s341, 48
      %2258 = vst [vmem:[%s2257] sm:$0xf] %v2253
      %2259 = vst [vmem:[%s2257 + $0x4] sm:$0xf] %v2254
      %v2260 = vsel %vm2245, %v2233, %v2079
      %v2261 = vsel %vm2246, %v2234, %v2080
      %v2262 = vsel %vm2245, %v2229, %v2081
      %v2263 = vsel %vm2246, %v2230, %v2082
      %s2264 = scalar_lea.vmem [#allocation2], 448
      %v2265 = vld [vmem:[%s2264] sm:$0xff]
      %v2266 = vld [vmem:[%s2264 + $0x8] sm:$0xff]
      %v2267 = vld [vmem:[%s2264 + $0x10] sm:$0xff]
      %v2268 = vld [vmem:[%s2264 + $0x18] sm:$0xff]
      %v2269 = vld [vmem:[%s2264 + $0x20] sm:$0xff]
      %v2270 = vld [vmem:[%s2264 + $0x28] sm:$0xff]
      %v2271 = vld [vmem:[%s2264 + $0x30] sm:$0xff]
      %v2272 = vld [vmem:[%s2264 + $0x38] sm:$0xff]
      %v2273 = vpack.c.bf16 %v2261, %v2260
      %2274 = vmatprep.subr.bf16.mxu0 %v948
      %2275 = vmatpush1.bf16.msra.mxu0 %v947
      %2276 = vmatprep.subr.bf16.mxu0 %v952
      %2277 = vmatpush1.bf16.msra.mxu0 %v951
      %2278 = vmatprep.subr.bf16.mxu0 %v956
      %2279 = vmatpush1.bf16.msra.mxu0 %v955
      %2280 = vmatprep.subr.bf16.mxu0 %v960
      %2281 = vmatpush1.bf16.msra.mxu0 %v959
      %2282 = vmatprep.subr.bf16.mxu0 %v964
      %2283 = vmatpush1.bf16.msra.mxu0 %v963
      %2284 = vmatprep.subr.bf16.mxu0 %v968
      %2285 = vmatpush1.bf16.msra.mxu0 %v967
      %2286 = vmatprep.subr.bf16.mxu0 %v972
      %2287 = vmatpush1.bf16.msra.mxu0 %v971
      %2288 = vmatprep.subr.bf16.mxu0 %v976
      %2289 = vmatpush1.bf16.msra.mxu0 %v975
      %2290 = vmatprep.subr.bf16.mxu0 0
      %2291 = vmatpush1.bf16.msra.mxu0 0
      %2292 = vmatprep.subr.bf16.mxu0 0
      %2293 = vmatpush1.bf16.msra.mxu0 0
      %2294 = vmatprep.subr.bf16.mxu0 0
      %2295 = vmatpush1.bf16.msra.mxu0 0
      %2296 = vmatprep.subr.bf16.mxu0 0
      %2297 = vmatpush1.bf16.msra.mxu0 0
      %2298 = vmatprep.subr.bf16.mxu0 0
      %2299 = vmatpush1.bf16.msra.mxu0 0
      %2300 = vmatprep.subr.bf16.mxu0 0
      %2301 = vmatpush1.bf16.msra.mxu0 0
      %2302 = vmatprep.subr.bf16.mxu0 0
      %2303 = vmatpush1.bf16.msra.mxu0 0
      %2304 = vmatprep.subr.bf16.mxu0 0
      %2305 = vmatpush1.bf16.msra.mxu0 0
      %2306 = vmatprep.mubr.bf16.mxu0 0
      %2307 = vmatmul.mubr.bf16.gmra.mrb[0].mxu0 %v2273
      %v2308 = vpop.f32.mrb[0].mxu0
      %v2309 = vadd.f32 0.0, %v2308
      %v2310 = vpop.f32.mrb[0].mxu0
      %v2311 = vadd.f32 0.0, %v2310
      %v2312 = vpop.f32.mrb[0].mxu0
      %v2313 = vadd.f32 0.0, %v2312
      %v2314 = vpop.f32.mrb[0].mxu0
      %v2315 = vadd.f32 0.0, %v2314
      %2316 = vdwg.mxu0
      %2317 = vmatprep.subr.bf16.mxu0 %v950
      %2318 = vmatpush1.bf16.msra.mxu0 %v949
      %2319 = vmatprep.subr.bf16.mxu0 %v954
      %2320 = vmatpush1.bf16.msra.mxu0 %v953
      %2321 = vmatprep.subr.bf16.mxu0 %v958
      %2322 = vmatpush1.bf16.msra.mxu0 %v957
      %2323 = vmatprep.subr.bf16.mxu0 %v962
      %2324 = vmatpush1.bf16.msra.mxu0 %v961
      %2325 = vmatprep.subr.bf16.mxu0 %v966
      %2326 = vmatpush1.bf16.msra.mxu0 %v965
      %2327 = vmatprep.subr.bf16.mxu0 %v970
      %2328 = vmatpush1.bf16.msra.mxu0 %v969
      %2329 = vmatprep.subr.bf16.mxu0 %v974
      %2330 = vmatpush1.bf16.msra.mxu0 %v973
      %2331 = vmatprep.subr.bf16.mxu0 %v978
      %2332 = vmatpush1.bf16.msra.mxu0 %v977
      %2333 = vmatprep.subr.bf16.mxu0 0
      %2334 = vmatpush1.bf16.msra.mxu0 0
      %2335 = vmatprep.subr.bf16.mxu0 0
      %2336 = vmatpush1.bf16.msra.mxu0 0
      %2337 = vmatprep.subr.bf16.mxu0 0
      %2338 = vmatpush1.bf16.msra.mxu0 0
      %2339 = vmatprep.subr.bf16.mxu0 0
      %2340 = vmatpush1.bf16.msra.mxu0 0
      %2341 = vmatprep.subr.bf16.mxu0 0
      %2342 = vmatpush1.bf16.msra.mxu0 0
      %2343 = vmatprep.subr.bf16.mxu0 0
      %2344 = vmatpush1.bf16.msra.mxu0 0
      %2345 = vmatprep.subr.bf16.mxu0 0
      %2346 = vmatpush1.bf16.msra.mxu0 0
      %2347 = vmatprep.subr.bf16.mxu0 0
      %2348 = vmatpush1.bf16.msra.mxu0 0
      %2349 = vmatprep.mubr.bf16.mxu0 0
      %2350 = vmatmul.mubr.bf16.gmra.mrb[0].mxu0 %v2273
      %v2351 = vpop.f32.mrb[0].mxu0
      %v2352 = vadd.f32 0.0, %v2351
      %v2353 = vpop.f32.mrb[0].mxu0
      %v2354 = vadd.f32 0.0, %v2353
      %v2355 = vpop.f32.mrb[0].mxu0
      %v2356 = vadd.f32 0.0, %v2355
      %v2357 = vpop.f32.mrb[0].mxu0
      %v2358 = vadd.f32 0.0, %v2357
      %2359 = vdwg.mxu0
      %v2360 = vadd.f32 %v2265, %v2309
      %v2361 = vadd.f32 %v2266, %v2311
      %v2362 = vadd.f32 %v2267, %v2352
      %v2363 = vadd.f32 %v2268, %v2354
      %v2364 = vadd.f32 %v2269, %v2313
      %v2365 = vadd.f32 %v2270, %v2315
      %v2366 = vadd.f32 %v2271, %v2356
      %v2367 = vadd.f32 %v2272, %v2358
      %v2368 = vxor.u32 %v2360, 2147483648
      %v2369 = vxor.u32 %v2364, 2147483648
      %v2370 = vmul.f32 %v2368, 1.442695
      %v2371 = vpow.pop %v2370
      %v2372 = vmul.f32 %v2369, 1.442695
      %v2373 = vpow.pop %v2372
      %v2374 = vadd.f32 %v2371, 1.0
      %v2375 = vadd.f32 %v2373, 1.0
      %v2376 = vrcp.pop %v2374
      %v2377 = vmul.f32 1.0, %v2376
      %v2378 = vrcp.pop %v2375
      %v2379 = vmul.f32 1.0, %v2378
      %v2380 = vxor.u32 %v2361, 2147483648
      %v2381 = vxor.u32 %v2365, 2147483648
      %v2382 = vmul.f32 %v2380, 1.442695
      %v2383 = vpow.pop %v2382
      %v2384 = vmul.f32 %v2381, 1.442695
      %v2385 = vpow.pop %v2384
      %v2386 = vadd.f32 %v2383, 1.0
      %v2387 = vadd.f32 %v2385, 1.0
      %v2388 = vrcp.pop %v2386
      %v2389 = vmul.f32 1.0, %v2388
      %v2390 = vrcp.pop %v2387
      %v2391 = vmul.f32 1.0, %v2390
      %v2392 = vtanh.pop %v2362
      %v2393 = vtanh.pop %v2366
      %v2394 = vxor.u32 %v2363, 2147483648
      %v2395 = vxor.u32 %v2367, 2147483648
      %v2396 = vmul.f32 %v2394, 1.442695
      %v2397 = vpow.pop %v2396
      %v2398 = vmul.f32 %v2395, 1.442695
      %v2399 = vpow.pop %v2398
      %v2400 = vadd.f32 %v2397, 1.0
      %v2401 = vadd.f32 %v2399, 1.0
      %v2402 = vrcp.pop %v2400
      %v2403 = vmul.f32 1.0, %v2402
      %v2404 = vrcp.pop %v2401
      %v2405 = vmul.f32 1.0, %v2404
      %v2406 = vmul.f32 %v2389, %v2262
      %v2407 = vmul.f32 %v2391, %v2263
      %v2408 = vmul.f32 %v2377, %v2392
      %v2409 = vmul.f32 %v2379, %v2393
      %v2410 = vadd.f32 %v2406, %v2408
      %v2411 = vadd.f32 %v2407, %v2409
      %v2412 = vtanh.pop %v2410
      %v2413 = vtanh.pop %v2411
      %v2414 = vmul.f32 %v2403, %v2412
      %v2415 = vmul.f32 %v2405, %v2413
      %vm2416 = vcmp.gt.s32.totalorder %v841, 7
      %vm2417 = vcmp.gt.s32.totalorder %v842, 7
      %v2418 = vsel %vm2416, 1, 0
      %v2419 = vsel %vm2417, 1, 0
      %2420 = vset.pattern.permute.xlu0 0
      %2421 = vperm.xlu0 %2420, %v2418
      %v2422 = vpop.permute.xlu0 %2421
      %2423 = vset.pattern.permute.xlu0 0
      %2424 = vperm.xlu0 %2423, %v2419
      %v2425 = vpop.permute.xlu0 %2424
      %vm2426 = vcmp.eq.s32.totalorder %v2422, 1
      %vm2427 = vcmp.eq.s32.totalorder %v2425, 1
      %v2428 = vsel %vm2426, %v2414, 0.0
      %v2429 = vsel %vm2427, %v2415, 0.0
      %v2430 = vpack.c.bf16 %v2429, %v2428
      %v2432 = vunpack.c.l.b16 %v2430
      %v2433 = vunpack.c.h.b16 %v2430
      %v2434 = vpack.c.b16 %v2432, %v2432
      %v2435 = vpack.c.b16 %v2433, %v2433
      %s2438 = scalar_lea.vmem %s341, 56
      %2439 = vst [vmem:[%s2438] sm:$0xf] %v2434
      %2440 = vst [vmem:[%s2438 + $0x4] sm:$0xf] %v2435
      %s2441 = smul.u32 2, %s21
      %p2442 = scmp.lt.s32.totalorder %s20, 1
      %s2443 = scalar_select %p2442, %s20, 1
      %p2444 = scmp.lt.s32.totalorder %s2441, 1
      %s2445 = scalar_select %p2444, %s2441, 1
      %s2446 = smul.addr %s2443, 16
      %s2447 = sadd.s32 %s2445, %s2446
      %s2448 = smul.addr %s2447, 4
      %s2449 = scalar_lea.vmem %s5, %s2448
      // Predicated region
      $region41: #{bilstm_crf_forward.4} parent=39 // pred_check
        %p2450 = pneg %p180
      $region42: #{bilstm_crf_forward.4} parent=39 // pred_check_branch
        %2452 = sbr.rel (%p2450) target = $region44
      $region43: #{bilstm_crf_forward.4} parent=39 // pred_region
        %s2453 = smul.u32 2, %s21
      $region44: #{bilstm_crf_forward.4} parent=39 // pred_fallthru
        _
    $region40: #{bilstm_crf_forward.4} parent=5 // pred_fallthru
      _
    %p2454 = scmp.le.s32.totalorder 2, %s11
    // Predicated region
    $region45: #{bilstm_crf_forward.4} parent=5 // pred_check
      %p2455 = pneg %p2454
    $region46: #{bilstm_crf_forward.4} parent=5 // pred_check_branch
      %2457 = sbr.rel (%p2455) target = $region48
    $region47: #{bilstm_crf_forward.4} parent=5 // pred_region
      %s2458 = ssub.s32 %s11, 2
      // Predicated region
      $region49: #{bilstm_crf_forward.4} parent=47 // pred_check
        %p2459 = pneg %p186
      $region50: #{bilstm_crf_forward.4} parent=47 // pred_check_branch
        %2461 = sbr.rel (%p2459) target = $region52
      $region51: #{bilstm_crf_forward.4} parent=47 // pred_region
        %s2462 = smul.u32 2, %s23
        %p2463 = scmp.lt.s32.totalorder %s22, 1
        %s2464 = scalar_select %p2463, %s22, 1
        %p2465 = scmp.lt.s32.totalorder %s2462, 1
        %s2466 = scalar_select %p2465, %s2462, 1
        %s2467 = smul.addr %s2464, 16
        %s2468 = sadd.s32 %s2466, %s2467
        %s2469 = smul.addr %s2468, 4
        %s2470 = scalar_lea.vmem %s5, %s2469
      $region52: #{bilstm_crf_forward.4} parent=47 // pred_fallthru
        _
    $region48: #{bilstm_crf_forward.4} parent=5 // pred_fallthru
      _
  $region6: #{bilstm_crf_forward.4} parent=0 // loop_footer
    %s15 = sadd.s32 1, %s11
  $region7: #{bilstm_crf_forward.4} parent=0 // loop_footer_branch
    %10 = sbr.rel target = $region3
  $region8: #{bilstm_crf_forward.4} parent=0 // loop_exit
    _

</llo_original>
